<compile_context>
chip_gen: v7x
topology: tpu7x:2x2x1
jax: 0.10.0
libtpu: 0.0.40
codegen_flags: <defaults>
</compile_context>

<pallas_src>
import functools

import numpy as np

import jax
import jax.numpy as jnp
from jax.experimental import pallas as pl
from jax.experimental.pallas import tpu as pltpu


_PARAM_ORDER = ("g1", "b1", "s1r", "s1b", "wk0", "wk1", "wk2", "bc1",
                "g2", "b2", "s2r", "s2b", "w2", "ws", "bfin")


# ----------------------------- Pallas kernel --------------------------------


def resblock_kernel(
    x_ref,
    g1_ref, b1_ref, s1r_ref, s1b_ref,
    wk0_ref, wk1_ref, wk2_ref, bc1_ref,
    g2_ref, b2_ref, s2r_ref, s2b_ref,
    w2_ref, ws_ref, bfin_ref,
    out_ref,
    *, D, eps=1e-6,
):
    """One grid step == NB batch images; everything stays lane-packed (.., W*C)."""
    f32 = jnp.float32
    bf16 = jnp.bfloat16

    NB, H, WCin = x_ref.shape
    WCout = out_ref.shape[2]
    M = NB * H

    x3 = x_ref[...]                                        # (NB, H, W*Cin)  f32

    def gn_silu(h3, sr_ref, sb_ref, g_ref, b_ref):
        # Per-image GroupNorm: sum over rows first (cheap reduction), then a
        # tiny (NB, WC)@(WC, G) reduce matmul (1/(H*W*Cg) baked into sr) and a
        # (NB, G)@(G, WC) broadcast-back.  Two-pass (mean, then variance of the
        # centred data) matches torch.nn.GroupNorm numerics; all f32.
        colsum = jnp.sum(h3, axis=1)                               # (NB, WC)
        mean_l = jnp.dot(
            jnp.dot(colsum, sr_ref[...], preferred_element_type=f32),
            sb_ref[...], preferred_element_type=f32)               # (NB, WC)
        d = h3 - mean_l[:, None, :]                                # (NB, H, WC)
        var_l = jnp.dot(
            jnp.dot(jnp.sum(d * d, axis=1), sr_ref[...],
                    preferred_element_type=f32),
            sb_ref[...], preferred_element_type=f32)               # (NB, WC)
        scale_l = jax.lax.rsqrt(var_l + eps) * g_ref[...]          # (NB, WC)
        y = d * scale_l[:, None, :] + b_ref[...][None]             # (NB, H, WC)
        return y * jax.nn.sigmoid(y)                               # SiLU

    def mm(a2d_bf16, w_ref):                 # bf16 MXU operands, f32 accumulate
        return jnp.dot(a2d_bf16, w_ref[...], preferred_element_type=f32)

    h = gn_silu(x3, s1r_ref, s1b_ref, g1_ref, b1_ref)      # (NB, H, W*Cin) f32

    # ---- dilated 3x3 conv as three tap matmuls ------------------------------
    # Vertical taps are zero-padded row shifts done per image (shifts never
    # cross an image boundary); horizontal taps + horizontal zero padding live
    # inside the block-structured tap weights wk0/wk1/wk2.
    hb = h.astype(bf16)                                    # cast once for MXU
    if D < H:
        zrows = jnp.zeros((NB, D, WCin), bf16)
        down = jnp.concatenate([zrows, hb[:, :H - D, :]], axis=1)  # row y -> h[y-D]
        up = jnp.concatenate([hb[:, D:, :], zrows], axis=1)        # row y -> h[y+D]
        conv = (mm(hb.reshape(M, WCin), wk1_ref)
                + mm(down.reshape(M, WCin), wk0_ref)
                + mm(up.reshape(M, WCin), wk2_ref)
                + bc1_ref[...])                                    # (M, W*Cout)
    else:  # vertical neighbours fully outside the image -> centre tap only
        conv = mm(hb.reshape(M, WCin), wk1_ref) + bc1_ref[...]
    conv = conv.reshape(NB, H, WCout)

    h2 = gn_silu(conv, s2r_ref, s2b_ref, g2_ref, b2_ref)   # (NB, H, W*Cout)

    # ---- 1x1 conv + 1x1 shortcut: two block-diagonal dots, one accumulator --
    out = (mm(h2.astype(bf16).reshape(M, WCout), w2_ref)
           + mm(x3.astype(bf16).reshape(M, WCin), ws_ref)
           + bfin_ref[...])                                        # (M, W*Cout)
    out_ref[...] = out.reshape(NB, H, WCout)


# --------------------------- weight pre-packing ------------------------------


def pack_params(params, *, H, W, group_num, dilation):
    """Build lane-packed kernel parameters from plain (PyTorch-style) weights.

    If in_channels == out_channels (nn.Identity shortcut in the module), pass
    ws=np.eye(C) and bs=np.zeros(C) to reproduce the identity shortcut.
    """
    w1 = np.asarray(params["w1"], np.float32)          # (3, 3, Cin, Cout) HWIO
    KH, KW, Cin, Cout = w1.shape
    G, D = group_num, dilation
    assert Cin % G == 0 and Cout % G == 0, "channels must be divisible by group_num"

    def group_mats(C):
        cg = C // G
        lane_group = (np.arange(W * C) % C) // cg       # group id of each lane
        onehot = (lane_group[:, None] == np.arange(G)[None, :]).astype(np.float32)
        s_red = onehot / float(H * W * cg)              # (W*C, G): col-sum -> group mean
        s_bc = onehot.T                                 # (G, W*C): broadcast back per lane
        return jnp.asarray(s_red), jnp.asarray(s_bc)

    # dilated 3x3 conv -> three (W*Cin, W*Cout) block-structured tap weights,
    # one per vertical tap ky.  Row = xin*Cin + ci, column = xout*Cout + co;
    # horizontal zero padding is simply "no entry".
    wk = np.zeros((KH, W * Cin, W * Cout), np.float32)
    for ky in range(KH):
        for xout in range(W):
            for kx in range(KW):
                xin = xout + (kx - 1) * D
                if 0 <= xin < W:
                    wk[ky, xin * Cin:(xin + 1) * Cin,
                       xout * Cout:(xout + 1) * Cout] = w1[ky, kx]

    # 1x1 conv and 1x1 shortcut -> block-diagonal weights (applied as two dots).
    w2 = np.asarray(params["w2"], np.float32)           # (Cout, Cout)
    ws = np.asarray(params["ws"], np.float32)           # (Cin,  Cout)
    w2b = np.zeros((W * Cout, W * Cout), np.float32)
    wsb = np.zeros((W * Cin, W * Cout), np.float32)
    for xw in range(W):
        w2b[xw * Cout:(xw + 1) * Cout, xw * Cout:(xw + 1) * Cout] = w2
        wsb[xw * Cin:(xw + 1) * Cin, xw * Cout:(xw + 1) * Cout] = ws

    def tiled(v):                                       # per-lane vector (1, W*C)
        v = jnp.asarray(v, jnp.float32).reshape(1, -1)
        return jnp.tile(v, (1, W))

    s1r, s1b = group_mats(Cin)
    s2r, s2b = group_mats(Cout)
    bf16 = jnp.bfloat16                                 # MXU operand dtype
    return {
        "g1": tiled(params["g1"]), "b1": tiled(params["b1"]),
        "s1r": s1r, "s1b": s1b,
        "wk0": jnp.asarray(wk[0], bf16),
        "wk1": jnp.asarray(wk[1], bf16),
        "wk2": jnp.asarray(wk[2], bf16),
        "bc1": tiled(params["bc1"]),
        "g2": tiled(params["g2"]), "b2": tiled(params["b2"]),
        "s2r": s2r, "s2b": s2b,
        "w2": jnp.asarray(w2b, bf16), "ws": jnp.asarray(wsb, bf16),
        "bfin": tiled(np.asarray(params["bc2"]) + np.asarray(params["bs"])),
    }


# ------------------------------- wrapper -------------------------------------


def resblock_pallas(x_nhwc, packed, *, dilation, block_n=None):
    N, H, W, Cin = x_nhwc.shape
    WCin = W * Cin
    WCout = packed["w2"].shape[1]
    Cout = WCout // W

    if block_n is None:
        block_n = N
    assert N % block_n == 0, "batch must be divisible by block_n"
    n_blocks = N // block_n
    # Pick block_n so block_n*H >= ~128 matmul rows (256 on v6e/v7x if batch
    # allows) while keeping n_blocks >= 2 for v7x's two TensorCores.

    x_slab = x_nhwc.reshape(N, H, WCin)                 # lane-dense input slab

    kern = functools.partial(resblock_kernel, D=dilation)

    def param_spec(a):
        nd = a.ndim
        return pl.BlockSpec(a.shape, lambda n, _nd=nd: (0,) * _nd)

    G = packed["s1r"].shape[1]
    MT = N * H                                          # total matmul rows
    flops = (3 * 2 * MT * WCin * WCout                  # three conv tap matmuls
             + 2 * MT * WCout * WCout                   # 1x1 conv
             + 2 * MT * WCin * WCout                    # 1x1 shortcut
             + 2 * (2 * N * WCin * G + 2 * N * G * WCin)    # GN1 reduce/bcast
             + 2 * (2 * N * WCout * G + 2 * N * G * WCout)) # GN2 reduce/bcast
    transcendentals = MT * (WCin + WCout)               # SiLU sigmoids
    bytes_accessed = (4 * (int(x_slab.size) + MT * WCout)
                      + sum(int(v.size) * v.dtype.itemsize
                            for v in packed.values()))

    out = pl.pallas_call(
        kern,
        out_shape=jax.ShapeDtypeStruct((N, H, WCout), jnp.float32),
        grid_spec=pltpu.PrefetchScalarGridSpec(
            num_scalar_prefetch=0,
            grid=(n_blocks,),
            in_specs=[pl.BlockSpec((block_n, H, WCin), lambda n: (n, 0, 0))]
                     + [param_spec(packed[k]) for k in _PARAM_ORDER],
            out_specs=pl.BlockSpec((block_n, H, WCout), lambda n: (n, 0, 0)),
        ),
        compiler_params=pltpu.CompilerParams(
            dimension_semantics=("parallel",)),          # image blocks independent
        cost_estimate=pl.CostEstimate(
            flops=int(flops),
            transcendentals=int(transcendentals),
            bytes_accessed=int(bytes_accessed)),
    )(x_slab, *[packed[k] for k in _PARAM_ORDER])

    return out.reshape(N, H, W, Cout)


# --------------------------- pure-JAX reference -------------------------------


def resblock_ref(x, params, *, group_num, dilation):
    def gn(h, gamma, beta):
        N, H, W, C = h.shape
        hg = h.reshape(N, H, W, group_num, C // group_num)
        mean = hg.mean(axis=(1, 2, 4), keepdims=True)
        var = ((hg - mean) ** 2).mean(axis=(1, 2, 4), keepdims=True)
        hn = (hg - mean) / jnp.sqrt(var + 1e-6)
        return hn.reshape(N, H, W, C) * gamma + beta

    d = dilation
    h = gn(x, params["g1"], params["b1"])
    h = h * jax.nn.sigmoid(h)
    h = jax.lax.conv_general_dilated(
        h, params["w1"], window_strides=(1, 1),
        padding=[(d, d), (d, d)], rhs_dilation=(d, d),
        dimension_numbers=("NHWC", "HWIO", "NHWC")) + params["bc1"]
    h = gn(h, params["g2"], params["b2"])
    h = h * jax.nn.sigmoid(h)
    h = jax.lax.conv_general_dilated(
        h, params["w2"][None, None], window_strides=(1, 1), padding="VALID",
        dimension_numbers=("NHWC", "HWIO", "NHWC")) + params["bc2"]
    short = jax.lax.conv_general_dilated(
        x, params["ws"][None, None], window_strides=(1, 1), padding="VALID",
        dimension_numbers=("NHWC", "HWIO", "NHWC")) + params["bs"]
    return short + h


# --------------------------------- main ---------------------------------------


if __name__ == "__main__":
    # ResBlock(in_channels=8, out_channels=16, group_num=4, max_channels=64)
    # -> skip = max(1, 64 // 16 - 1) = 3  (dilation = padding = 3)
    N, H, W = 16, 16, 16
    Cin, Cout = 8, 16
    GROUPS = 4
    MAX_CH = 64
    SKIP = max(1, MAX_CH // Cout - 1)

    key = jax.random.PRNGKey(0)
    ks = jax.random.split(key, 11)

    params = {
        "g1":  1.0 + 0.1 * jax.random.normal(ks[0], (Cin,), jnp.float32),
        "b1":  0.1 * jax.random.normal(ks[1], (Cin,), jnp.float32),
        "w1":  0.1 * jax.random.normal(ks[2], (3, 3, Cin, Cout), jnp.float32),
        "bc1": 0.1 * jax.random.normal(ks[3], (Cout,), jnp.float32),
        "g2":  1.0 + 0.1 * jax.random.normal(ks[4], (Cout,), jnp.float32),
        "b2":  0.1 * jax.random.normal(ks[5], (Cout,), jnp.float32),
        "w2":  0.1 * jax.random.normal(ks[6], (Cout, Cout), jnp.float32),
        "bc2": 0.1 * jax.random.normal(ks[7], (Cout,), jnp.float32),
        "ws":  0.1 * jax.random.normal(ks[8], (Cin, Cout), jnp.float32),
        "bs":  0.1 * jax.random.normal(ks[9], (Cout,), jnp.float32),
    }
    x = jax.random.normal(ks[10], (N, H, W, Cin), jnp.float32)

    packed = pack_params(params, H=H, W=W, group_num=GROUPS, dilation=SKIP)

    # block_n=8 -> M = 8*16 = 128 matmul rows per grid step and grid=(2,), so
    # both v7x TensorCores get a block (on v5e/v6e the two steps run serially).
    out = resblock_pallas(x, packed, dilation=SKIP, block_n=8)
    out = jax.block_until_ready(out)

    ref = jax.block_until_ready(
        resblock_ref(x, params, group_num=GROUPS, dilation=SKIP))

    # Tolerance sized for bf16 MXU operands with f32 accumulation (GroupNorm
    # statistics and all elementwise math remain f32).
    if not jnp.allclose(out, ref, atol=3e-2, rtol=3e-2):
        raise AssertionError("Pallas ResBlock does not match reference")

    print("KERNEL_OK")
</pallas_src>

<mosaic_0001>
module attributes {stable_mosaic.version = 11 : i64} {
  func.func @resblock_kernel(%arg0: i32, %arg1: memref<8x16x128xf32, #tpu.memory_space<vmem>>, %arg2: memref<1x128xf32, #tpu.memory_space<vmem>>, %arg3: memref<1x128xf32, #tpu.memory_space<vmem>>, %arg4: memref<128x4xf32, #tpu.memory_space<vmem>>, %arg5: memref<4x128xf32, #tpu.memory_space<vmem>>, %arg6: memref<128x256xbf16, #tpu.memory_space<vmem>>, %arg7: memref<128x256xbf16, #tpu.memory_space<vmem>>, %arg8: memref<128x256xbf16, #tpu.memory_space<vmem>>, %arg9: memref<1x256xf32, #tpu.memory_space<vmem>>, %arg10: memref<1x256xf32, #tpu.memory_space<vmem>>, %arg11: memref<1x256xf32, #tpu.memory_space<vmem>>, %arg12: memref<256x4xf32, #tpu.memory_space<vmem>>, %arg13: memref<4x256xf32, #tpu.memory_space<vmem>>, %arg14: memref<256x256xbf16, #tpu.memory_space<vmem>>, %arg15: memref<128x256xbf16, #tpu.memory_space<vmem>>, %arg16: memref<1x256xf32, #tpu.memory_space<vmem>>, %arg17: memref<8x16x256xf32, #tpu.memory_space<vmem>>) attributes {dimension_semantics = [#tpu.dimension_semantics<parallel>], iteration_bounds = array<i64: 2>, scalar_prefetch = 0 : i64, scratch_operands = 0 : i64, tpu.core_type = #tpu.core_type<tc>, window_params = [{transform_indices = @transform_0, window_bounds = array<i64: 8, 16, 128>}, {pipeline_mode = #tpu.pipeline_mode<synchronous>, transform_indices = @transform_1, window_bounds = array<i64: 1, 128>}, {pipeline_mode = #tpu.pipeline_mode<synchronous>, transform_indices = @transform_2, window_bounds = array<i64: 1, 128>}, {pipeline_mode = #tpu.pipeline_mode<synchronous>, transform_indices = @transform_3, window_bounds = array<i64: 128, 4>}, {pipeline_mode = #tpu.pipeline_mode<synchronous>, transform_indices = @transform_4, window_bounds = array<i64: 4, 128>}, {pipeline_mode = #tpu.pipeline_mode<synchronous>, transform_indices = @transform_5, window_bounds = array<i64: 128, 256>}, {pipeline_mode = #tpu.pipeline_mode<synchronous>, transform_indices = @transform_6, window_bounds = array<i64: 128, 256>}, {pipeline_mode = #tpu.pipeline_mode<synchronous>, transform_indices = @transform_7, window_bounds = array<i64: 128, 256>}, {pipeline_mode = #tpu.pipeline_mode<synchronous>, transform_indices = @transform_8, window_bounds = array<i64: 1, 256>}, {pipeline_mode = #tpu.pipeline_mode<synchronous>, transform_indices = @transform_9, window_bounds = array<i64: 1, 256>}, {pipeline_mode = #tpu.pipeline_mode<synchronous>, transform_indices = @transform_10, window_bounds = array<i64: 1, 256>}, {pipeline_mode = #tpu.pipeline_mode<synchronous>, transform_indices = @transform_11, window_bounds = array<i64: 256, 4>}, {pipeline_mode = #tpu.pipeline_mode<synchronous>, transform_indices = @transform_12, window_bounds = array<i64: 4, 256>}, {pipeline_mode = #tpu.pipeline_mode<synchronous>, transform_indices = @transform_13, window_bounds = array<i64: 256, 256>}, {pipeline_mode = #tpu.pipeline_mode<synchronous>, transform_indices = @transform_14, window_bounds = array<i64: 128, 256>}, {pipeline_mode = #tpu.pipeline_mode<synchronous>, transform_indices = @transform_15, window_bounds = array<i64: 1, 256>}, {transform_indices = @transform_16, window_bounds = array<i64: 8, 16, 256>}]} {
    %c0 = arith.constant 0 : index
    %c0_0 = arith.constant 0 : index
    %c0_1 = arith.constant 0 : index
    %0 = vector.load %arg1[%c0, %c0_0, %c0_1] : memref<8x16x128xf32, #tpu.memory_space<vmem>>, vector<8x16x128xf32>
    %cst = arith.constant dense<0.000000e+00> : vector<8x128xf32>
    %1 = vector.multi_reduction <add>, %0, %cst [1] : vector<8x16x128xf32> to vector<8x128xf32>
    %c0_2 = arith.constant 0 : index
    %c0_3 = arith.constant 0 : index
    %2 = vector.load %arg4[%c0_2, %c0_3] : memref<128x4xf32, #tpu.memory_space<vmem>>, vector<128x4xf32>
    %cst_4 = arith.constant dense<0.000000e+00> : vector<8x4xf32>
    %3 = tpu.matmul %1, %2, %cst_4 {dimension_numbers = #tpu.dot_dimension_numbers<[1], [0], [0], [1], [0, 0, 1, 1], [], []>} : vector<8x128xf32>, vector<128x4xf32>, vector<8x4xf32> -> vector<8x4xf32>
    %c0_5 = arith.constant 0 : index
    %c0_6 = arith.constant 0 : index
    %4 = vector.load %arg5[%c0_5, %c0_6] : memref<4x128xf32, #tpu.memory_space<vmem>>, vector<4x128xf32>
    %cst_7 = arith.constant dense<0.000000e+00> : vector<8x128xf32>
    %5 = tpu.matmul %3, %4, %cst_7 {dimension_numbers = #tpu.dot_dimension_numbers<[1], [0], [0], [1], [0, 0, 1, 1], [], []>} : vector<8x4xf32>, vector<4x128xf32>, vector<8x128xf32> -> vector<8x128xf32>
    %6 = vector.shape_cast %5 : vector<8x128xf32> to vector<8x1x128xf32>
    %7 = vector.broadcast %6 : vector<8x1x128xf32> to vector<8x16x128xf32>
    %8 = arith.subf %0, %7 : vector<8x16x128xf32>
    %9 = arith.mulf %8, %8 : vector<8x16x128xf32>
    %cst_8 = arith.constant dense<0.000000e+00> : vector<8x128xf32>
    %10 = vector.multi_reduction <add>, %9, %cst_8 [1] : vector<8x16x128xf32> to vector<8x128xf32>
    %c0_9 = arith.constant 0 : index
    %c0_10 = arith.constant 0 : index
    %11 = vector.load %arg4[%c0_9, %c0_10] : memref<128x4xf32, #tpu.memory_space<vmem>>, vector<128x4xf32>
    %cst_11 = arith.constant dense<0.000000e+00> : vector<8x4xf32>
    %12 = tpu.matmul %10, %11, %cst_11 {dimension_numbers = #tpu.dot_dimension_numbers<[1], [0], [0], [1], [0, 0, 1, 1], [], []>} : vector<8x128xf32>, vector<128x4xf32>, vector<8x4xf32> -> vector<8x4xf32>
    %c0_12 = arith.constant 0 : index
    %c0_13 = arith.constant 0 : index
    %13 = vector.load %arg5[%c0_12, %c0_13] : memref<4x128xf32, #tpu.memory_space<vmem>>, vector<4x128xf32>
    %cst_14 = arith.constant dense<0.000000e+00> : vector<8x128xf32>
    %14 = tpu.matmul %12, %13, %cst_14 {dimension_numbers = #tpu.dot_dimension_numbers<[1], [0], [0], [1], [0, 0, 1, 1], [], []>} : vector<8x4xf32>, vector<4x128xf32>, vector<8x128xf32> -> vector<8x128xf32>
    %cst_15 = arith.constant 9.99999997E-7 : f32
    %15 = vector.broadcast %cst_15 : f32 to vector<8x128xf32>
    %16 = arith.addf %14, %15 : vector<8x128xf32>
    %17 = math.rsqrt %16 : vector<8x128xf32>
    %c0_16 = arith.constant 0 : index
    %c0_17 = arith.constant 0 : index
    %18 = vector.load %arg2[%c0_16, %c0_17] : memref<1x128xf32, #tpu.memory_space<vmem>>, vector<1x128xf32>
    %19 = vector.broadcast %18 : vector<1x128xf32> to vector<8x128xf32>
    %20 = arith.mulf %17, %19 : vector<8x128xf32>
    %21 = vector.shape_cast %20 : vector<8x128xf32> to vector<8x1x128xf32>
    %22 = vector.broadcast %21 : vector<8x1x128xf32> to vector<8x16x128xf32>
    %23 = arith.mulf %8, %22 : vector<8x16x128xf32>
    %c0_18 = arith.constant 0 : index
    %c0_19 = arith.constant 0 : index
    %24 = vector.load %arg3[%c0_18, %c0_19] : memref<1x128xf32, #tpu.memory_space<vmem>>, vector<1x128xf32>
    %25 = vector.shape_cast %24 : vector<1x128xf32> to vector<1x1x128xf32>
    %26 = vector.broadcast %25 : vector<1x1x128xf32> to vector<8x16x128xf32>
    %27 = arith.addf %23, %26 : vector<8x16x128xf32>
    %28 = arith.negf %27 : vector<8x16x128xf32>
    %29 = math.exp %28 : vector<8x16x128xf32>
    %cst_20 = arith.constant 1.000000e+00 : f32
    %30 = vector.broadcast %cst_20 : f32 to vector<8x16x128xf32>
    %31 = arith.addf %30, %29 : vector<8x16x128xf32>
    %32 = arith.divf %30, %31 : vector<8x16x128xf32>
    %33 = arith.mulf %27, %32 : vector<8x16x128xf32>
    %34 = arith.truncf %33 : vector<8x16x128xf32> to vector<8x16x128xbf16>
    %cst_21 = arith.constant 0.000000e+00 : bf16
    %35 = vector.broadcast %cst_21 : bf16 to vector<8x3x128xbf16>
    %36 = vector.extract_strided_slice %34 {offsets = [0, 0, 0], sizes = [8, 13, 128], strides = [1, 1, 1]} : vector<8x16x128xbf16> to vector<8x13x128xbf16>
    %37 = tpu.concatenate %35, %36 in 1 : vector<8x3x128xbf16>, vector<8x13x128xbf16> -> vector<8x16x128xbf16>
    %38 = vector.extract_strided_slice %34 {offsets = [0, 3, 0], sizes = [8, 13, 128], strides = [1, 1, 1]} : vector<8x16x128xbf16> to vector<8x13x128xbf16>
    %39 = tpu.concatenate %38, %35 in 1 : vector<8x13x128xbf16>, vector<8x3x128xbf16> -> vector<8x16x128xbf16>
    %40 = vector.shape_cast %34 : vector<8x16x128xbf16> to vector<128x128xbf16>
    %c0_22 = arith.constant 0 : index
    %c0_23 = arith.constant 0 : index
    %41 = vector.load %arg7[%c0_22, %c0_23] : memref<128x256xbf16, #tpu.memory_space<vmem>>, vector<128x256xbf16>
    %cst_24 = arith.constant dense<0.000000e+00> : vector<128x256xf32>
    %42 = tpu.matmul %40, %41, %cst_24 {dimension_numbers = #tpu.dot_dimension_numbers<[1], [0], [0], [1], [0, 0, 1, 1], [], []>} : vector<128x128xbf16>, vector<128x256xbf16>, vector<128x256xf32> -> vector<128x256xf32>
    %43 = vector.shape_cast %37 : vector<8x16x128xbf16> to vector<128x128xbf16>
    %c0_25 = arith.constant 0 : index
    %c0_26 = arith.constant 0 : index
    %44 = vector.load %arg6[%c0_25, %c0_26] : memref<128x256xbf16, #tpu.memory_space<vmem>>, vector<128x256xbf16>
    %cst_27 = arith.constant dense<0.000000e+00> : vector<128x256xf32>
    %45 = tpu.matmul %43, %44, %cst_27 {dimension_numbers = #tpu.dot_dimension_numbers<[1], [0], [0], [1], [0, 0, 1, 1], [], []>} : vector<128x128xbf16>, vector<128x256xbf16>, vector<128x256xf32> -> vector<128x256xf32>
    %46 = arith.addf %42, %45 : vector<128x256xf32>
    %47 = vector.shape_cast %39 : vector<8x16x128xbf16> to vector<128x128xbf16>
    %c0_28 = arith.constant 0 : index
    %c0_29 = arith.constant 0 : index
    %48 = vector.load %arg8[%c0_28, %c0_29] : memref<128x256xbf16, #tpu.memory_space<vmem>>, vector<128x256xbf16>
    %cst_30 = arith.constant dense<0.000000e+00> : vector<128x256xf32>
    %49 = tpu.matmul %47, %48, %cst_30 {dimension_numbers = #tpu.dot_dimension_numbers<[1], [0], [0], [1], [0, 0, 1, 1], [], []>} : vector<128x128xbf16>, vector<128x256xbf16>, vector<128x256xf32> -> vector<128x256xf32>
    %50 = arith.addf %46, %49 : vector<128x256xf32>
    %c0_31 = arith.constant 0 : index
    %c0_32 = arith.constant 0 : index
    %51 = vector.load %arg9[%c0_31, %c0_32] : memref<1x256xf32, #tpu.memory_space<vmem>>, vector<1x256xf32>
    %52 = vector.broadcast %51 : vector<1x256xf32> to vector<128x256xf32>
    %53 = arith.addf %50, %52 : vector<128x256xf32>
    %54 = vector.shape_cast %53 : vector<128x256xf32> to vector<8x16x256xf32>
    %cst_33 = arith.constant dense<0.000000e+00> : vector<8x256xf32>
    %55 = vector.multi_reduction <add>, %54, %cst_33 [1] : vector<8x16x256xf32> to vector<8x256xf32>
    %c0_34 = arith.constant 0 : index
    %c0_35 = arith.constant 0 : index
    %56 = vector.load %arg12[%c0_34, %c0_35] : memref<256x4xf32, #tpu.memory_space<vmem>>, vector<256x4xf32>
    %cst_36 = arith.constant dense<0.000000e+00> : vector<8x4xf32>
    %57 = tpu.matmul %55, %56, %cst_36 {dimension_numbers = #tpu.dot_dimension_numbers<[1], [0], [0], [1], [0, 0, 1, 1], [], []>} : vector<8x256xf32>, vector<256x4xf32>, vector<8x4xf32> -> vector<8x4xf32>
    %c0_37 = arith.constant 0 : index
    %c0_38 = arith.constant 0 : index
    %58 = vector.load %arg13[%c0_37, %c0_38] : memref<4x256xf32, #tpu.memory_space<vmem>>, vector<4x256xf32>
    %cst_39 = arith.constant dense<0.000000e+00> : vector<8x256xf32>
    %59 = tpu.matmul %57, %58, %cst_39 {dimension_numbers = #tpu.dot_dimension_numbers<[1], [0], [0], [1], [0, 0, 1, 1], [], []>} : vector<8x4xf32>, vector<4x256xf32>, vector<8x256xf32> -> vector<8x256xf32>
    %60 = vector.shape_cast %59 : vector<8x256xf32> to vector<8x1x256xf32>
    %61 = vector.broadcast %60 : vector<8x1x256xf32> to vector<8x16x256xf32>
    %62 = arith.subf %54, %61 : vector<8x16x256xf32>
    %63 = arith.mulf %62, %62 : vector<8x16x256xf32>
    %cst_40 = arith.constant dense<0.000000e+00> : vector<8x256xf32>
    %64 = vector.multi_reduction <add>, %63, %cst_40 [1] : vector<8x16x256xf32> to vector<8x256xf32>
    %c0_41 = arith.constant 0 : index
    %c0_42 = arith.constant 0 : index
    %65 = vector.load %arg12[%c0_41, %c0_42] : memref<256x4xf32, #tpu.memory_space<vmem>>, vector<256x4xf32>
    %cst_43 = arith.constant dense<0.000000e+00> : vector<8x4xf32>
    %66 = tpu.matmul %64, %65, %cst_43 {dimension_numbers = #tpu.dot_dimension_numbers<[1], [0], [0], [1], [0, 0, 1, 1], [], []>} : vector<8x256xf32>, vector<256x4xf32>, vector<8x4xf32> -> vector<8x4xf32>
    %c0_44 = arith.constant 0 : index
    %c0_45 = arith.constant 0 : index
    %67 = vector.load %arg13[%c0_44, %c0_45] : memref<4x256xf32, #tpu.memory_space<vmem>>, vector<4x256xf32>
    %cst_46 = arith.constant dense<0.000000e+00> : vector<8x256xf32>
    %68 = tpu.matmul %66, %67, %cst_46 {dimension_numbers = #tpu.dot_dimension_numbers<[1], [0], [0], [1], [0, 0, 1, 1], [], []>} : vector<8x4xf32>, vector<4x256xf32>, vector<8x256xf32> -> vector<8x256xf32>
    %cst_47 = arith.constant 9.99999997E-7 : f32
    %69 = vector.broadcast %cst_47 : f32 to vector<8x256xf32>
    %70 = arith.addf %68, %69 : vector<8x256xf32>
    %71 = math.rsqrt %70 : vector<8x256xf32>
    %c0_48 = arith.constant 0 : index
    %c0_49 = arith.constant 0 : index
    %72 = vector.load %arg10[%c0_48, %c0_49] : memref<1x256xf32, #tpu.memory_space<vmem>>, vector<1x256xf32>
    %73 = vector.broadcast %72 : vector<1x256xf32> to vector<8x256xf32>
    %74 = arith.mulf %71, %73 : vector<8x256xf32>
    %75 = vector.shape_cast %74 : vector<8x256xf32> to vector<8x1x256xf32>
    %76 = vector.broadcast %75 : vector<8x1x256xf32> to vector<8x16x256xf32>
    %77 = arith.mulf %62, %76 : vector<8x16x256xf32>
    %c0_50 = arith.constant 0 : index
    %c0_51 = arith.constant 0 : index
    %78 = vector.load %arg11[%c0_50, %c0_51] : memref<1x256xf32, #tpu.memory_space<vmem>>, vector<1x256xf32>
    %79 = vector.shape_cast %78 : vector<1x256xf32> to vector<1x1x256xf32>
    %80 = vector.broadcast %79 : vector<1x1x256xf32> to vector<8x16x256xf32>
    %81 = arith.addf %77, %80 : vector<8x16x256xf32>
    %82 = arith.negf %81 : vector<8x16x256xf32>
    %83 = math.exp %82 : vector<8x16x256xf32>
    %cst_52 = arith.constant 1.000000e+00 : f32
    %84 = vector.broadcast %cst_52 : f32 to vector<8x16x256xf32>
    %85 = arith.addf %84, %83 : vector<8x16x256xf32>
    %86 = arith.divf %84, %85 : vector<8x16x256xf32>
    %87 = arith.mulf %81, %86 : vector<8x16x256xf32>
    %88 = arith.truncf %87 : vector<8x16x256xf32> to vector<8x16x256xbf16>
    %89 = vector.shape_cast %88 : vector<8x16x256xbf16> to vector<128x256xbf16>
    %c0_53 = arith.constant 0 : index
    %c0_54 = arith.constant 0 : index
    %90 = vector.load %arg14[%c0_53, %c0_54] : memref<256x256xbf16, #tpu.memory_space<vmem>>, vector<256x256xbf16>
    %cst_55 = arith.constant dense<0.000000e+00> : vector<128x256xf32>
    %91 = tpu.matmul %89, %90, %cst_55 {dimension_numbers = #tpu.dot_dimension_numbers<[1], [0], [0], [1], [0, 0, 1, 1], [], []>} : vector<128x256xbf16>, vector<256x256xbf16>, vector<128x256xf32> -> vector<128x256xf32>
    %92 = arith.truncf %0 : vector<8x16x128xf32> to vector<8x16x128xbf16>
    %93 = vector.shape_cast %92 : vector<8x16x128xbf16> to vector<128x128xbf16>
    %c0_56 = arith.constant 0 : index
    %c0_57 = arith.constant 0 : index
    %94 = vector.load %arg15[%c0_56, %c0_57] : memref<128x256xbf16, #tpu.memory_space<vmem>>, vector<128x256xbf16>
    %cst_58 = arith.constant dense<0.000000e+00> : vector<128x256xf32>
    %95 = tpu.matmul %93, %94, %cst_58 {dimension_numbers = #tpu.dot_dimension_numbers<[1], [0], [0], [1], [0, 0, 1, 1], [], []>} : vector<128x128xbf16>, vector<128x256xbf16>, vector<128x256xf32> -> vector<128x256xf32>
    %96 = arith.addf %91, %95 : vector<128x256xf32>
    %c0_59 = arith.constant 0 : index
    %c0_60 = arith.constant 0 : index
    %97 = vector.load %arg16[%c0_59, %c0_60] : memref<1x256xf32, #tpu.memory_space<vmem>>, vector<1x256xf32>
    %98 = vector.broadcast %97 : vector<1x256xf32> to vector<128x256xf32>
    %99 = arith.addf %96, %98 : vector<128x256xf32>
    %100 = vector.shape_cast %99 : vector<128x256xf32> to vector<8x16x256xf32>
    %c0_61 = arith.constant 0 : index
    %c0_62 = arith.constant 0 : index
    %c0_63 = arith.constant 0 : index
    %101 = vector.load %arg17[%c0_61, %c0_62, %c0_63] : memref<8x16x256xf32, #tpu.memory_space<vmem>>, vector<8x16x256xf32>
    tpu.vector_store %arg17[%c0_61, %c0_62, %c0_63], %100 {strides = array<i32>} : memref<8x16x256xf32, #tpu.memory_space<vmem>>, vector<8x16x256xf32>,
    return
  }
  func.func @transform_0(%arg0: i32) -> (i32, i32, i32) {
    %c0_i32 = arith.constant 0 : i32
    %c0_i32_0 = arith.constant 0 : i32
    %c0_i32_1 = arith.constant 0 : i32
    return %arg0, %c0_i32, %c0_i32_0 : i32, i32, i32
  }
  func.func @transform_1(%arg0: i32) -> (i32, i32) {
    %c0_i32 = arith.constant 0 : i32
    %c0_i32_0 = arith.constant 0 : i32
    %c0_i32_1 = arith.constant 0 : i32
    return %c0_i32, %c0_i32_0 : i32, i32
  }
  func.func @transform_2(%arg0: i32) -> (i32, i32) {
    %c0_i32 = arith.constant 0 : i32
    %c0_i32_0 = arith.constant 0 : i32
    %c0_i32_1 = arith.constant 0 : i32
    return %c0_i32, %c0_i32_0 : i32, i32
  }
  func.func @transform_3(%arg0: i32) -> (i32, i32) {
    %c0_i32 = arith.constant 0 : i32
    %c0_i32_0 = arith.constant 0 : i32
    %c0_i32_1 = arith.constant 0 : i32
    return %c0_i32, %c0_i32_0 : i32, i32
  }
  func.func @transform_4(%arg0: i32) -> (i32, i32) {
    %c0_i32 = arith.constant 0 : i32
    %c0_i32_0 = arith.constant 0 : i32
    %c0_i32_1 = arith.constant 0 : i32
    return %c0_i32, %c0_i32_0 : i32, i32
  }
  func.func @transform_5(%arg0: i32) -> (i32, i32) {
    %c0_i32 = arith.constant 0 : i32
    %c0_i32_0 = arith.constant 0 : i32
    %c0_i32_1 = arith.constant 0 : i32
    return %c0_i32, %c0_i32_0 : i32, i32
  }
  func.func @transform_6(%arg0: i32) -> (i32, i32) {
    %c0_i32 = arith.constant 0 : i32
    %c0_i32_0 = arith.constant 0 : i32
    %c0_i32_1 = arith.constant 0 : i32
    return %c0_i32, %c0_i32_0 : i32, i32
  }
  func.func @transform_7(%arg0: i32) -> (i32, i32) {
    %c0_i32 = arith.constant 0 : i32
    %c0_i32_0 = arith.constant 0 : i32
    %c0_i32_1 = arith.constant 0 : i32
    return %c0_i32, %c0_i32_0 : i32, i32
  }
  func.func @transform_8(%arg0: i32) -> (i32, i32) {
    %c0_i32 = arith.constant 0 : i32
    %c0_i32_0 = arith.constant 0 : i32
    %c0_i32_1 = arith.constant 0 : i32
    return %c0_i32, %c0_i32_0 : i32, i32
  }
  func.func @transform_9(%arg0: i32) -> (i32, i32) {
    %c0_i32 = arith.constant 0 : i32
    %c0_i32_0 = arith.constant 0 : i32
    %c0_i32_1 = arith.constant 0 : i32
    return %c0_i32, %c0_i32_0 : i32, i32
  }
  func.func @transform_10(%arg0: i32) -> (i32, i32) {
    %c0_i32 = arith.constant 0 : i32
    %c0_i32_0 = arith.constant 0 : i32
    %c0_i32_1 = arith.constant 0 : i32
    return %c0_i32, %c0_i32_0 : i32, i32
  }
  func.func @transform_11(%arg0: i32) -> (i32, i32) {
    %c0_i32 = arith.constant 0 : i32
    %c0_i32_0 = arith.constant 0 : i32
    %c0_i32_1 = arith.constant 0 : i32
    return %c0_i32, %c0_i32_0 : i32, i32
  }
  func.func @transform_12(%arg0: i32) -> (i32, i32) {
    %c0_i32 = arith.constant 0 : i32
    %c0_i32_0 = arith.constant 0 : i32
    %c0_i32_1 = arith.constant 0 : i32
    return %c0_i32, %c0_i32_0 : i32, i32
  }
  func.func @transform_13(%arg0: i32) -> (i32, i32) {
    %c0_i32 = arith.constant 0 : i32
    %c0_i32_0 = arith.constant 0 : i32
    %c0_i32_1 = arith.constant 0 : i32
    return %c0_i32, %c0_i32_0 : i32, i32
  }
  func.func @transform_14(%arg0: i32) -> (i32, i32) {
    %c0_i32 = arith.constant 0 : i32
    %c0_i32_0 = arith.constant 0 : i32
    %c0_i32_1 = arith.constant 0 : i32
    return %c0_i32, %c0_i32_0 : i32, i32
  }
  func.func @transform_15(%arg0: i32) -> (i32, i32) {
    %c0_i32 = arith.constant 0 : i32
    %c0_i32_0 = arith.constant 0 : i32
    %c0_i32_1 = arith.constant 0 : i32
    return %c0_i32, %c0_i32_0 : i32, i32
  }
  func.func @transform_16(%arg0: i32) -> (i32, i32, i32) {
    %c0_i32 = arith.constant 0 : i32
    %c0_i32_0 = arith.constant 0 : i32
    %c0_i32_1 = arith.constant 0 : i32
    return %arg0, %c0_i32, %c0_i32_0 : i32, i32, i32
  }
}

</mosaic_0001>

<llo_original>
// kernel: tpu_custom_call.1
$region0: #{tpu_custom_call.1}
  #allocation0 [shape = 'u32[]', space=smem, size = 0x4, offset = 0x4, fixed_abs, tag = 'smem constant byte address 0x4 - core index']
  #allocation1 [shape = 'u32[144,128]{1,0:T(1,128)}', space=vmem, size = 0x12000, scoped, tag = 'internal scratch']
  %s0 = inlined_call_operand.vmem [shape: f32[16,16,128], index: 0, kind: input, shape index: {}]
  %s1 = inlined_call_operand.vmem [shape: f32[1,128], index: 1, kind: input, shape index: {}]
  %s2 = inlined_call_operand.hbm [shape: f32[1,128], index: 2, kind: input, shape index: {}]
  %s3 = inlined_call_operand.vmem [shape: f32[128,4], index: 3, kind: input, shape index: {}]
  %s4 = inlined_call_operand.vmem [shape: f32[4,128], index: 4, kind: input, shape index: {}]
  %s5 = inlined_call_operand.vmem [shape: bf16[128,256], index: 5, kind: input, shape index: {}]
  %s6 = inlined_call_operand.hbm [shape: bf16[128,256], index: 6, kind: input, shape index: {}]
  %s7 = inlined_call_operand.hbm [shape: bf16[128,256], index: 7, kind: input, shape index: {}]
  %s8 = inlined_call_operand.vmem [shape: f32[1,256], index: 8, kind: input, shape index: {}]
  %s9 = inlined_call_operand.vmem [shape: f32[1,256], index: 9, kind: input, shape index: {}]
  %s10 = inlined_call_operand.vmem [shape: f32[1,256], index: 10, kind: input, shape index: {}]
  %s11 = inlined_call_operand.vmem [shape: f32[256,4], index: 11, kind: input, shape index: {}]
  %s12 = inlined_call_operand.vmem [shape: f32[4,256], index: 12, kind: input, shape index: {}]
  %s13 = inlined_call_operand.hbm [shape: bf16[256,256], index: 13, kind: input, shape index: {}]
  %s14 = inlined_call_operand.hbm [shape: bf16[128,256], index: 14, kind: input, shape index: {}]
  %s15 = inlined_call_operand.vmem [shape: f32[1,256], index: 15, kind: input, shape index: {}]
  %s16 = inlined_call_operand.hbm [shape: f32[16,16,256], index: 16, kind: output, shape index: {}]
  %s17 = sld [smem:[#allocation0]]
  $region117: #{tpu_custom_call.1} parent=0
    _
  %s19 = ssub.s32 1, %s17
  %s20 = scalar_select 0, %s19, %s17
  $region1: #{tpu_custom_call.1} parent=0
    #allocation2 [shape = 'u8[512]{0}', space=vmem, size = 0x400, scoped, tag = 'input window, operand 2, single buffered']
    #allocation3 [shape = 's32[2]{0}', space=sflag, size = 0x8, scoped, tag = 'scoped memory for tpu_custom_call.1']
    #allocation4 [shape = 's32[2]{0}', space=sflag, size = 0x8, scoped, tag = 'scoped memory for tpu_custom_call.1']
    #allocation5 [shape = 'u8[65536]{0}', space=vmem, size = 0x10000, scoped, tag = 'input window, operand 6, single buffered']
    #allocation6 [shape = 's32[1]{0}', space=sflag, size = 0x4, scoped, tag = 'scoped memory for tpu_custom_call.1']
    #allocation7 [shape = 'u8[65536]{0}', space=vmem, size = 0x10000, scoped, tag = 'input window, operand 7, single buffered']
    #allocation8 [shape = 'u8[131072]{0}', space=vmem, size = 0x20000, scoped, tag = 'input window, operand 13, single buffered']
    #allocation9 [shape = 's32[1]{0}', space=sflag, size = 0x4, scoped, tag = 'scoped memory for tpu_custom_call.1']
    #allocation10 [shape = 'u8[65536]{0}', space=vmem, size = 0x10000, scoped, tag = 'input window, operand 14, single buffered']
    #allocation11 [shape = 'u8[262144]{0}', space=vmem, size = 0x40000, scoped, tag = 'output window, operand 0']
    %21 = vsyncpa [#allocation3], 0
    %22 = vsyncpa [#allocation6], 0
    %23 = vsyncpa [#allocation9], 0
    %24 = vsyncpa [#allocation4], 0
    %s25 = scalar_lea.sflag [#allocation4], 1
    %26 = vsyncpa %s25, 0
    loop: start=0, step=1, limit=4
    $region2: #{tpu_custom_call.1} parent=1 // loop_pre_header
      _
    $region3: #{tpu_custom_call.1} parent=1 // loop_header
      %s28 = sphi 0, %s32
      %p29 = scmp.ge.s32.totalorder %s28, 4
      %s38 = sphi 0, %s40
      %s41 = sphi 0, %s38
      %s42 = sphi 0, %s41
      %s58 = sphi 0, %s42
      %s62 = sphi 0, %s62
      %s64 = sphi 0, %s62
      %s65 = sphi 0, %s64
      %s79 = sphi 0, %s65
      %s83 = sphi 0, %s83
      %s85 = sphi 0, %s83
      %s86 = sphi 0, %s85
      %s100 = sphi 0, %s86
      %s104 = sphi 0, %s104
      %s106 = sphi 0, %s104
      %s107 = sphi 0, %s106
      %s121 = sphi 0, %s107
      %s125 = sphi 0, %s125
      %s127 = sphi 0, %s125
      %s128 = sphi 0, %s127
      %s142 = sphi 0, %s128
      %s146 = sphi 0, %s146
      %s148 = sphi 0, %s146
      %s149 = sphi 0, %s148
      %s163 = sphi 0, %s149
      %s167 = sphi 0, %s167
      %s169 = sphi 0, %s167
      %s170 = sphi 0, %s169
      %s184 = sphi 0, %s170
      %s188 = sphi 0, %s188
      %s190 = sphi 0, %s188
      %s191 = sphi 0, %s190
      %s205 = sphi 0, %s191
      %s209 = sphi 0, %s209
      %s211 = sphi 0, %s209
      %s212 = sphi 0, %s211
      %s226 = sphi 0, %s212
      %s230 = sphi 0, %s230
      %s232 = sphi 0, %s230
      %s233 = sphi 0, %s232
      %s247 = sphi 0, %s233
      %s251 = sphi 0, %s251
      %s253 = sphi 0, %s251
      %s254 = sphi 0, %s253
      %s268 = sphi 0, %s254
      %s272 = sphi 0, %s272
      %s274 = sphi 0, %s272
      %s275 = sphi 0, %s274
      %s289 = sphi 0, %s275
      %s293 = sphi 0, %s293
      %s295 = sphi 0, %s293
      %s296 = sphi 0, %s295
      %s310 = sphi 0, %s296
      %s314 = sphi 0, %s314
      %s316 = sphi 0, %s314
      %s317 = sphi 0, %s316
      %s331 = sphi 0, %s317
      %s335 = sphi 0, %s335
      %s337 = sphi 0, %s335
      %s338 = sphi 0, %s337
      %s352 = sphi 0, %s338
      %s356 = sphi 0, %s356
      %s358 = sphi 0, %s356
      %s359 = sphi 0, %s358
      %s373 = sphi 0, %s359
      %s379 = sphi 0, %s381
      %s382 = sphi 0, %s379
      %s383 = sphi 0, %s382
      %s399 = sphi 0, %s383
    $region4: #{tpu_custom_call.1} parent=1 // loop_header_branch
      %31 = sbr.rel (%p29) target = $region8
    $region5: #{tpu_custom_call.1} parent=1 // loop_body
      %s33 = ssub.s32 %s28, 1
      %s34 = ssub.s32 %s28, 2
      %s35 = sadd.s32 %s28, 1
      %s36 = ssub.s32 %s28, %s35
      %p37 = scmp.eq.s32.totalorder %s36, 0
      %s39 = sadd.s32 %s38, 1
      %s40 = scalar_select %p37, %s38, %s39
      %p43 = pneg %p37
      %p44 = scmp.eq.s32.totalorder %s28, 1
      %p45 = por %p43, %p44
      %p46 = scmp.ne.s32.totalorder %s38, %s41
      %p47 = scmp.eq.s32.totalorder %s28, 0
      %p48 = por %p46, %p47
      %p49 = scmp.ne.s32.totalorder %s38, %s41
      %p50 = scmp.eq.s32.totalorder %s33, 1
      %p51 = por %p49, %p50
      %p52 = scmp.ne.s32.totalorder %s41, %s42
      %p53 = scmp.eq.s32.totalorder %s33, 0
      %p54 = por %p52, %p53
      %p55 = scmp.ne.s32.totalorder %s41, %s42
      %p56 = scmp.eq.s32.totalorder %s34, 1
      %p57 = por %p55, %p56
      %p59 = scmp.ne.s32.totalorder %s42, %s58
      %p60 = scmp.eq.s32.totalorder %s34, 0
      %p61 = por %p59, %p60
      %s63 = sadd.s32 %s62, 1
      %p66 = scmp.eq.s32.totalorder %s28, 1
      %p67 = scmp.ne.s32.totalorder %s62, %s64
      %p68 = scmp.eq.s32.totalorder %s28, 0
      %p69 = por %p67, %p68
      %p70 = scmp.ne.s32.totalorder %s62, %s64
      %p71 = scmp.eq.s32.totalorder %s33, 1
      %p72 = por %p70, %p71
      %p73 = scmp.ne.s32.totalorder %s64, %s65
      %p74 = scmp.eq.s32.totalorder %s33, 0
      %p75 = por %p73, %p74
      %p76 = scmp.ne.s32.totalorder %s64, %s65
      %p77 = scmp.eq.s32.totalorder %s34, 1
      %p78 = por %p76, %p77
      %p80 = scmp.ne.s32.totalorder %s65, %s79
      %p81 = scmp.eq.s32.totalorder %s34, 0
      %p82 = por %p80, %p81
      %s84 = sadd.s32 %s83, 1
      %p87 = scmp.eq.s32.totalorder %s28, 1
      %p88 = scmp.ne.s32.totalorder %s83, %s85
      %p89 = scmp.eq.s32.totalorder %s28, 0
      %p90 = por %p88, %p89
      %p91 = scmp.ne.s32.totalorder %s83, %s85
      %p92 = scmp.eq.s32.totalorder %s33, 1
      %p93 = por %p91, %p92
      %p94 = scmp.ne.s32.totalorder %s85, %s86
      %p95 = scmp.eq.s32.totalorder %s33, 0
      %p96 = por %p94, %p95
      %p97 = scmp.ne.s32.totalorder %s85, %s86
      %p98 = scmp.eq.s32.totalorder %s34, 1
      %p99 = por %p97, %p98
      %p101 = scmp.ne.s32.totalorder %s86, %s100
      %p102 = scmp.eq.s32.totalorder %s34, 0
      %p103 = por %p101, %p102
      %s105 = sadd.s32 %s104, 1
      %p108 = scmp.eq.s32.totalorder %s28, 1
      %p109 = scmp.ne.s32.totalorder %s104, %s106
      %p110 = scmp.eq.s32.totalorder %s28, 0
      %p111 = por %p109, %p110
      %p112 = scmp.ne.s32.totalorder %s104, %s106
      %p113 = scmp.eq.s32.totalorder %s33, 1
      %p114 = por %p112, %p113
      %p115 = scmp.ne.s32.totalorder %s106, %s107
      %p116 = scmp.eq.s32.totalorder %s33, 0
      %p117 = por %p115, %p116
      %p118 = scmp.ne.s32.totalorder %s106, %s107
      %p119 = scmp.eq.s32.totalorder %s34, 1
      %p120 = por %p118, %p119
      %p122 = scmp.ne.s32.totalorder %s107, %s121
      %p123 = scmp.eq.s32.totalorder %s34, 0
      %p124 = por %p122, %p123
      %s126 = sadd.s32 %s125, 1
      %p129 = scmp.eq.s32.totalorder %s28, 1
      %p130 = scmp.ne.s32.totalorder %s125, %s127
      %p131 = scmp.eq.s32.totalorder %s28, 0
      %p132 = por %p130, %p131
      %p133 = scmp.ne.s32.totalorder %s125, %s127
      %p134 = scmp.eq.s32.totalorder %s33, 1
      %p135 = por %p133, %p134
      %p136 = scmp.ne.s32.totalorder %s127, %s128
      %p137 = scmp.eq.s32.totalorder %s33, 0
      %p138 = por %p136, %p137
      %p139 = scmp.ne.s32.totalorder %s127, %s128
      %p140 = scmp.eq.s32.totalorder %s34, 1
      %p141 = por %p139, %p140
      %p143 = scmp.ne.s32.totalorder %s128, %s142
      %p144 = scmp.eq.s32.totalorder %s34, 0
      %p145 = por %p143, %p144
      %s147 = sadd.s32 %s146, 1
      %p150 = scmp.eq.s32.totalorder %s28, 1
      %p151 = scmp.ne.s32.totalorder %s146, %s148
      %p152 = scmp.eq.s32.totalorder %s28, 0
      %p153 = por %p151, %p152
      %p154 = scmp.ne.s32.totalorder %s146, %s148
      %p155 = scmp.eq.s32.totalorder %s33, 1
      %p156 = por %p154, %p155
      %p157 = scmp.ne.s32.totalorder %s148, %s149
      %p158 = scmp.eq.s32.totalorder %s33, 0
      %p159 = por %p157, %p158
      %p160 = scmp.ne.s32.totalorder %s148, %s149
      %p161 = scmp.eq.s32.totalorder %s34, 1
      %p162 = por %p160, %p161
      %p164 = scmp.ne.s32.totalorder %s149, %s163
      %p165 = scmp.eq.s32.totalorder %s34, 0
      %p166 = por %p164, %p165
      %s168 = sadd.s32 %s167, 1
      %p171 = scmp.eq.s32.totalorder %s28, 1
      %p172 = scmp.ne.s32.totalorder %s167, %s169
      %p173 = scmp.eq.s32.totalorder %s28, 0
      %p174 = por %p172, %p173
      %p175 = scmp.ne.s32.totalorder %s167, %s169
      %p176 = scmp.eq.s32.totalorder %s33, 1
      %p177 = por %p175, %p176
      %p178 = scmp.ne.s32.totalorder %s169, %s170
      %p179 = scmp.eq.s32.totalorder %s33, 0
      %p180 = por %p178, %p179
      %p181 = scmp.ne.s32.totalorder %s169, %s170
      %p182 = scmp.eq.s32.totalorder %s34, 1
      %p183 = por %p181, %p182
      %p185 = scmp.ne.s32.totalorder %s170, %s184
      %p186 = scmp.eq.s32.totalorder %s34, 0
      %p187 = por %p185, %p186
      %s189 = sadd.s32 %s188, 1
      %p192 = scmp.eq.s32.totalorder %s28, 1
      %p193 = scmp.ne.s32.totalorder %s188, %s190
      %p194 = scmp.eq.s32.totalorder %s28, 0
      %p195 = por %p193, %p194
      %p196 = scmp.ne.s32.totalorder %s188, %s190
      %p197 = scmp.eq.s32.totalorder %s33, 1
      %p198 = por %p196, %p197
      %p199 = scmp.ne.s32.totalorder %s190, %s191
      %p200 = scmp.eq.s32.totalorder %s33, 0
      %p201 = por %p199, %p200
      %p202 = scmp.ne.s32.totalorder %s190, %s191
      %p203 = scmp.eq.s32.totalorder %s34, 1
      %p204 = por %p202, %p203
      %p206 = scmp.ne.s32.totalorder %s191, %s205
      %p207 = scmp.eq.s32.totalorder %s34, 0
      %p208 = por %p206, %p207
      %s210 = sadd.s32 %s209, 1
      %p213 = scmp.eq.s32.totalorder %s28, 1
      %p214 = scmp.ne.s32.totalorder %s209, %s211
      %p215 = scmp.eq.s32.totalorder %s28, 0
      %p216 = por %p214, %p215
      %p217 = scmp.ne.s32.totalorder %s209, %s211
      %p218 = scmp.eq.s32.totalorder %s33, 1
      %p219 = por %p217, %p218
      %p220 = scmp.ne.s32.totalorder %s211, %s212
      %p221 = scmp.eq.s32.totalorder %s33, 0
      %p222 = por %p220, %p221
      %p223 = scmp.ne.s32.totalorder %s211, %s212
      %p224 = scmp.eq.s32.totalorder %s34, 1
      %p225 = por %p223, %p224
      %p227 = scmp.ne.s32.totalorder %s212, %s226
      %p228 = scmp.eq.s32.totalorder %s34, 0
      %p229 = por %p227, %p228
      %s231 = sadd.s32 %s230, 1
      %p234 = scmp.eq.s32.totalorder %s28, 1
      %p235 = scmp.ne.s32.totalorder %s230, %s232
      %p236 = scmp.eq.s32.totalorder %s28, 0
      %p237 = por %p235, %p236
      %p238 = scmp.ne.s32.totalorder %s230, %s232
      %p239 = scmp.eq.s32.totalorder %s33, 1
      %p240 = por %p238, %p239
      %p241 = scmp.ne.s32.totalorder %s232, %s233
      %p242 = scmp.eq.s32.totalorder %s33, 0
      %p243 = por %p241, %p242
      %p244 = scmp.ne.s32.totalorder %s232, %s233
      %p245 = scmp.eq.s32.totalorder %s34, 1
      %p246 = por %p244, %p245
      %p248 = scmp.ne.s32.totalorder %s233, %s247
      %p249 = scmp.eq.s32.totalorder %s34, 0
      %p250 = por %p248, %p249
      %s252 = sadd.s32 %s251, 1
      %p255 = scmp.eq.s32.totalorder %s28, 1
      %p256 = scmp.ne.s32.totalorder %s251, %s253
      %p257 = scmp.eq.s32.totalorder %s28, 0
      %p258 = por %p256, %p257
      %p259 = scmp.ne.s32.totalorder %s251, %s253
      %p260 = scmp.eq.s32.totalorder %s33, 1
      %p261 = por %p259, %p260
      %p262 = scmp.ne.s32.totalorder %s253, %s254
      %p263 = scmp.eq.s32.totalorder %s33, 0
      %p264 = por %p262, %p263
      %p265 = scmp.ne.s32.totalorder %s253, %s254
      %p266 = scmp.eq.s32.totalorder %s34, 1
      %p267 = por %p265, %p266
      %p269 = scmp.ne.s32.totalorder %s254, %s268
      %p270 = scmp.eq.s32.totalorder %s34, 0
      %p271 = por %p269, %p270
      %s273 = sadd.s32 %s272, 1
      %p276 = scmp.eq.s32.totalorder %s28, 1
      %p277 = scmp.ne.s32.totalorder %s272, %s274
      %p278 = scmp.eq.s32.totalorder %s28, 0
      %p279 = por %p277, %p278
      %p280 = scmp.ne.s32.totalorder %s272, %s274
      %p281 = scmp.eq.s32.totalorder %s33, 1
      %p282 = por %p280, %p281
      %p283 = scmp.ne.s32.totalorder %s274, %s275
      %p284 = scmp.eq.s32.totalorder %s33, 0
      %p285 = por %p283, %p284
      %p286 = scmp.ne.s32.totalorder %s274, %s275
      %p287 = scmp.eq.s32.totalorder %s34, 1
      %p288 = por %p286, %p287
      %p290 = scmp.ne.s32.totalorder %s275, %s289
      %p291 = scmp.eq.s32.totalorder %s34, 0
      %p292 = por %p290, %p291
      %s294 = sadd.s32 %s293, 1
      %p297 = scmp.eq.s32.totalorder %s28, 1
      %p298 = scmp.ne.s32.totalorder %s293, %s295
      %p299 = scmp.eq.s32.totalorder %s28, 0
      %p300 = por %p298, %p299
      %p301 = scmp.ne.s32.totalorder %s293, %s295
      %p302 = scmp.eq.s32.totalorder %s33, 1
      %p303 = por %p301, %p302
      %p304 = scmp.ne.s32.totalorder %s295, %s296
      %p305 = scmp.eq.s32.totalorder %s33, 0
      %p306 = por %p304, %p305
      %p307 = scmp.ne.s32.totalorder %s295, %s296
      %p308 = scmp.eq.s32.totalorder %s34, 1
      %p309 = por %p307, %p308
      %p311 = scmp.ne.s32.totalorder %s296, %s310
      %p312 = scmp.eq.s32.totalorder %s34, 0
      %p313 = por %p311, %p312
      %s315 = sadd.s32 %s314, 1
      %p318 = scmp.eq.s32.totalorder %s28, 1
      %p319 = scmp.ne.s32.totalorder %s314, %s316
      %p320 = scmp.eq.s32.totalorder %s28, 0
      %p321 = por %p319, %p320
      %p322 = scmp.ne.s32.totalorder %s314, %s316
      %p323 = scmp.eq.s32.totalorder %s33, 1
      %p324 = por %p322, %p323
      %p325 = scmp.ne.s32.totalorder %s316, %s317
      %p326 = scmp.eq.s32.totalorder %s33, 0
      %p327 = por %p325, %p326
      %p328 = scmp.ne.s32.totalorder %s316, %s317
      %p329 = scmp.eq.s32.totalorder %s34, 1
      %p330 = por %p328, %p329
      %p332 = scmp.ne.s32.totalorder %s317, %s331
      %p333 = scmp.eq.s32.totalorder %s34, 0
      %p334 = por %p332, %p333
      %s336 = sadd.s32 %s335, 1
      %p339 = scmp.eq.s32.totalorder %s28, 1
      %p340 = scmp.ne.s32.totalorder %s335, %s337
      %p341 = scmp.eq.s32.totalorder %s28, 0
      %p342 = por %p340, %p341
      %p343 = scmp.ne.s32.totalorder %s335, %s337
      %p344 = scmp.eq.s32.totalorder %s33, 1
      %p345 = por %p343, %p344
      %p346 = scmp.ne.s32.totalorder %s337, %s338
      %p347 = scmp.eq.s32.totalorder %s33, 0
      %p348 = por %p346, %p347
      %p349 = scmp.ne.s32.totalorder %s337, %s338
      %p350 = scmp.eq.s32.totalorder %s34, 1
      %p351 = por %p349, %p350
      %p353 = scmp.ne.s32.totalorder %s338, %s352
      %p354 = scmp.eq.s32.totalorder %s34, 0
      %p355 = por %p353, %p354
      %s357 = sadd.s32 %s356, 1
      %p360 = scmp.eq.s32.totalorder %s28, 1
      %p361 = scmp.ne.s32.totalorder %s356, %s358
      %p362 = scmp.eq.s32.totalorder %s28, 0
      %p363 = por %p361, %p362
      %p364 = scmp.ne.s32.totalorder %s356, %s358
      %p365 = scmp.eq.s32.totalorder %s33, 1
      %p366 = por %p364, %p365
      %p367 = scmp.ne.s32.totalorder %s358, %s359
      %p368 = scmp.eq.s32.totalorder %s33, 0
      %p369 = por %p367, %p368
      %p370 = scmp.ne.s32.totalorder %s358, %s359
      %p371 = scmp.eq.s32.totalorder %s34, 1
      %p372 = por %p370, %p371
      %p374 = scmp.ne.s32.totalorder %s359, %s373
      %p375 = scmp.eq.s32.totalorder %s34, 0
      %p376 = por %p374, %p375
      %s377 = ssub.s32 %s28, %s35
      %p378 = scmp.eq.s32.totalorder %s377, 0
      %s380 = sadd.s32 %s379, 1
      %s381 = scalar_select %p378, %s379, %s380
      %p384 = pneg %p378
      %p385 = scmp.eq.s32.totalorder %s28, 1
      %p386 = por %p384, %p385
      %p387 = scmp.ne.s32.totalorder %s379, %s382
      %p388 = scmp.eq.s32.totalorder %s28, 0
      %p389 = por %p387, %p388
      %p390 = scmp.ne.s32.totalorder %s379, %s382
      %p391 = scmp.eq.s32.totalorder %s33, 1
      %p392 = por %p390, %p391
      %p393 = scmp.ne.s32.totalorder %s382, %s383
      %p394 = scmp.eq.s32.totalorder %s33, 0
      %p395 = por %p393, %p394
      %p396 = scmp.ne.s32.totalorder %s382, %s383
      %p397 = scmp.eq.s32.totalorder %s34, 1
      %p398 = por %p396, %p397
      %p400 = scmp.ne.s32.totalorder %s383, %s399
      %p401 = scmp.eq.s32.totalorder %s34, 0
      %p402 = por %p400, %p401
      %p403 = scmp.le.s32.totalorder 1, %s28
      %p404 = scmp.lt.s32.totalorder %s28, 3
      %p405 = pnand %p403, %p404
      %p406 = pneg %p405
      // Predicated region
      $region9: #{tpu_custom_call.1} parent=5 // pred_check
        _
      $region10: #{tpu_custom_call.1} parent=5 // pred_check_branch
        %408 = sbr.rel (%p405) target = $region12
      $region11: #{tpu_custom_call.1} parent=5 // pred_region
        %s409 = ssub.s32 %s28, 1
        // Predicated region
        $region13: #{tpu_custom_call.1} parent=11 // pred_check
          %p410 = pneg %p75
        $region14: #{tpu_custom_call.1} parent=11 // pred_check_branch
          %412 = sbr.rel (%p410) target = $region16
        $region15: #{tpu_custom_call.1} parent=11 // pred_region
          _
        $region16: #{tpu_custom_call.1} parent=11 // pred_fallthru
          _
        // Predicated region
        $region17: #{tpu_custom_call.1} parent=11 // pred_check
          %p413 = pneg %p96
        $region18: #{tpu_custom_call.1} parent=11 // pred_check_branch
          %415 = sbr.rel (%p413) target = $region20
        $region19: #{tpu_custom_call.1} parent=11 // pred_region
          %s417 = ssub.s32 16, 16
          %418 = vsyncadd [#allocation3], %s417
          %s420 = sshll.u32 [#allocation2], 4
          %s421 = int_to_ptr.vmem [resolvable:$true] %s420
          %423 = dma.hbm_to_vmem [thread:$0]  %s2, 16, %s421, [#allocation3]
        $region20: #{tpu_custom_call.1} parent=11 // pred_fallthru
          _
        // Predicated region
        $region21: #{tpu_custom_call.1} parent=11 // pred_check
          %p424 = pneg %p117
        $region22: #{tpu_custom_call.1} parent=11 // pred_check_branch
          %426 = sbr.rel (%p424) target = $region24
        $region23: #{tpu_custom_call.1} parent=11 // pred_region
          _
        $region24: #{tpu_custom_call.1} parent=11 // pred_fallthru
          _
        // Predicated region
        $region25: #{tpu_custom_call.1} parent=11 // pred_check
          %p427 = pneg %p138
        $region26: #{tpu_custom_call.1} parent=11 // pred_check_branch
          %429 = sbr.rel (%p427) target = $region28
        $region27: #{tpu_custom_call.1} parent=11 // pred_region
          _
        $region28: #{tpu_custom_call.1} parent=11 // pred_fallthru
          _
        // Predicated region
        $region29: #{tpu_custom_call.1} parent=11 // pred_check
          %p430 = pneg %p159
        $region30: #{tpu_custom_call.1} parent=11 // pred_check_branch
          %432 = sbr.rel (%p430) target = $region32
        $region31: #{tpu_custom_call.1} parent=11 // pred_region
          _
        $region32: #{tpu_custom_call.1} parent=11 // pred_fallthru
          _
        // Predicated region
        $region33: #{tpu_custom_call.1} parent=11 // pred_check
          %p433 = pneg %p180
        $region34: #{tpu_custom_call.1} parent=11 // pred_check_branch
          %435 = sbr.rel (%p433) target = $region36
        $region35: #{tpu_custom_call.1} parent=11 // pred_region
          %s437 = ssub.s32 2048, 2048
          %438 = vsyncadd [#allocation6], %s437
          %s439 = sshll.u32 [#allocation5], 4
          %s440 = int_to_ptr.vmem [resolvable:$true] %s439
          %445 = dma.hbm_to_vmem [thread:$0]  %s6, 2048, %s440, [#allocation6], 128, 128, 8
        $region36: #{tpu_custom_call.1} parent=11 // pred_fallthru
          _
        // Predicated region
        $region37: #{tpu_custom_call.1} parent=11 // pred_check
          %p446 = pneg %p201
        $region38: #{tpu_custom_call.1} parent=11 // pred_check_branch
          %448 = sbr.rel (%p446) target = $region40
        $region39: #{tpu_custom_call.1} parent=11 // pred_region
          %s450 = ssub.s32 2048, 2048
          %451 = vsyncadd [#allocation6], %s450
          %s452 = sshll.u32 [#allocation7], 4
          %s453 = int_to_ptr.vmem [resolvable:$true] %s452
          %458 = dma.hbm_to_vmem [thread:$0]  %s7, 2048, %s453, [#allocation6], 128, 128, 8
        $region40: #{tpu_custom_call.1} parent=11 // pred_fallthru
          _
        // Predicated region
        $region41: #{tpu_custom_call.1} parent=11 // pred_check
          %p459 = pneg %p222
        $region42: #{tpu_custom_call.1} parent=11 // pred_check_branch
          %461 = sbr.rel (%p459) target = $region44
        $region43: #{tpu_custom_call.1} parent=11 // pred_region
          _
        $region44: #{tpu_custom_call.1} parent=11 // pred_fallthru
          _
        // Predicated region
        $region45: #{tpu_custom_call.1} parent=11 // pred_check
          %p462 = pneg %p243
        $region46: #{tpu_custom_call.1} parent=11 // pred_check_branch
          %464 = sbr.rel (%p462) target = $region48
        $region47: #{tpu_custom_call.1} parent=11 // pred_region
          _
        $region48: #{tpu_custom_call.1} parent=11 // pred_fallthru
          _
        // Predicated region
        $region49: #{tpu_custom_call.1} parent=11 // pred_check
          %p465 = pneg %p264
        $region50: #{tpu_custom_call.1} parent=11 // pred_check_branch
          %467 = sbr.rel (%p465) target = $region52
        $region51: #{tpu_custom_call.1} parent=11 // pred_region
          _
        $region52: #{tpu_custom_call.1} parent=11 // pred_fallthru
          _
        // Predicated region
        $region53: #{tpu_custom_call.1} parent=11 // pred_check
          %p468 = pneg %p285
        $region54: #{tpu_custom_call.1} parent=11 // pred_check_branch
          %470 = sbr.rel (%p468) target = $region56
        $region55: #{tpu_custom_call.1} parent=11 // pred_region
          _
        $region56: #{tpu_custom_call.1} parent=11 // pred_fallthru
          _
        // Predicated region
        $region57: #{tpu_custom_call.1} parent=11 // pred_check
          %p471 = pneg %p306
        $region58: #{tpu_custom_call.1} parent=11 // pred_check_branch
          %473 = sbr.rel (%p471) target = $region60
        $region59: #{tpu_custom_call.1} parent=11 // pred_region
          _
        $region60: #{tpu_custom_call.1} parent=11 // pred_fallthru
          _
        // Predicated region
        $region61: #{tpu_custom_call.1} parent=11 // pred_check
          %p474 = pneg %p327
        $region62: #{tpu_custom_call.1} parent=11 // pred_check_branch
          %476 = sbr.rel (%p474) target = $region64
        $region63: #{tpu_custom_call.1} parent=11 // pred_region
          %s478 = ssub.s32 4096, 4096
          %479 = vsyncadd [#allocation9], %s478
          %s480 = sshll.u32 [#allocation8], 4
          %s481 = int_to_ptr.vmem [resolvable:$true] %s480
          %486 = dma.hbm_to_vmem [thread:$0]  %s13, 4096, %s481, [#allocation9], 128, 128, 8
        $region64: #{tpu_custom_call.1} parent=11 // pred_fallthru
          _
        // Predicated region
        $region65: #{tpu_custom_call.1} parent=11 // pred_check
          %p487 = pneg %p348
        $region66: #{tpu_custom_call.1} parent=11 // pred_check_branch
          %489 = sbr.rel (%p487) target = $region68
        $region67: #{tpu_custom_call.1} parent=11 // pred_region
          %s491 = ssub.s32 2048, 2048
          %492 = vsyncadd [#allocation9], %s491
          %s493 = sshll.u32 [#allocation10], 4
          %s494 = int_to_ptr.vmem [resolvable:$true] %s493
          %499 = dma.hbm_to_vmem [thread:$0]  %s14, 2048, %s494, [#allocation9], 128, 128, 8
        $region68: #{tpu_custom_call.1} parent=11 // pred_fallthru
          _
        // Predicated region
        $region69: #{tpu_custom_call.1} parent=11 // pred_check
          %p500 = pneg %p369
        $region70: #{tpu_custom_call.1} parent=11 // pred_check_branch
          %502 = sbr.rel (%p500) target = $region72
        $region71: #{tpu_custom_call.1} parent=11 // pred_region
          _
        $region72: #{tpu_custom_call.1} parent=11 // pred_fallthru
          _
      $region12: #{tpu_custom_call.1} parent=5 // pred_fallthru
        _
      %p503 = scmp.lt.s32.totalorder %s28, 2
      // Predicated region
      $region73: #{tpu_custom_call.1} parent=5 // pred_check
        %p504 = pneg %p503
      $region74: #{tpu_custom_call.1} parent=5 // pred_check_branch
        %506 = sbr.rel (%p504) target = $region76
      $region75: #{tpu_custom_call.1} parent=5 // pred_region
        // Predicated region
        $region77: #{tpu_custom_call.1} parent=75 // pred_check
          %p507 = pneg %p48
        $region78: #{tpu_custom_call.1} parent=75 // pred_check_branch
          %509 = sbr.rel (%p507) target = $region80
        $region79: #{tpu_custom_call.1} parent=75 // pred_region
          %s510 = smul.u32 8, %s28
          %p511 = scmp.lt.s32.totalorder %s510, 15
          %s512 = scalar_select %p511, %s510, 15
          %s513 = smul.addr %s512, 2
          %s514 = smul.addr %s513, 8
          %s515 = scalar_lea.vmem %s0, %s514
          %s516 = smul.u32 8, %s28
        $region80: #{tpu_custom_call.1} parent=75 // pred_fallthru
          _
      $region76: #{tpu_custom_call.1} parent=5 // pred_fallthru
        _
      %p517 = scmp.le.s32.totalorder 1, %s28
      %p518 = scmp.lt.s32.totalorder %s28, 3
      %p519 = pnand %p517, %p518
      %p520 = pneg %p519
      // Predicated region
      $region81: #{tpu_custom_call.1} parent=5 // pred_check
        _
      $region82: #{tpu_custom_call.1} parent=5 // pred_check_branch
        %522 = sbr.rel (%p519) target = $region84
      $region83: #{tpu_custom_call.1} parent=5 // pred_region
        %s523 = ssub.s32 %s28, 1
        // Predicated region
        $region85: #{tpu_custom_call.1} parent=83 // pred_check
          %p524 = pneg %p96
        $region86: #{tpu_custom_call.1} parent=83 // pred_check_branch
          %526 = sbr.rel (%p524) target = $region88
        $region87: #{tpu_custom_call.1} parent=83 // pred_region
          %527 = dma.done [#allocation3], 16
        $region88: #{tpu_custom_call.1} parent=83 // pred_fallthru
          _
        // Predicated region
        $region89: #{tpu_custom_call.1} parent=83 // pred_check
          %p528 = pneg %p180
        $region90: #{tpu_custom_call.1} parent=83 // pred_check_branch
          %530 = sbr.rel (%p528) target = $region92
        $region91: #{tpu_custom_call.1} parent=83 // pred_region
          %531 = dma.done [#allocation6], 2048
        $region92: #{tpu_custom_call.1} parent=83 // pred_fallthru
          _
        // Predicated region
        $region93: #{tpu_custom_call.1} parent=83 // pred_check
          %p532 = pneg %p201
        $region94: #{tpu_custom_call.1} parent=83 // pred_check_branch
          %534 = sbr.rel (%p532) target = $region96
        $region95: #{tpu_custom_call.1} parent=83 // pred_region
          %535 = dma.done [#allocation6], 2048
        $region96: #{tpu_custom_call.1} parent=83 // pred_fallthru
          _
        // Predicated region
        $region97: #{tpu_custom_call.1} parent=83 // pred_check
          %p536 = pneg %p327
        $region98: #{tpu_custom_call.1} parent=83 // pred_check_branch
          %538 = sbr.rel (%p536) target = $region100
        $region99: #{tpu_custom_call.1} parent=83 // pred_region
          %539 = dma.done [#allocation9], 4096
        $region100: #{tpu_custom_call.1} parent=83 // pred_fallthru
          _
        // Predicated region
        $region101: #{tpu_custom_call.1} parent=83 // pred_check
          %p540 = pneg %p348
        $region102: #{tpu_custom_call.1} parent=83 // pred_check_branch
          %542 = sbr.rel (%p540) target = $region104
        $region103: #{tpu_custom_call.1} parent=83 // pred_region
          %543 = dma.done [#allocation9], 2048
        $region104: #{tpu_custom_call.1} parent=83 // pred_fallthru
          _
        %s544 = smul.u32 8, %s33
        %p545 = scmp.lt.s32.totalorder %s544, 15
        %s546 = scalar_select %p545, %s544, 15
        %s547 = smul.addr %s546, 2
        %s548 = smul.addr %s547, 8
        %s549 = scalar_lea.vmem %s0, %s548
        %p550 = pneg %p54
        %p551 = pneg %p51
        %p552 = pneg %p75
        %p553 = pneg %p72
        %p554 = pneg %p96
        %p555 = pneg %p93
        %p556 = pneg %p117
        %p557 = pneg %p114
        %p558 = pneg %p138
        %p559 = pneg %p135
        %p560 = pneg %p159
        %p561 = pneg %p156
        %p562 = pneg %p180
        %p563 = pneg %p177
        %p564 = pneg %p201
        %p565 = pneg %p198
        %p566 = pneg %p222
        %p567 = pneg %p219
        %p568 = pneg %p243
        %p569 = pneg %p240
        %p570 = pneg %p264
        %p571 = pneg %p261
        %p572 = pneg %p285
        %p573 = pneg %p282
        %p574 = pneg %p306
        %p575 = pneg %p303
        %p576 = pneg %p327
        %p577 = pneg %p324
        %p578 = pneg %p348
        %p579 = pneg %p345
        %p580 = pneg %p369
        %p581 = pneg %p366
        %p582 = pneg %p395
        %p583 = pneg %p392
        %s584 = sand.u32 %s382, 1
        %s585 = scalar_lea.sflag [#allocation4], %s584
        %s586 = sand.u32 %s382, 1
        %s587 = smul.addr %s586, 256
        %s588 = scalar_lea.vmem [#allocation11], %s587
        %s589 = smul.u32 8, %s33
        %p590 = scmp.lt.s32.totalorder %s589, 15
        %s591 = scalar_select %p590, %s589, 15
        %s592 = smul.addr %s591, 2
        %s593 = smul.addr %s592, 8
        %s594 = scalar_lea.vmem %s0, %s593
        %s595 = smul.u32 8, %s33
        %s596 = smul.u32 8, %s33
        %v598 = vld [vmem:[%s594] sm:$0xff]
        %v599 = vld [vmem:[%s594 + $0x8] sm:$0xff]
        %v600 = vld [vmem:[%s594 + $0x10] sm:$0xff]
        %v601 = vld [vmem:[%s594 + $0x18] sm:$0xff]
        %v602 = vld [vmem:[%s594 + $0x20] sm:$0xff]
        %v603 = vld [vmem:[%s594 + $0x28] sm:$0xff]
        %v604 = vld [vmem:[%s594 + $0x30] sm:$0xff]
        %v605 = vld [vmem:[%s594 + $0x38] sm:$0xff]
        %v606 = vld [vmem:[%s594 + $0x40] sm:$0xff]
        %v607 = vld [vmem:[%s594 + $0x48] sm:$0xff]
        %v608 = vld [vmem:[%s594 + $0x50] sm:$0xff]
        %v609 = vld [vmem:[%s594 + $0x58] sm:$0xff]
        %v610 = vld [vmem:[%s594 + $0x60] sm:$0xff]
        %v611 = vld [vmem:[%s594 + $0x68] sm:$0xff]
        %v612 = vld [vmem:[%s594 + $0x70] sm:$0xff]
        %v613 = vld [vmem:[%s594 + $0x78] sm:$0xff]
        %v614 = vadd.f32 %v598, %v599
        %v615 = vrot.slane %v614, 4
        %v616 = vadd.f32 %v614, %v615
        %v617 = vrot.slane %v616, 2
        %v618 = vadd.f32 %v616, %v617
        %v619 = vrot.slane %v618, 1
        %v620 = vadd.f32 %v618, %v619
        %v621 = vadd.f32 %v600, %v601
        %v622 = vrot.slane %v621, 4
        %v623 = vadd.f32 %v621, %v622
        %v624 = vrot.slane %v623, 2
        %v625 = vadd.f32 %v623, %v624
        %v626 = vrot.slane %v625, 1
        %v627 = vadd.f32 %v625, %v626
        %v628 = vadd.f32 %v602, %v603
        %v629 = vrot.slane %v628, 4
        %v630 = vadd.f32 %v628, %v629
        %v631 = vrot.slane %v630, 2
        %v632 = vadd.f32 %v630, %v631
        %v633 = vrot.slane %v632, 1
        %v634 = vadd.f32 %v632, %v633
        %v635 = vadd.f32 %v604, %v605
        %v636 = vrot.slane %v635, 4
        %v637 = vadd.f32 %v635, %v636
        %v638 = vrot.slane %v637, 2
        %v639 = vadd.f32 %v637, %v638
        %v640 = vrot.slane %v639, 1
        %v641 = vadd.f32 %v639, %v640
        %v642 = vadd.f32 %v606, %v607
        %v643 = vrot.slane %v642, 4
        %v644 = vadd.f32 %v642, %v643
        %v645 = vrot.slane %v644, 2
        %v646 = vadd.f32 %v644, %v645
        %v647 = vrot.slane %v646, 1
        %v648 = vadd.f32 %v646, %v647
        %v649 = vadd.f32 %v608, %v609
        %v650 = vrot.slane %v649, 4
        %v651 = vadd.f32 %v649, %v650
        %v652 = vrot.slane %v651, 2
        %v653 = vadd.f32 %v651, %v652
        %v654 = vrot.slane %v653, 1
        %v655 = vadd.f32 %v653, %v654
        %v656 = vadd.f32 %v610, %v611
        %v657 = vrot.slane %v656, 4
        %v658 = vadd.f32 %v656, %v657
        %v659 = vrot.slane %v658, 2
        %v660 = vadd.f32 %v658, %v659
        %v661 = vrot.slane %v660, 1
        %v662 = vadd.f32 %v660, %v661
        %v663 = vadd.f32 %v612, %v613
        %v664 = vrot.slane %v663, 4
        %v665 = vadd.f32 %v663, %v664
        %v666 = vrot.slane %v665, 2
        %v667 = vadd.f32 %v665, %v666
        %v668 = vrot.slane %v667, 1
        %v669 = vadd.f32 %v667, %v668
        %v670 = vld [vmem:[%s3] sm:$0xff]
        %v671 = vld [vmem:[%s3 + $0x8] sm:$0xff]
        %v672 = vld [vmem:[%s3 + $0x10] sm:$0xff]
        %v673 = vld [vmem:[%s3 + $0x18] sm:$0xff]
        %v674 = vld [vmem:[%s3 + $0x20] sm:$0xff]
        %v675 = vld [vmem:[%s3 + $0x28] sm:$0xff]
        %v676 = vld [vmem:[%s3 + $0x30] sm:$0xff]
        %v677 = vld [vmem:[%s3 + $0x38] sm:$0xff]
        %v678 = vld [vmem:[%s3 + $0x40] sm:$0xff]
        %v679 = vld [vmem:[%s3 + $0x48] sm:$0xff]
        %v680 = vld [vmem:[%s3 + $0x50] sm:$0xff]
        %v681 = vld [vmem:[%s3 + $0x58] sm:$0xff]
        %v682 = vld [vmem:[%s3 + $0x60] sm:$0xff]
        %v683 = vld [vmem:[%s3 + $0x68] sm:$0xff]
        %v684 = vld [vmem:[%s3 + $0x70] sm:$0xff]
        %v685 = vld [vmem:[%s3 + $0x78] sm:$0xff]
        %vm694 = vcmask 1041409
        %v695 = vsel %vm694, %v627, %v620
        %vm696 = vcmask 1042434
        %v697 = vsel %vm696, %v634, %v695
        %vm698 = vcmask 1043459
        %v699 = vsel %vm698, %v641, %v697
        %vm700 = vcmask 1044484
        %v701 = vsel %vm700, %v648, %v699
        %vm702 = vcmask 1045509
        %v703 = vsel %vm702, %v655, %v701
        %vm704 = vcmask 1046534
        %v705 = vsel %vm704, %v662, %v703
        %vm706 = vcmask 1047559
        %v707 = vsel %vm706, %v669, %v705
        %709 = vmatprep.subr.mxu0 0.0
        %710 = vmatpush1.msra.mxu0 %v670
        %711 = vmatprep.subr.mxu0 0.0
        %712 = vmatpush1.msra.mxu0 %v671
        %713 = vmatprep.subr.mxu0 0.0
        %714 = vmatpush1.msra.mxu0 %v672
        %715 = vmatprep.subr.mxu0 0.0
        %716 = vmatpush1.msra.mxu0 %v673
        %717 = vmatprep.subr.mxu0 0.0
        %718 = vmatpush1.msra.mxu0 %v674
        %719 = vmatprep.subr.mxu0 0.0
        %720 = vmatpush1.msra.mxu0 %v675
        %721 = vmatprep.subr.mxu0 0.0
        %722 = vmatpush1.msra.mxu0 %v676
        %723 = vmatprep.subr.mxu0 0.0
        %724 = vmatpush1.msra.mxu0 %v677
        %725 = vmatprep.subr.mxu0 0.0
        %726 = vmatpush1.msra.mxu0 %v678
        %727 = vmatprep.subr.mxu0 0.0
        %728 = vmatpush1.msra.mxu0 %v679
        %729 = vmatprep.subr.mxu0 0.0
        %730 = vmatpush1.msra.mxu0 %v680
        %731 = vmatprep.subr.mxu0 0.0
        %732 = vmatpush1.msra.mxu0 %v681
        %733 = vmatprep.subr.mxu0 0.0
        %734 = vmatpush1.msra.mxu0 %v682
        %735 = vmatprep.subr.mxu0 0.0
        %736 = vmatpush1.msra.mxu0 %v683
        %737 = vmatprep.subr.mxu0 0.0
        %738 = vmatpush1.msra.mxu0 %v684
        %739 = vmatprep.subr.mxu0 0.0
        %740 = vmatpush1.msra.mxu0 %v685
        %741 = vmatprep.subr.mxu0 0.0
        %742 = vmatpush1.msra.mxu0 0.0
        %743 = vmatprep.subr.mxu0 0.0
        %744 = vmatpush1.msra.mxu0 0.0
        %745 = vmatprep.subr.mxu0 0.0
        %746 = vmatpush1.msra.mxu0 0.0
        %747 = vmatprep.subr.mxu0 0.0
        %748 = vmatpush1.msra.mxu0 0.0
        %749 = vmatprep.subr.mxu0 0.0
        %750 = vmatpush1.msra.mxu0 0.0
        %751 = vmatprep.subr.mxu0 0.0
        %752 = vmatpush1.msra.mxu0 0.0
        %753 = vmatprep.subr.mxu0 0.0
        %754 = vmatpush1.msra.mxu0 0.0
        %755 = vmatprep.subr.mxu0 0.0
        %756 = vmatpush1.msra.mxu0 0.0
        %757 = vmatprep.subr.mxu0 0.0
        %758 = vmatpush1.msra.mxu0 0.0
        %759 = vmatprep.subr.mxu0 0.0
        %760 = vmatpush1.msra.mxu0 0.0
        %761 = vmatprep.subr.mxu0 0.0
        %762 = vmatpush1.msra.mxu0 0.0
        %763 = vmatprep.subr.mxu0 0.0
        %764 = vmatpush1.msra.mxu0 0.0
        %765 = vmatprep.subr.mxu0 0.0
        %766 = vmatpush1.msra.mxu0 0.0
        %767 = vmatprep.subr.mxu0 0.0
        %768 = vmatpush1.msra.mxu0 0.0
        %769 = vmatprep.subr.mxu0 0.0
        %770 = vmatpush1.msra.mxu0 0.0
        %771 = vmatprep.subr.mxu0 0.0
        %772 = vmatpush1.msra.mxu0 0.0
        %773 = vmatprep.mubr.f32.mxu0 0.0
        %774 = vmatmul.mubr.f32.gmra.mrb[0].mxu0 %v707
        %v775 = vpop.f32.mrb[0].mxu0
        %v776 = vadd.f32 0.0, %v775
        %v777 = vpop.f32.mrb[0].mxu0
        %778 = vdwg.mxu0
        %v779 = vld [vmem:[%s4] sm:$0xf]
        %vm780 = vcmask 31744
        %v782 = vsel %vm780, %v776, 0
        %vm784 = vcmask 1043456
        %v786 = vsel %vm784, %v779, 0
        %788 = vmatprep.subr.mxu0 0.0
        %789 = vmatpush1.msra.mxu0 %v786
        %790 = vmatprep.subr.mxu0 0.0
        %791 = vmatpush1.msra.mxu0 0.0
        %792 = vmatprep.subr.mxu0 0.0
        %793 = vmatpush1.msra.mxu0 0.0
        %794 = vmatprep.subr.mxu0 0.0
        %795 = vmatpush1.msra.mxu0 0.0
        %796 = vmatprep.subr.mxu0 0.0
        %797 = vmatpush1.msra.mxu0 0.0
        %798 = vmatprep.subr.mxu0 0.0
        %799 = vmatpush1.msra.mxu0 0.0
        %800 = vmatprep.subr.mxu0 0.0
        %801 = vmatpush1.msra.mxu0 0.0
        %802 = vmatprep.subr.mxu0 0.0
        %803 = vmatpush1.msra.mxu0 0.0
        %804 = vmatprep.subr.mxu0 0.0
        %805 = vmatpush1.msra.mxu0 0.0
        %806 = vmatprep.subr.mxu0 0.0
        %807 = vmatpush1.msra.mxu0 0.0
        %808 = vmatprep.subr.mxu0 0.0
        %809 = vmatpush1.msra.mxu0 0.0
        %810 = vmatprep.subr.mxu0 0.0
        %811 = vmatpush1.msra.mxu0 0.0
        %812 = vmatprep.subr.mxu0 0.0
        %813 = vmatpush1.msra.mxu0 0.0
        %814 = vmatprep.subr.mxu0 0.0
        %815 = vmatpush1.msra.mxu0 0.0
        %816 = vmatprep.subr.mxu0 0.0
        %817 = vmatpush1.msra.mxu0 0.0
        %818 = vmatprep.subr.mxu0 0.0
        %819 = vmatpush1.msra.mxu0 0.0
        %820 = vmatprep.subr.mxu0 0.0
        %821 = vmatpush1.msra.mxu0 0.0
        %822 = vmatprep.subr.mxu0 0.0
        %823 = vmatpush1.msra.mxu0 0.0
        %824 = vmatprep.subr.mxu0 0.0
        %825 = vmatpush1.msra.mxu0 0.0
        %826 = vmatprep.subr.mxu0 0.0
        %827 = vmatpush1.msra.mxu0 0.0
        %828 = vmatprep.subr.mxu0 0.0
        %829 = vmatpush1.msra.mxu0 0.0
        %830 = vmatprep.subr.mxu0 0.0
        %831 = vmatpush1.msra.mxu0 0.0
        %832 = vmatprep.subr.mxu0 0.0
        %833 = vmatpush1.msra.mxu0 0.0
        %834 = vmatprep.subr.mxu0 0.0
        %835 = vmatpush1.msra.mxu0 0.0
        %836 = vmatprep.subr.mxu0 0.0
        %837 = vmatpush1.msra.mxu0 0.0
        %838 = vmatprep.subr.mxu0 0.0
        %839 = vmatpush1.msra.mxu0 0.0
        %840 = vmatprep.subr.mxu0 0.0
        %841 = vmatpush1.msra.mxu0 0.0
        %842 = vmatprep.subr.mxu0 0.0
        %843 = vmatpush1.msra.mxu0 0.0
        %844 = vmatprep.subr.mxu0 0.0
        %845 = vmatpush1.msra.mxu0 0.0
        %846 = vmatprep.subr.mxu0 0.0
        %847 = vmatpush1.msra.mxu0 0.0
        %848 = vmatprep.subr.mxu0 0.0
        %849 = vmatpush1.msra.mxu0 0.0
        %850 = vmatprep.subr.mxu0 0.0
        %851 = vmatpush1.msra.mxu0 0.0
        %852 = vmatprep.mubr.f32.mxu0 0.0
        %853 = vmatmul.mubr.f32.gmra.mrb[0].mxu0 %v782
        %v854 = vpop.f32.mrb[0].mxu0
        %v855 = vadd.f32 0.0, %v854
        %v856 = vpop.f32.mrb[0].mxu0
        %857 = vdwg.mxu0
        %v859 = vcombine.high %v855, %v855
        %v861 = vunpack.c.l.s4 1966171168
        %v862 = vunpack.c.0.s8 %v861
        %v863 = vlaneseq
        %v864 = vshrl.u32 %v863, 7
        %v865 = vsub.s32 %v862, %v864
        %v866 = vrot.slane %v855, %v865
        %v868 = vunpack.c.l.s4 1966171168
        %v869 = vunpack.c.0.s8 %v868
        %v870 = vlaneseq
        %v871 = vshrl.u32 %v870, 7
        %v872 = vsub.s32 %v869, %v871
        %v873 = vrot.slane %v859, %v872
        %v874 = vcombine.high %v866, %v866
        %v875 = vcombine.high %v873, %v873
        %v877 = vunpack.c.l.s4 1966171168
        %v878 = vunpack.c.0.s8 %v877
        %v879 = vlaneseq
        %v880 = vshrl.u32 %v879, 7
        %v881 = vsub.s32 %v878, %v880
        %v882 = vrot.slane %v866, %v881
        %v884 = vunpack.c.l.s4 1966171168
        %v885 = vunpack.c.0.s8 %v884
        %v886 = vlaneseq
        %v887 = vshrl.u32 %v886, 7
        %v888 = vsub.s32 %v885, %v887
        %v889 = vrot.slane %v873, %v888
        %v891 = vunpack.c.l.s4 1966171168
        %v892 = vunpack.c.0.s8 %v891
        %v893 = vlaneseq
        %v894 = vshrl.u32 %v893, 7
        %v895 = vsub.s32 %v892, %v894
        %v896 = vrot.slane %v874, %v895
        %v898 = vunpack.c.l.s4 1966171168
        %v899 = vunpack.c.0.s8 %v898
        %v900 = vlaneseq
        %v901 = vshrl.u32 %v900, 7
        %v902 = vsub.s32 %v899, %v901
        %v903 = vrot.slane %v875, %v902
        %v904 = vcombine.high %v882, %v882
        %v905 = vcombine.high %v889, %v889
        %v906 = vcombine.high %v896, %v896
        %v907 = vcombine.high %v903, %v903
        %v908 = vlaneseq
        %v909 = vshrl.u32 %v908, 7
        %v910 = vsub.s32 0, %v909
        %v911 = vrot.slane %v882, %v910
        %v912 = vlaneseq
        %v913 = vshrl.u32 %v912, 7
        %v914 = vsub.s32 0, %v913
        %v915 = vrot.slane %v896, %v914
        %v916 = vlaneseq
        %v917 = vshrl.u32 %v916, 7
        %v918 = vsub.s32 0, %v917
        %v919 = vrot.slane %v904, %v918
        %v920 = vlaneseq
        %v921 = vshrl.u32 %v920, 7
        %v922 = vsub.s32 0, %v921
        %v923 = vrot.slane %v906, %v922
        %v924 = vlaneseq
        %v925 = vshrl.u32 %v924, 7
        %v926 = vsub.s32 0, %v925
        %v927 = vrot.slane %v889, %v926
        %v928 = vlaneseq
        %v929 = vshrl.u32 %v928, 7
        %v930 = vsub.s32 0, %v929
        %v931 = vrot.slane %v903, %v930
        %v932 = vlaneseq
        %v933 = vshrl.u32 %v932, 7
        %v934 = vsub.s32 0, %v933
        %v935 = vrot.slane %v905, %v934
        %v936 = vlaneseq
        %v937 = vshrl.u32 %v936, 7
        %v938 = vsub.s32 0, %v937
        %v939 = vrot.slane %v907, %v938
        %v948 = vsub.f32 %v598, %v911
        %v949 = vsub.f32 %v599, %v911
        %v950 = vsub.f32 %v600, %v915
        %v951 = vsub.f32 %v601, %v915
        %v952 = vsub.f32 %v602, %v919
        %v953 = vsub.f32 %v603, %v919
        %v954 = vsub.f32 %v604, %v923
        %v955 = vsub.f32 %v605, %v923
        %v956 = vsub.f32 %v606, %v927
        %v957 = vsub.f32 %v607, %v927
        %v958 = vsub.f32 %v608, %v931
        %v959 = vsub.f32 %v609, %v931
        %v960 = vsub.f32 %v610, %v935
        %v961 = vsub.f32 %v611, %v935
        %v962 = vsub.f32 %v612, %v939
        %v963 = vsub.f32 %v613, %v939
        %v964 = vmul.f32 %v948, %v948
        %v965 = vmul.f32 %v949, %v949
        %v966 = vmul.f32 %v950, %v950
        %v967 = vmul.f32 %v951, %v951
        %v968 = vmul.f32 %v952, %v952
        %v969 = vmul.f32 %v953, %v953
        %v970 = vmul.f32 %v954, %v954
        %v971 = vmul.f32 %v955, %v955
        %v972 = vmul.f32 %v956, %v956
        %v973 = vmul.f32 %v957, %v957
        %v974 = vmul.f32 %v958, %v958
        %v975 = vmul.f32 %v959, %v959
        %v976 = vmul.f32 %v960, %v960
        %v977 = vmul.f32 %v961, %v961
        %v978 = vmul.f32 %v962, %v962
        %v979 = vmul.f32 %v963, %v963
        %v980 = vadd.f32 %v964, %v965
        %v981 = vrot.slane %v980, 4
        %v982 = vadd.f32 %v980, %v981
        %v983 = vrot.slane %v982, 2
        %v984 = vadd.f32 %v982, %v983
        %v985 = vrot.slane %v984, 1
        %v986 = vadd.f32 %v984, %v985
        %v987 = vadd.f32 %v966, %v967
        %v988 = vrot.slane %v987, 4
        %v989 = vadd.f32 %v987, %v988
        %v990 = vrot.slane %v989, 2
        %v991 = vadd.f32 %v989, %v990
        %v992 = vrot.slane %v991, 1
        %v993 = vadd.f32 %v991, %v992
        %v994 = vadd.f32 %v968, %v969
        %v995 = vrot.slane %v994, 4
        %v996 = vadd.f32 %v994, %v995
        %v997 = vrot.slane %v996, 2
        %v998 = vadd.f32 %v996, %v997
        %v999 = vrot.slane %v998, 1
        %v1000 = vadd.f32 %v998, %v999
        %v1001 = vadd.f32 %v970, %v971
        %v1002 = vrot.slane %v1001, 4
        %v1003 = vadd.f32 %v1001, %v1002
        %v1004 = vrot.slane %v1003, 2
        %v1005 = vadd.f32 %v1003, %v1004
        %v1006 = vrot.slane %v1005, 1
        %v1007 = vadd.f32 %v1005, %v1006
        %v1008 = vadd.f32 %v972, %v973
        %v1009 = vrot.slane %v1008, 4
        %v1010 = vadd.f32 %v1008, %v1009
        %v1011 = vrot.slane %v1010, 2
        %v1012 = vadd.f32 %v1010, %v1011
        %v1013 = vrot.slane %v1012, 1
        %v1014 = vadd.f32 %v1012, %v1013
        %v1015 = vadd.f32 %v974, %v975
        %v1016 = vrot.slane %v1015, 4
        %v1017 = vadd.f32 %v1015, %v1016
        %v1018 = vrot.slane %v1017, 2
        %v1019 = vadd.f32 %v1017, %v1018
        %v1020 = vrot.slane %v1019, 1
        %v1021 = vadd.f32 %v1019, %v1020
        %v1022 = vadd.f32 %v976, %v977
        %v1023 = vrot.slane %v1022, 4
        %v1024 = vadd.f32 %v1022, %v1023
        %v1025 = vrot.slane %v1024, 2
        %v1026 = vadd.f32 %v1024, %v1025
        %v1027 = vrot.slane %v1026, 1
        %v1028 = vadd.f32 %v1026, %v1027
        %v1029 = vadd.f32 %v978, %v979
        %v1030 = vrot.slane %v1029, 4
        %v1031 = vadd.f32 %v1029, %v1030
        %v1032 = vrot.slane %v1031, 2
        %v1033 = vadd.f32 %v1031, %v1032
        %v1034 = vrot.slane %v1033, 1
        %v1035 = vadd.f32 %v1033, %v1034
        %v1044 = vsel %vm694, %v993, %v986
        %v1045 = vsel %vm696, %v1000, %v1044
        %v1046 = vsel %vm698, %v1007, %v1045
        %v1047 = vsel %vm700, %v1014, %v1046
        %v1048 = vsel %vm702, %v1021, %v1047
        %v1049 = vsel %vm704, %v1028, %v1048
        %v1050 = vsel %vm706, %v1035, %v1049
        %1052 = vmatprep.subr.mxu0 0.0
        %1053 = vmatpush1.msra.mxu0 %v670
        %1054 = vmatprep.subr.mxu0 0.0
        %1055 = vmatpush1.msra.mxu0 %v671
        %1056 = vmatprep.subr.mxu0 0.0
        %1057 = vmatpush1.msra.mxu0 %v672
        %1058 = vmatprep.subr.mxu0 0.0
        %1059 = vmatpush1.msra.mxu0 %v673
        %1060 = vmatprep.subr.mxu0 0.0
        %1061 = vmatpush1.msra.mxu0 %v674
        %1062 = vmatprep.subr.mxu0 0.0
        %1063 = vmatpush1.msra.mxu0 %v675
        %1064 = vmatprep.subr.mxu0 0.0
        %1065 = vmatpush1.msra.mxu0 %v676
        %1066 = vmatprep.subr.mxu0 0.0
        %1067 = vmatpush1.msra.mxu0 %v677
        %1068 = vmatprep.subr.mxu0 0.0
        %1069 = vmatpush1.msra.mxu0 %v678
        %1070 = vmatprep.subr.mxu0 0.0
        %1071 = vmatpush1.msra.mxu0 %v679
        %1072 = vmatprep.subr.mxu0 0.0
        %1073 = vmatpush1.msra.mxu0 %v680
        %1074 = vmatprep.subr.mxu0 0.0
        %1075 = vmatpush1.msra.mxu0 %v681
        %1076 = vmatprep.subr.mxu0 0.0
        %1077 = vmatpush1.msra.mxu0 %v682
        %1078 = vmatprep.subr.mxu0 0.0
        %1079 = vmatpush1.msra.mxu0 %v683
        %1080 = vmatprep.subr.mxu0 0.0
        %1081 = vmatpush1.msra.mxu0 %v684
        %1082 = vmatprep.subr.mxu0 0.0
        %1083 = vmatpush1.msra.mxu0 %v685
        %1084 = vmatprep.subr.mxu0 0.0
        %1085 = vmatpush1.msra.mxu0 0.0
        %1086 = vmatprep.subr.mxu0 0.0
        %1087 = vmatpush1.msra.mxu0 0.0
        %1088 = vmatprep.subr.mxu0 0.0
        %1089 = vmatpush1.msra.mxu0 0.0
        %1090 = vmatprep.subr.mxu0 0.0
        %1091 = vmatpush1.msra.mxu0 0.0
        %1092 = vmatprep.subr.mxu0 0.0
        %1093 = vmatpush1.msra.mxu0 0.0
        %1094 = vmatprep.subr.mxu0 0.0
        %1095 = vmatpush1.msra.mxu0 0.0
        %1096 = vmatprep.subr.mxu0 0.0
        %1097 = vmatpush1.msra.mxu0 0.0
        %1098 = vmatprep.subr.mxu0 0.0
        %1099 = vmatpush1.msra.mxu0 0.0
        %1100 = vmatprep.subr.mxu0 0.0
        %1101 = vmatpush1.msra.mxu0 0.0
        %1102 = vmatprep.subr.mxu0 0.0
        %1103 = vmatpush1.msra.mxu0 0.0
        %1104 = vmatprep.subr.mxu0 0.0
        %1105 = vmatpush1.msra.mxu0 0.0
        %1106 = vmatprep.subr.mxu0 0.0
        %1107 = vmatpush1.msra.mxu0 0.0
        %1108 = vmatprep.subr.mxu0 0.0
        %1109 = vmatpush1.msra.mxu0 0.0
        %1110 = vmatprep.subr.mxu0 0.0
        %1111 = vmatpush1.msra.mxu0 0.0
        %1112 = vmatprep.subr.mxu0 0.0
        %1113 = vmatpush1.msra.mxu0 0.0
        %1114 = vmatprep.subr.mxu0 0.0
        %1115 = vmatpush1.msra.mxu0 0.0
        %1116 = vmatprep.mubr.f32.mxu0 0.0
        %1117 = vmatmul.mubr.f32.gmra.mrb[0].mxu0 %v1050
        %v1118 = vpop.f32.mrb[0].mxu0
        %v1119 = vadd.f32 0.0, %v1118
        %v1120 = vpop.f32.mrb[0].mxu0
        %1121 = vdwg.mxu0
        %v1123 = vsel %vm780, %v1119, 0
        %1125 = vmatprep.subr.mxu0 0.0
        %1126 = vmatpush1.msra.mxu0 %v786
        %1127 = vmatprep.subr.mxu0 0.0
        %1128 = vmatpush1.msra.mxu0 0.0
        %1129 = vmatprep.subr.mxu0 0.0
        %1130 = vmatpush1.msra.mxu0 0.0
        %1131 = vmatprep.subr.mxu0 0.0
        %1132 = vmatpush1.msra.mxu0 0.0
        %1133 = vmatprep.subr.mxu0 0.0
        %1134 = vmatpush1.msra.mxu0 0.0
        %1135 = vmatprep.subr.mxu0 0.0
        %1136 = vmatpush1.msra.mxu0 0.0
        %1137 = vmatprep.subr.mxu0 0.0
        %1138 = vmatpush1.msra.mxu0 0.0
        %1139 = vmatprep.subr.mxu0 0.0
        %1140 = vmatpush1.msra.mxu0 0.0
        %1141 = vmatprep.subr.mxu0 0.0
        %1142 = vmatpush1.msra.mxu0 0.0
        %1143 = vmatprep.subr.mxu0 0.0
        %1144 = vmatpush1.msra.mxu0 0.0
        %1145 = vmatprep.subr.mxu0 0.0
        %1146 = vmatpush1.msra.mxu0 0.0
        %1147 = vmatprep.subr.mxu0 0.0
        %1148 = vmatpush1.msra.mxu0 0.0
        %1149 = vmatprep.subr.mxu0 0.0
        %1150 = vmatpush1.msra.mxu0 0.0
        %1151 = vmatprep.subr.mxu0 0.0
        %1152 = vmatpush1.msra.mxu0 0.0
        %1153 = vmatprep.subr.mxu0 0.0
        %1154 = vmatpush1.msra.mxu0 0.0
        %1155 = vmatprep.subr.mxu0 0.0
        %1156 = vmatpush1.msra.mxu0 0.0
        %1157 = vmatprep.subr.mxu0 0.0
        %1158 = vmatpush1.msra.mxu0 0.0
        %1159 = vmatprep.subr.mxu0 0.0
        %1160 = vmatpush1.msra.mxu0 0.0
        %1161 = vmatprep.subr.mxu0 0.0
        %1162 = vmatpush1.msra.mxu0 0.0
        %1163 = vmatprep.subr.mxu0 0.0
        %1164 = vmatpush1.msra.mxu0 0.0
        %1165 = vmatprep.subr.mxu0 0.0
        %1166 = vmatpush1.msra.mxu0 0.0
        %1167 = vmatprep.subr.mxu0 0.0
        %1168 = vmatpush1.msra.mxu0 0.0
        %1169 = vmatprep.subr.mxu0 0.0
        %1170 = vmatpush1.msra.mxu0 0.0
        %1171 = vmatprep.subr.mxu0 0.0
        %1172 = vmatpush1.msra.mxu0 0.0
        %1173 = vmatprep.subr.mxu0 0.0
        %1174 = vmatpush1.msra.mxu0 0.0
        %1175 = vmatprep.subr.mxu0 0.0
        %1176 = vmatpush1.msra.mxu0 0.0
        %1177 = vmatprep.subr.mxu0 0.0
        %1178 = vmatpush1.msra.mxu0 0.0
        %1179 = vmatprep.subr.mxu0 0.0
        %1180 = vmatpush1.msra.mxu0 0.0
        %1181 = vmatprep.subr.mxu0 0.0
        %1182 = vmatpush1.msra.mxu0 0.0
        %1183 = vmatprep.subr.mxu0 0.0
        %1184 = vmatpush1.msra.mxu0 0.0
        %1185 = vmatprep.subr.mxu0 0.0
        %1186 = vmatpush1.msra.mxu0 0.0
        %1187 = vmatprep.subr.mxu0 0.0
        %1188 = vmatpush1.msra.mxu0 0.0
        %1189 = vmatprep.mubr.f32.mxu0 0.0
        %1190 = vmatmul.mubr.f32.gmra.mrb[0].mxu0 %v1123
        %v1191 = vpop.f32.mrb[0].mxu0
        %v1192 = vadd.f32 1e-06, %v1191
        %v1193 = vpop.f32.mrb[0].mxu0
        %1194 = vdwg.mxu0
        %v1195 = vrsqrt.pop %v1192
        %v1196 = vld [vmem:[%s1] sm:$0x1]
        %v1198 = vlaneseq
        %v1199 = vshrl.u32 %v1198, 7
        %v1200 = vsub.s32 0, %v1199
        %v1201 = vrot.slane %v1196, %v1200
        %v1203 = vmul.f32 %v1195, %v1201
        %v1205 = vcombine.high %v1203, %v1203
        %v1207 = vunpack.c.l.s4 1966171168
        %v1208 = vunpack.c.0.s8 %v1207
        %v1209 = vlaneseq
        %v1210 = vshrl.u32 %v1209, 7
        %v1211 = vsub.s32 %v1208, %v1210
        %v1212 = vrot.slane %v1203, %v1211
        %v1214 = vunpack.c.l.s4 1966171168
        %v1215 = vunpack.c.0.s8 %v1214
        %v1216 = vlaneseq
        %v1217 = vshrl.u32 %v1216, 7
        %v1218 = vsub.s32 %v1215, %v1217
        %v1219 = vrot.slane %v1205, %v1218
        %v1220 = vcombine.high %v1212, %v1212
        %v1221 = vcombine.high %v1219, %v1219
        %v1223 = vunpack.c.l.s4 1966171168
        %v1224 = vunpack.c.0.s8 %v1223
        %v1225 = vlaneseq
        %v1226 = vshrl.u32 %v1225, 7
        %v1227 = vsub.s32 %v1224, %v1226
        %v1228 = vrot.slane %v1212, %v1227
        %v1230 = vunpack.c.l.s4 1966171168
        %v1231 = vunpack.c.0.s8 %v1230
        %v1232 = vlaneseq
        %v1233 = vshrl.u32 %v1232, 7
        %v1234 = vsub.s32 %v1231, %v1233
        %v1235 = vrot.slane %v1219, %v1234
        %v1237 = vunpack.c.l.s4 1966171168
        %v1238 = vunpack.c.0.s8 %v1237
        %v1239 = vlaneseq
        %v1240 = vshrl.u32 %v1239, 7
        %v1241 = vsub.s32 %v1238, %v1240
        %v1242 = vrot.slane %v1220, %v1241
        %v1244 = vunpack.c.l.s4 1966171168
        %v1245 = vunpack.c.0.s8 %v1244
        %v1246 = vlaneseq
        %v1247 = vshrl.u32 %v1246, 7
        %v1248 = vsub.s32 %v1245, %v1247
        %v1249 = vrot.slane %v1221, %v1248
        %v1250 = vcombine.high %v1228, %v1228
        %v1251 = vcombine.high %v1235, %v1235
        %v1252 = vcombine.high %v1242, %v1242
        %v1253 = vcombine.high %v1249, %v1249
        %v1254 = vlaneseq
        %v1255 = vshrl.u32 %v1254, 7
        %v1256 = vsub.s32 0, %v1255
        %v1257 = vrot.slane %v1228, %v1256
        %v1258 = vlaneseq
        %v1259 = vshrl.u32 %v1258, 7
        %v1260 = vsub.s32 0, %v1259
        %v1261 = vrot.slane %v1242, %v1260
        %v1262 = vlaneseq
        %v1263 = vshrl.u32 %v1262, 7
        %v1264 = vsub.s32 0, %v1263
        %v1265 = vrot.slane %v1250, %v1264
        %v1266 = vlaneseq
        %v1267 = vshrl.u32 %v1266, 7
        %v1268 = vsub.s32 0, %v1267
        %v1269 = vrot.slane %v1252, %v1268
        %v1270 = vlaneseq
        %v1271 = vshrl.u32 %v1270, 7
        %v1272 = vsub.s32 0, %v1271
        %v1273 = vrot.slane %v1235, %v1272
        %v1274 = vlaneseq
        %v1275 = vshrl.u32 %v1274, 7
        %v1276 = vsub.s32 0, %v1275
        %v1277 = vrot.slane %v1249, %v1276
        %v1278 = vlaneseq
        %v1279 = vshrl.u32 %v1278, 7
        %v1280 = vsub.s32 0, %v1279
        %v1281 = vrot.slane %v1251, %v1280
        %v1282 = vlaneseq
        %v1283 = vshrl.u32 %v1282, 7
        %v1284 = vsub.s32 0, %v1283
        %v1285 = vrot.slane %v1253, %v1284
        %v1294 = vmul.f32 %v948, %v1257
        %v1295 = vmul.f32 %v949, %v1257
        %v1296 = vmul.f32 %v950, %v1261
        %v1297 = vmul.f32 %v951, %v1261
        %v1298 = vmul.f32 %v952, %v1265
        %v1299 = vmul.f32 %v953, %v1265
        %v1300 = vmul.f32 %v954, %v1269
        %v1301 = vmul.f32 %v955, %v1269
        %v1302 = vmul.f32 %v956, %v1273
        %v1303 = vmul.f32 %v957, %v1273
        %v1304 = vmul.f32 %v958, %v1277
        %v1305 = vmul.f32 %v959, %v1277
        %v1306 = vmul.f32 %v960, %v1281
        %v1307 = vmul.f32 %v961, %v1281
        %v1308 = vmul.f32 %v962, %v1285
        %v1309 = vmul.f32 %v963, %v1285
        %v1310 = vld [vmem:[#allocation2] sm:$0x1]
        %v1312 = vlaneseq
        %v1313 = vshrl.u32 %v1312, 7
        %v1314 = vsub.s32 0, %v1313
        %v1315 = vrot.slane %v1310, %v1314
        %v1317 = vadd.f32 %v1294, %v1315
        %v1318 = vadd.f32 %v1295, %v1315
        %v1319 = vadd.f32 %v1296, %v1315
        %v1320 = vadd.f32 %v1297, %v1315
        %v1321 = vadd.f32 %v1298, %v1315
        %v1322 = vadd.f32 %v1299, %v1315
        %v1323 = vadd.f32 %v1300, %v1315
        %v1324 = vadd.f32 %v1301, %v1315
        %v1325 = vadd.f32 %v1302, %v1315
        %v1326 = vadd.f32 %v1303, %v1315
        %v1327 = vadd.f32 %v1304, %v1315
        %v1328 = vadd.f32 %v1305, %v1315
        %v1329 = vadd.f32 %v1306, %v1315
        %v1330 = vadd.f32 %v1307, %v1315
        %v1331 = vadd.f32 %v1308, %v1315
        %v1332 = vadd.f32 %v1309, %v1315
        %v1333 = vxor.u32 %v1317, 2147483648
        %v1334 = vxor.u32 %v1318, 2147483648
        %v1335 = vxor.u32 %v1319, 2147483648
        %v1336 = vxor.u32 %v1320, 2147483648
        %v1337 = vxor.u32 %v1321, 2147483648
        %v1338 = vxor.u32 %v1322, 2147483648
        %v1339 = vxor.u32 %v1323, 2147483648
        %v1340 = vxor.u32 %v1324, 2147483648
        %v1341 = vxor.u32 %v1325, 2147483648
        %v1342 = vxor.u32 %v1326, 2147483648
        %v1343 = vxor.u32 %v1327, 2147483648
        %v1344 = vxor.u32 %v1328, 2147483648
        %v1345 = vxor.u32 %v1329, 2147483648
        %v1346 = vxor.u32 %v1330, 2147483648
        %v1347 = vxor.u32 %v1331, 2147483648
        %v1348 = vxor.u32 %v1332, 2147483648
        %v1349 = vmul.f32 %v1333, 1.442695
        %v1350 = vpow.pop %v1349
        %v1351 = vmul.f32 %v1334, 1.442695
        %v1352 = vpow.pop %v1351
        %v1353 = vmul.f32 %v1335, 1.442695
        %v1354 = vpow.pop %v1353
        %v1355 = vmul.f32 %v1336, 1.442695
        %v1356 = vpow.pop %v1355
        %v1357 = vmul.f32 %v1337, 1.442695
        %v1358 = vpow.pop %v1357
        %v1359 = vmul.f32 %v1338, 1.442695
        %v1360 = vpow.pop %v1359
        %v1361 = vmul.f32 %v1339, 1.442695
        %v1362 = vpow.pop %v1361
        %v1363 = vmul.f32 %v1340, 1.442695
        %v1364 = vpow.pop %v1363
        %v1365 = vmul.f32 %v1341, 1.442695
        %v1366 = vpow.pop %v1365
        %v1367 = vmul.f32 %v1342, 1.442695
        %v1368 = vpow.pop %v1367
        %v1369 = vmul.f32 %v1343, 1.442695
        %v1370 = vpow.pop %v1369
        %v1371 = vmul.f32 %v1344, 1.442695
        %v1372 = vpow.pop %v1371
        %v1373 = vmul.f32 %v1345, 1.442695
        %v1374 = vpow.pop %v1373
        %v1375 = vmul.f32 %v1346, 1.442695
        %v1376 = vpow.pop %v1375
        %v1377 = vmul.f32 %v1347, 1.442695
        %v1378 = vpow.pop %v1377
        %v1379 = vmul.f32 %v1348, 1.442695
        %v1380 = vpow.pop %v1379
        %v1381 = vadd.f32 %v1350, 1.0
        %v1382 = vadd.f32 %v1352, 1.0
        %v1383 = vadd.f32 %v1354, 1.0
        %v1384 = vadd.f32 %v1356, 1.0
        %v1385 = vadd.f32 %v1358, 1.0
        %v1386 = vadd.f32 %v1360, 1.0
        %v1387 = vadd.f32 %v1362, 1.0
        %v1388 = vadd.f32 %v1364, 1.0
        %v1389 = vadd.f32 %v1366, 1.0
        %v1390 = vadd.f32 %v1368, 1.0
        %v1391 = vadd.f32 %v1370, 1.0
        %v1392 = vadd.f32 %v1372, 1.0
        %v1393 = vadd.f32 %v1374, 1.0
        %v1394 = vadd.f32 %v1376, 1.0
        %v1395 = vadd.f32 %v1378, 1.0
        %v1396 = vadd.f32 %v1380, 1.0
        %v1397 = vrcp.pop %v1381
        %v1398 = vmul.f32 1.0, %v1397
        %v1399 = vrcp.pop %v1382
        %v1400 = vmul.f32 1.0, %v1399
        %v1401 = vrcp.pop %v1383
        %v1402 = vmul.f32 1.0, %v1401
        %v1403 = vrcp.pop %v1384
        %v1404 = vmul.f32 1.0, %v1403
        %v1405 = vrcp.pop %v1385
        %v1406 = vmul.f32 1.0, %v1405
        %v1407 = vrcp.pop %v1386
        %v1408 = vmul.f32 1.0, %v1407
        %v1409 = vrcp.pop %v1387
        %v1410 = vmul.f32 1.0, %v1409
        %v1411 = vrcp.pop %v1388
        %v1412 = vmul.f32 1.0, %v1411
        %v1413 = vrcp.pop %v1389
        %v1414 = vmul.f32 1.0, %v1413
        %v1415 = vrcp.pop %v1390
        %v1416 = vmul.f32 1.0, %v1415
        %v1417 = vrcp.pop %v1391
        %v1418 = vmul.f32 1.0, %v1417
        %v1419 = vrcp.pop %v1392
        %v1420 = vmul.f32 1.0, %v1419
        %v1421 = vrcp.pop %v1393
        %v1422 = vmul.f32 1.0, %v1421
        %v1423 = vrcp.pop %v1394
        %v1424 = vmul.f32 1.0, %v1423
        %v1425 = vrcp.pop %v1395
        %v1426 = vmul.f32 1.0, %v1425
        %v1427 = vrcp.pop %v1396
        %v1428 = vmul.f32 1.0, %v1427
        %v1429 = vmul.f32 %v1317, %v1398
        %v1430 = vmul.f32 %v1318, %v1400
        %v1431 = vmul.f32 %v1319, %v1402
        %v1432 = vmul.f32 %v1320, %v1404
        %v1433 = vmul.f32 %v1321, %v1406
        %v1434 = vmul.f32 %v1322, %v1408
        %v1435 = vmul.f32 %v1323, %v1410
        %v1436 = vmul.f32 %v1324, %v1412
        %v1437 = vmul.f32 %v1325, %v1414
        %v1438 = vmul.f32 %v1326, %v1416
        %v1439 = vmul.f32 %v1327, %v1418
        %v1440 = vmul.f32 %v1328, %v1420
        %v1441 = vmul.f32 %v1329, %v1422
        %v1442 = vmul.f32 %v1330, %v1424
        %v1443 = vmul.f32 %v1331, %v1426
        %v1444 = vmul.f32 %v1332, %v1428
        %v1445 = vpack.c.bf16 %v1430, %v1429
        %v1446 = vpack.c.bf16 %v1432, %v1431
        %v1447 = vpack.c.bf16 %v1434, %v1433
        %v1448 = vpack.c.bf16 %v1436, %v1435
        %v1449 = vpack.c.bf16 %v1438, %v1437
        %v1450 = vpack.c.bf16 %v1440, %v1439
        %v1451 = vpack.c.bf16 %v1442, %v1441
        %v1452 = vpack.c.bf16 %v1444, %v1443
        %v1454 = vshrl.u32 %v1445, 16
        %v1456 = vrot.slane %v1454, 6
        %v1457 = vshll.u32 %v1445, 16
        %v1459 = vrot.slane %v1457, 7
        %v1460 = vor.u32 %v1456, %v1459
        %v1462 = vshrl.u32 %v1446, 16
        %v1464 = vrot.slane %v1462, 6
        %v1465 = vshll.u32 %v1446, 16
        %v1467 = vrot.slane %v1465, 7
        %v1468 = vor.u32 %v1464, %v1467
        %v1470 = vshrl.u32 %v1447, 16
        %v1472 = vrot.slane %v1470, 6
        %v1473 = vshll.u32 %v1447, 16
        %v1475 = vrot.slane %v1473, 7
        %v1476 = vor.u32 %v1472, %v1475
        %v1478 = vshrl.u32 %v1448, 16
        %v1480 = vrot.slane %v1478, 6
        %v1481 = vshll.u32 %v1448, 16
        %v1483 = vrot.slane %v1481, 7
        %v1484 = vor.u32 %v1480, %v1483
        %v1486 = vshrl.u32 %v1449, 16
        %v1488 = vrot.slane %v1486, 6
        %v1489 = vshll.u32 %v1449, 16
        %v1491 = vrot.slane %v1489, 7
        %v1492 = vor.u32 %v1488, %v1491
        %v1494 = vshrl.u32 %v1450, 16
        %v1496 = vrot.slane %v1494, 6
        %v1497 = vshll.u32 %v1450, 16
        %v1499 = vrot.slane %v1497, 7
        %v1500 = vor.u32 %v1496, %v1499
        %v1502 = vshrl.u32 %v1451, 16
        %v1504 = vrot.slane %v1502, 6
        %v1505 = vshll.u32 %v1451, 16
        %v1507 = vrot.slane %v1505, 7
        %v1508 = vor.u32 %v1504, %v1507
        %v1510 = vshrl.u32 %v1452, 16
        %v1512 = vrot.slane %v1510, 6
        %v1513 = vshll.u32 %v1452, 16
        %v1515 = vrot.slane %v1513, 7
        %v1516 = vor.u32 %v1512, %v1515
        %vm1525 = vcmask 1041408
        %vm1526 = vsmask.f32 1280
        %vm1527 = vmand %vm1525, %vm1526
        %v1528 = vsel %vm1527, 0, %v1460
        %v1529 = vsel %vm1527, 0, %v1468
        %v1530 = vsel %vm1527, 0, %v1476
        %v1531 = vsel %vm1527, 0, %v1484
        %v1532 = vsel %vm1527, 0, %v1492
        %v1533 = vsel %vm1527, 0, %v1500
        %v1534 = vsel %vm1527, 0, %v1508
        %v1535 = vsel %vm1527, 0, %v1516
        %v1536 = vrot.slane %v1454, 1
        %v1537 = vrot.slane %v1457, 2
        %v1538 = vor.u32 %v1536, %v1537
        %v1539 = vrot.slane %v1462, 1
        %v1540 = vrot.slane %v1465, 2
        %v1541 = vor.u32 %v1539, %v1540
        %v1542 = vrot.slane %v1470, 1
        %v1543 = vrot.slane %v1473, 2
        %v1544 = vor.u32 %v1542, %v1543
        %v1545 = vrot.slane %v1478, 1
        %v1546 = vrot.slane %v1481, 2
        %v1547 = vor.u32 %v1545, %v1546
        %v1548 = vrot.slane %v1486, 1
        %v1549 = vrot.slane %v1489, 2
        %v1550 = vor.u32 %v1548, %v1549
        %v1551 = vrot.slane %v1494, 1
        %v1552 = vrot.slane %v1497, 2
        %v1553 = vor.u32 %v1551, %v1552
        %v1554 = vrot.slane %v1502, 1
        %v1555 = vrot.slane %v1505, 2
        %v1556 = vor.u32 %v1554, %v1555
        %v1557 = vrot.slane %v1510, 1
        %v1558 = vrot.slane %v1513, 2
        %v1559 = vor.u32 %v1557, %v1558
        %vm1568 = vcmask 1046528
        %vm1569 = vsmask.f32 6400
        %vm1570 = vmand %vm1568, %vm1569
        %v1571 = vsel %vm1570, %v1538, 0
        %v1572 = vsel %vm1570, %v1541, 0
        %v1573 = vsel %vm1570, %v1544, 0
        %v1574 = vsel %vm1570, %v1547, 0
        %v1575 = vsel %vm1570, %v1550, 0
        %v1576 = vsel %vm1570, %v1553, 0
        %v1577 = vsel %vm1570, %v1556, 0
        %v1578 = vsel %vm1570, %v1559, 0
        %v1579 = vld [vmem:[#allocation5] sm:$0xff]
        %v1580 = vld [vmem:[#allocation5 + $0x8] sm:$0xff]
        %v1581 = vld [vmem:[#allocation5 + $0x10] sm:$0xff]
        %v1582 = vld [vmem:[#allocation5 + $0x18] sm:$0xff]
        %v1583 = vld [vmem:[#allocation5 + $0x20] sm:$0xff]
        %v1584 = vld [vmem:[#allocation5 + $0x28] sm:$0xff]
        %v1585 = vld [vmem:[#allocation5 + $0x30] sm:$0xff]
        %v1586 = vld [vmem:[#allocation5 + $0x38] sm:$0xff]
        %v1587 = vld [vmem:[#allocation5 + $0x40] sm:$0xff]
        %v1588 = vld [vmem:[#allocation5 + $0x48] sm:$0xff]
        %v1589 = vld [vmem:[#allocation5 + $0x50] sm:$0xff]
        %v1590 = vld [vmem:[#allocation5 + $0x58] sm:$0xff]
        %v1591 = vld [vmem:[#allocation5 + $0x60] sm:$0xff]
        %v1592 = vld [vmem:[#allocation5 + $0x68] sm:$0xff]
        %v1593 = vld [vmem:[#allocation5 + $0x70] sm:$0xff]
        %v1594 = vld [vmem:[#allocation5 + $0x78] sm:$0xff]
        %v1595 = vld [vmem:[%s5] sm:$0xff]
        %v1596 = vld [vmem:[%s5 + $0x8] sm:$0xff]
        %v1597 = vld [vmem:[%s5 + $0x10] sm:$0xff]
        %v1598 = vld [vmem:[%s5 + $0x18] sm:$0xff]
        %v1599 = vld [vmem:[%s5 + $0x20] sm:$0xff]
        %v1600 = vld [vmem:[%s5 + $0x28] sm:$0xff]
        %v1601 = vld [vmem:[%s5 + $0x30] sm:$0xff]
        %v1602 = vld [vmem:[%s5 + $0x38] sm:$0xff]
        %v1603 = vld [vmem:[%s5 + $0x40] sm:$0xff]
        %v1604 = vld [vmem:[%s5 + $0x48] sm:$0xff]
        %v1605 = vld [vmem:[%s5 + $0x50] sm:$0xff]
        %v1606 = vld [vmem:[%s5 + $0x58] sm:$0xff]
        %v1607 = vld [vmem:[%s5 + $0x60] sm:$0xff]
        %v1608 = vld [vmem:[%s5 + $0x68] sm:$0xff]
        %v1609 = vld [vmem:[%s5 + $0x70] sm:$0xff]
        %v1610 = vld [vmem:[%s5 + $0x78] sm:$0xff]
        %v1627 = vunpack.c.l.b16 %v1595
        %v1628 = vunpack.c.h.b16 %v1595
        %v1629 = vunpack.c.l.b16 %v1596
        %v1630 = vunpack.c.h.b16 %v1596
        %v1631 = vunpack.c.l.b16 %v1597
        %v1632 = vunpack.c.h.b16 %v1597
        %v1633 = vunpack.c.l.b16 %v1598
        %v1634 = vunpack.c.h.b16 %v1598
        %v1635 = vunpack.c.l.b16 %v1599
        %v1636 = vunpack.c.h.b16 %v1599
        %v1637 = vunpack.c.l.b16 %v1600
        %v1638 = vunpack.c.h.b16 %v1600
        %v1639 = vunpack.c.l.b16 %v1601
        %v1640 = vunpack.c.h.b16 %v1601
        %v1641 = vunpack.c.l.b16 %v1602
        %v1642 = vunpack.c.h.b16 %v1602
        %v1643 = vunpack.c.l.b16 %v1603
        %v1644 = vunpack.c.h.b16 %v1603
        %v1645 = vunpack.c.l.b16 %v1604
        %v1646 = vunpack.c.h.b16 %v1604
        %v1647 = vunpack.c.l.b16 %v1605
        %v1648 = vunpack.c.h.b16 %v1605
        %v1649 = vunpack.c.l.b16 %v1606
        %v1650 = vunpack.c.h.b16 %v1606
        %v1651 = vunpack.c.l.b16 %v1607
        %v1652 = vunpack.c.h.b16 %v1607
        %v1653 = vunpack.c.l.b16 %v1608
        %v1654 = vunpack.c.h.b16 %v1608
        %v1655 = vunpack.c.l.b16 %v1609
        %v1656 = vunpack.c.h.b16 %v1609
        %v1657 = vunpack.c.l.b16 %v1610
        %v1658 = vunpack.c.h.b16 %v1610
        %v1659 = vpack.c.b16 %v1629, %v1627
        %v1660 = vpack.c.b16 %v1630, %v1628
        %v1661 = vpack.c.b16 %v1633, %v1631
        %v1662 = vpack.c.b16 %v1634, %v1632
        %v1663 = vpack.c.b16 %v1637, %v1635
        %v1664 = vpack.c.b16 %v1638, %v1636
        %v1665 = vpack.c.b16 %v1641, %v1639
        %v1666 = vpack.c.b16 %v1642, %v1640
        %v1667 = vpack.c.b16 %v1645, %v1643
        %v1668 = vpack.c.b16 %v1646, %v1644
        %v1669 = vpack.c.b16 %v1649, %v1647
        %v1670 = vpack.c.b16 %v1650, %v1648
        %v1671 = vpack.c.b16 %v1653, %v1651
        %v1672 = vpack.c.b16 %v1654, %v1652
        %v1673 = vpack.c.b16 %v1657, %v1655
        %v1674 = vpack.c.b16 %v1658, %v1656
        %1691 = vmatprep.subr.bf16.mxu0 %v1660
        %1692 = vmatpush1.bf16.msra.mxu0 %v1659
        %1693 = vmatprep.subr.bf16.mxu0 %v1662
        %1694 = vmatpush1.bf16.msra.mxu0 %v1661
        %1695 = vmatprep.subr.bf16.mxu0 %v1664
        %1696 = vmatpush1.bf16.msra.mxu0 %v1663
        %1697 = vmatprep.subr.bf16.mxu0 %v1666
        %1698 = vmatpush1.bf16.msra.mxu0 %v1665
        %1699 = vmatprep.subr.bf16.mxu0 %v1668
        %1700 = vmatpush1.bf16.msra.mxu0 %v1667
        %1701 = vmatprep.subr.bf16.mxu0 %v1670
        %1702 = vmatpush1.bf16.msra.mxu0 %v1669
        %1703 = vmatprep.subr.bf16.mxu0 %v1672
        %1704 = vmatpush1.bf16.msra.mxu0 %v1671
        %1705 = vmatprep.subr.bf16.mxu0 %v1674
        %1706 = vmatpush1.bf16.msra.mxu0 %v1673
        %1707 = vmatprep.subr.bf16.mxu0 0
        %1708 = vmatpush1.bf16.msra.mxu0 0
        %1709 = vmatprep.subr.bf16.mxu0 0
        %1710 = vmatpush1.bf16.msra.mxu0 0
        %1711 = vmatprep.subr.bf16.mxu0 0
        %1712 = vmatpush1.bf16.msra.mxu0 0
        %1713 = vmatprep.subr.bf16.mxu0 0
        %1714 = vmatpush1.bf16.msra.mxu0 0
        %1715 = vmatprep.subr.bf16.mxu0 0
        %1716 = vmatpush1.bf16.msra.mxu0 0
        %1717 = vmatprep.subr.bf16.mxu0 0
        %1718 = vmatpush1.bf16.msra.mxu0 0
        %1719 = vmatprep.subr.bf16.mxu0 0
        %1720 = vmatpush1.bf16.msra.mxu0 0
        %1721 = vmatprep.subr.bf16.mxu0 0
        %1722 = vmatpush1.bf16.msra.mxu0 0
        %1723 = vmatprep.mubr.bf16.mxu0 0
        %1724 = vmatmul.mubr.bf16.gmra.mrb[0].mxu0 %v1528
        %v1725 = vpop.f32.mrb[0].mxu0
        %v1726 = vadd.f32 0.0, %v1725
        %v1727 = vpop.f32.mrb[0].mxu0
        %v1728 = vadd.f32 0.0, %v1727
        %v1729 = vpop.f32.mrb[0].mxu0
        %v1730 = vadd.f32 0.0, %v1729
        %v1731 = vpop.f32.mrb[0].mxu0
        %v1732 = vadd.f32 0.0, %v1731
        %1733 = vmatprep.mubr.bf16.mxu0 0
        %1734 = vmatmul.mubr.bf16.gmra.mrb[0].mxu0 %v1529
        %v1735 = vpop.f32.mrb[0].mxu0
        %v1736 = vadd.f32 0.0, %v1735
        %v1737 = vpop.f32.mrb[0].mxu0
        %v1738 = vadd.f32 0.0, %v1737
        %v1739 = vpop.f32.mrb[0].mxu0
        %v1740 = vadd.f32 0.0, %v1739
        %v1741 = vpop.f32.mrb[0].mxu0
        %v1742 = vadd.f32 0.0, %v1741
        %1743 = vmatprep.mubr.bf16.mxu0 0
        %1744 = vmatmul.mubr.bf16.gmra.mrb[0].mxu0 %v1530
        %v1745 = vpop.f32.mrb[0].mxu0
        %v1746 = vadd.f32 0.0, %v1745
        %v1747 = vpop.f32.mrb[0].mxu0
        %v1748 = vadd.f32 0.0, %v1747
        %v1749 = vpop.f32.mrb[0].mxu0
        %v1750 = vadd.f32 0.0, %v1749
        %v1751 = vpop.f32.mrb[0].mxu0
        %v1752 = vadd.f32 0.0, %v1751
        %1753 = vmatprep.mubr.bf16.mxu0 0
        %1754 = vmatmul.mubr.bf16.gmra.mrb[0].mxu0 %v1531
        %v1755 = vpop.f32.mrb[0].mxu0
        %v1756 = vadd.f32 0.0, %v1755
        %v1757 = vpop.f32.mrb[0].mxu0
        %v1758 = vadd.f32 0.0, %v1757
        %v1759 = vpop.f32.mrb[0].mxu0
        %v1760 = vadd.f32 0.0, %v1759
        %v1761 = vpop.f32.mrb[0].mxu0
        %v1762 = vadd.f32 0.0, %v1761
        %1763 = vmatprep.mubr.bf16.mxu0 0
        %1764 = vmatmul.mubr.bf16.gmra.mrb[0].mxu0 %v1532
        %v1765 = vpop.f32.mrb[0].mxu0
        %v1766 = vadd.f32 0.0, %v1765
        %v1767 = vpop.f32.mrb[0].mxu0
        %v1768 = vadd.f32 0.0, %v1767
        %v1769 = vpop.f32.mrb[0].mxu0
        %v1770 = vadd.f32 0.0, %v1769
        %v1771 = vpop.f32.mrb[0].mxu0
        %v1772 = vadd.f32 0.0, %v1771
        %1773 = vmatprep.mubr.bf16.mxu0 0
        %1774 = vmatmul.mubr.bf16.gmra.mrb[0].mxu0 %v1533
        %v1775 = vpop.f32.mrb[0].mxu0
        %v1776 = vadd.f32 0.0, %v1775
        %v1777 = vpop.f32.mrb[0].mxu0
        %v1778 = vadd.f32 0.0, %v1777
        %v1779 = vpop.f32.mrb[0].mxu0
        %v1780 = vadd.f32 0.0, %v1779
        %v1781 = vpop.f32.mrb[0].mxu0
        %v1782 = vadd.f32 0.0, %v1781
        %1783 = vmatprep.mubr.bf16.mxu0 0
        %1784 = vmatmul.mubr.bf16.gmra.mrb[0].mxu0 %v1534
        %v1785 = vpop.f32.mrb[0].mxu0
        %v1786 = vadd.f32 0.0, %v1785
        %v1787 = vpop.f32.mrb[0].mxu0
        %v1788 = vadd.f32 0.0, %v1787
        %v1789 = vpop.f32.mrb[0].mxu0
        %v1790 = vadd.f32 0.0, %v1789
        %v1791 = vpop.f32.mrb[0].mxu0
        %v1792 = vadd.f32 0.0, %v1791
        %1793 = vmatprep.mubr.bf16.mxu0 0
        %1794 = vmatmul.mubr.bf16.gmra.mrb[0].mxu0 %v1535
        %v1795 = vpop.f32.mrb[0].mxu0
        %v1796 = vadd.f32 0.0, %v1795
        %v1797 = vpop.f32.mrb[0].mxu0
        %v1798 = vadd.f32 0.0, %v1797
        %v1799 = vpop.f32.mrb[0].mxu0
        %v1800 = vadd.f32 0.0, %v1799
        %v1801 = vpop.f32.mrb[0].mxu0
        %v1802 = vadd.f32 0.0, %v1801
        %1803 = vdwg.mxu0
        %v1820 = vunpack.c.l.b16 %v1579
        %v1821 = vunpack.c.h.b16 %v1579
        %v1822 = vunpack.c.l.b16 %v1580
        %v1823 = vunpack.c.h.b16 %v1580
        %v1824 = vunpack.c.l.b16 %v1581
        %v1825 = vunpack.c.h.b16 %v1581
        %v1826 = vunpack.c.l.b16 %v1582
        %v1827 = vunpack.c.h.b16 %v1582
        %v1828 = vunpack.c.l.b16 %v1583
        %v1829 = vunpack.c.h.b16 %v1583
        %v1830 = vunpack.c.l.b16 %v1584
        %v1831 = vunpack.c.h.b16 %v1584
        %v1832 = vunpack.c.l.b16 %v1585
        %v1833 = vunpack.c.h.b16 %v1585
        %v1834 = vunpack.c.l.b16 %v1586
        %v1835 = vunpack.c.h.b16 %v1586
        %v1836 = vunpack.c.l.b16 %v1587
        %v1837 = vunpack.c.h.b16 %v1587
        %v1838 = vunpack.c.l.b16 %v1588
        %v1839 = vunpack.c.h.b16 %v1588
        %v1840 = vunpack.c.l.b16 %v1589
        %v1841 = vunpack.c.h.b16 %v1589
        %v1842 = vunpack.c.l.b16 %v1590
        %v1843 = vunpack.c.h.b16 %v1590
        %v1844 = vunpack.c.l.b16 %v1591
        %v1845 = vunpack.c.h.b16 %v1591
        %v1846 = vunpack.c.l.b16 %v1592
        %v1847 = vunpack.c.h.b16 %v1592
        %v1848 = vunpack.c.l.b16 %v1593
        %v1849 = vunpack.c.h.b16 %v1593
        %v1850 = vunpack.c.l.b16 %v1594
        %v1851 = vunpack.c.h.b16 %v1594
        %v1852 = vpack.c.b16 %v1822, %v1820
        %v1853 = vpack.c.b16 %v1823, %v1821
        %v1854 = vpack.c.b16 %v1826, %v1824
        %v1855 = vpack.c.b16 %v1827, %v1825
        %v1856 = vpack.c.b16 %v1830, %v1828
        %v1857 = vpack.c.b16 %v1831, %v1829
        %v1858 = vpack.c.b16 %v1834, %v1832
        %v1859 = vpack.c.b16 %v1835, %v1833
        %v1860 = vpack.c.b16 %v1838, %v1836
        %v1861 = vpack.c.b16 %v1839, %v1837
        %v1862 = vpack.c.b16 %v1842, %v1840
        %v1863 = vpack.c.b16 %v1843, %v1841
        %v1864 = vpack.c.b16 %v1846, %v1844
        %v1865 = vpack.c.b16 %v1847, %v1845
        %v1866 = vpack.c.b16 %v1850, %v1848
        %v1867 = vpack.c.b16 %v1851, %v1849
        %1884 = vmatprep.subr.bf16.mxu0 %v1853
        %1885 = vmatpush1.bf16.msra.mxu0 %v1852
        %1886 = vmatprep.subr.bf16.mxu0 %v1855
        %1887 = vmatpush1.bf16.msra.mxu0 %v1854
        %1888 = vmatprep.subr.bf16.mxu0 %v1857
        %1889 = vmatpush1.bf16.msra.mxu0 %v1856
        %1890 = vmatprep.subr.bf16.mxu0 %v1859
        %1891 = vmatpush1.bf16.msra.mxu0 %v1858
        %1892 = vmatprep.subr.bf16.mxu0 %v1861
        %1893 = vmatpush1.bf16.msra.mxu0 %v1860
        %1894 = vmatprep.subr.bf16.mxu0 %v1863
        %1895 = vmatpush1.bf16.msra.mxu0 %v1862
        %1896 = vmatprep.subr.bf16.mxu0 %v1865
        %1897 = vmatpush1.bf16.msra.mxu0 %v1864
        %1898 = vmatprep.subr.bf16.mxu0 %v1867
        %1899 = vmatpush1.bf16.msra.mxu0 %v1866
        %1900 = vmatprep.subr.bf16.mxu0 0
        %1901 = vmatpush1.bf16.msra.mxu0 0
        %1902 = vmatprep.subr.bf16.mxu0 0
        %1903 = vmatpush1.bf16.msra.mxu0 0
        %1904 = vmatprep.subr.bf16.mxu0 0
        %1905 = vmatpush1.bf16.msra.mxu0 0
        %1906 = vmatprep.subr.bf16.mxu0 0
        %1907 = vmatpush1.bf16.msra.mxu0 0
        %1908 = vmatprep.subr.bf16.mxu0 0
        %1909 = vmatpush1.bf16.msra.mxu0 0
        %1910 = vmatprep.subr.bf16.mxu0 0
        %1911 = vmatpush1.bf16.msra.mxu0 0
        %1912 = vmatprep.subr.bf16.mxu0 0
        %1913 = vmatpush1.bf16.msra.mxu0 0
        %1914 = vmatprep.subr.bf16.mxu0 0
        %1915 = vmatpush1.bf16.msra.mxu0 0
        %1916 = vmatprep.mubr.bf16.mxu0 0
        %1917 = vmatmul.mubr.bf16.gmra.mrb[0].mxu0 %v1445
        %v1918 = vpop.f32.mrb[0].mxu0
        %v1919 = vadd.f32 %v1726, %v1918
        %v1920 = vpop.f32.mrb[0].mxu0
        %v1921 = vadd.f32 %v1728, %v1920
        %v1922 = vpop.f32.mrb[0].mxu0
        %v1923 = vadd.f32 %v1730, %v1922
        %v1924 = vpop.f32.mrb[0].mxu0
        %v1925 = vadd.f32 %v1732, %v1924
        %1926 = vmatprep.mubr.bf16.mxu0 0
        %1927 = vmatmul.mubr.bf16.gmra.mrb[0].mxu0 %v1446
        %v1928 = vpop.f32.mrb[0].mxu0
        %v1929 = vadd.f32 %v1736, %v1928
        %v1930 = vpop.f32.mrb[0].mxu0
        %v1931 = vadd.f32 %v1738, %v1930
        %v1932 = vpop.f32.mrb[0].mxu0
        %v1933 = vadd.f32 %v1740, %v1932
        %v1934 = vpop.f32.mrb[0].mxu0
        %v1935 = vadd.f32 %v1742, %v1934
        %1936 = vmatprep.mubr.bf16.mxu0 0
        %1937 = vmatmul.mubr.bf16.gmra.mrb[0].mxu0 %v1447
        %v1938 = vpop.f32.mrb[0].mxu0
        %v1939 = vadd.f32 %v1746, %v1938
        %v1940 = vpop.f32.mrb[0].mxu0
        %v1941 = vadd.f32 %v1748, %v1940
        %v1942 = vpop.f32.mrb[0].mxu0
        %v1943 = vadd.f32 %v1750, %v1942
        %v1944 = vpop.f32.mrb[0].mxu0
        %v1945 = vadd.f32 %v1752, %v1944
        %1946 = vmatprep.mubr.bf16.mxu0 0
        %1947 = vmatmul.mubr.bf16.gmra.mrb[0].mxu0 %v1448
        %v1948 = vpop.f32.mrb[0].mxu0
        %v1949 = vadd.f32 %v1756, %v1948
        %v1950 = vpop.f32.mrb[0].mxu0
        %v1951 = vadd.f32 %v1758, %v1950
        %v1952 = vpop.f32.mrb[0].mxu0
        %v1953 = vadd.f32 %v1760, %v1952
        %v1954 = vpop.f32.mrb[0].mxu0
        %v1955 = vadd.f32 %v1762, %v1954
        %1956 = vmatprep.mubr.bf16.mxu0 0
        %1957 = vmatmul.mubr.bf16.gmra.mrb[0].mxu0 %v1449
        %v1958 = vpop.f32.mrb[0].mxu0
        %v1959 = vadd.f32 %v1766, %v1958
        %v1960 = vpop.f32.mrb[0].mxu0
        %v1961 = vadd.f32 %v1768, %v1960
        %v1962 = vpop.f32.mrb[0].mxu0
        %v1963 = vadd.f32 %v1770, %v1962
        %v1964 = vpop.f32.mrb[0].mxu0
        %v1965 = vadd.f32 %v1772, %v1964
        %1966 = vmatprep.mubr.bf16.mxu0 0
        %1967 = vmatmul.mubr.bf16.gmra.mrb[0].mxu0 %v1450
        %v1968 = vpop.f32.mrb[0].mxu0
        %v1969 = vadd.f32 %v1776, %v1968
        %v1970 = vpop.f32.mrb[0].mxu0
        %v1971 = vadd.f32 %v1778, %v1970
        %v1972 = vpop.f32.mrb[0].mxu0
        %v1973 = vadd.f32 %v1780, %v1972
        %v1974 = vpop.f32.mrb[0].mxu0
        %v1975 = vadd.f32 %v1782, %v1974
        %1976 = vmatprep.mubr.bf16.mxu0 0
        %1977 = vmatmul.mubr.bf16.gmra.mrb[0].mxu0 %v1451
        %v1978 = vpop.f32.mrb[0].mxu0
        %v1979 = vadd.f32 %v1786, %v1978
        %v1980 = vpop.f32.mrb[0].mxu0
        %v1981 = vadd.f32 %v1788, %v1980
        %v1982 = vpop.f32.mrb[0].mxu0
        %v1983 = vadd.f32 %v1790, %v1982
        %v1984 = vpop.f32.mrb[0].mxu0
        %v1985 = vadd.f32 %v1792, %v1984
        %1986 = vmatprep.mubr.bf16.mxu0 0
        %1987 = vmatmul.mubr.bf16.gmra.mrb[0].mxu0 %v1452
        %v1988 = vpop.f32.mrb[0].mxu0
        %v1989 = vadd.f32 %v1796, %v1988
        %v1990 = vpop.f32.mrb[0].mxu0
        %v1991 = vadd.f32 %v1798, %v1990
        %v1992 = vpop.f32.mrb[0].mxu0
        %v1993 = vadd.f32 %v1800, %v1992
        %v1994 = vpop.f32.mrb[0].mxu0
        %v1995 = vadd.f32 %v1802, %v1994
        %1996 = vdwg.mxu0
        %v1997 = vld [vmem:[#allocation7] sm:$0xff]
        %v1998 = vld [vmem:[#allocation7 + $0x8] sm:$0xff]
        %v1999 = vld [vmem:[#allocation7 + $0x10] sm:$0xff]
        %v2000 = vld [vmem:[#allocation7 + $0x18] sm:$0xff]
        %v2001 = vld [vmem:[#allocation7 + $0x20] sm:$0xff]
        %v2002 = vld [vmem:[#allocation7 + $0x28] sm:$0xff]
        %v2003 = vld [vmem:[#allocation7 + $0x30] sm:$0xff]
        %v2004 = vld [vmem:[#allocation7 + $0x38] sm:$0xff]
        %v2005 = vld [vmem:[#allocation7 + $0x40] sm:$0xff]
        %v2006 = vld [vmem:[#allocation7 + $0x48] sm:$0xff]
        %v2007 = vld [vmem:[#allocation7 + $0x50] sm:$0xff]
        %v2008 = vld [vmem:[#allocation7 + $0x58] sm:$0xff]
        %v2009 = vld [vmem:[#allocation7 + $0x60] sm:$0xff]
        %v2010 = vld [vmem:[#allocation7 + $0x68] sm:$0xff]
        %v2011 = vld [vmem:[#allocation7 + $0x70] sm:$0xff]
        %v2012 = vld [vmem:[#allocation7 + $0x78] sm:$0xff]
        %v2029 = vunpack.c.l.b16 %v1997
        %v2030 = vunpack.c.h.b16 %v1997
        %v2031 = vunpack.c.l.b16 %v1998
        %v2032 = vunpack.c.h.b16 %v1998
        %v2033 = vunpack.c.l.b16 %v1999
        %v2034 = vunpack.c.h.b16 %v1999
        %v2035 = vunpack.c.l.b16 %v2000
        %v2036 = vunpack.c.h.b16 %v2000
        %v2037 = vunpack.c.l.b16 %v2001
        %v2038 = vunpack.c.h.b16 %v2001
        %v2039 = vunpack.c.l.b16 %v2002
        %v2040 = vunpack.c.h.b16 %v2002
        %v2041 = vunpack.c.l.b16 %v2003
        %v2042 = vunpack.c.h.b16 %v2003
        %v2043 = vunpack.c.l.b16 %v2004
        %v2044 = vunpack.c.h.b16 %v2004
        %v2045 = vunpack.c.l.b16 %v2005
        %v2046 = vunpack.c.h.b16 %v2005
        %v2047 = vunpack.c.l.b16 %v2006
        %v2048 = vunpack.c.h.b16 %v2006
        %v2049 = vunpack.c.l.b16 %v2007
        %v2050 = vunpack.c.h.b16 %v2007
        %v2051 = vunpack.c.l.b16 %v2008
        %v2052 = vunpack.c.h.b16 %v2008
        %v2053 = vunpack.c.l.b16 %v2009
        %v2054 = vunpack.c.h.b16 %v2009
        %v2055 = vunpack.c.l.b16 %v2010
        %v2056 = vunpack.c.h.b16 %v2010
        %v2057 = vunpack.c.l.b16 %v2011
        %v2058 = vunpack.c.h.b16 %v2011
        %v2059 = vunpack.c.l.b16 %v2012
        %v2060 = vunpack.c.h.b16 %v2012
        %v2061 = vpack.c.b16 %v2031, %v2029
        %v2062 = vpack.c.b16 %v2032, %v2030
        %v2063 = vpack.c.b16 %v2035, %v2033
        %v2064 = vpack.c.b16 %v2036, %v2034
        %v2065 = vpack.c.b16 %v2039, %v2037
        %v2066 = vpack.c.b16 %v2040, %v2038
        %v2067 = vpack.c.b16 %v2043, %v2041
        %v2068 = vpack.c.b16 %v2044, %v2042
        %v2069 = vpack.c.b16 %v2047, %v2045
        %v2070 = vpack.c.b16 %v2048, %v2046
        %v2071 = vpack.c.b16 %v2051, %v2049
        %v2072 = vpack.c.b16 %v2052, %v2050
        %v2073 = vpack.c.b16 %v2055, %v2053
        %v2074 = vpack.c.b16 %v2056, %v2054
        %v2075 = vpack.c.b16 %v2059, %v2057
        %v2076 = vpack.c.b16 %v2060, %v2058
        %2093 = vmatprep.subr.bf16.mxu0 %v2062
        %2094 = vmatpush1.bf16.msra.mxu0 %v2061
        %2095 = vmatprep.subr.bf16.mxu0 %v2064
        %2096 = vmatpush1.bf16.msra.mxu0 %v2063
        %2097 = vmatprep.subr.bf16.mxu0 %v2066
        %2098 = vmatpush1.bf16.msra.mxu0 %v2065
        %2099 = vmatprep.subr.bf16.mxu0 %v2068
        %2100 = vmatpush1.bf16.msra.mxu0 %v2067
        %2101 = vmatprep.subr.bf16.mxu0 %v2070
        %2102 = vmatpush1.bf16.msra.mxu0 %v2069
        %2103 = vmatprep.subr.bf16.mxu0 %v2072
        %2104 = vmatpush1.bf16.msra.mxu0 %v2071
        %2105 = vmatprep.subr.bf16.mxu0 %v2074
        %2106 = vmatpush1.bf16.msra.mxu0 %v2073
        %2107 = vmatprep.subr.bf16.mxu0 %v2076
        %2108 = vmatpush1.bf16.msra.mxu0 %v2075
        %2109 = vmatprep.subr.bf16.mxu0 0
        %2110 = vmatpush1.bf16.msra.mxu0 0
        %2111 = vmatprep.subr.bf16.mxu0 0
        %2112 = vmatpush1.bf16.msra.mxu0 0
        %2113 = vmatprep.subr.bf16.mxu0 0
        %2114 = vmatpush1.bf16.msra.mxu0 0
        %2115 = vmatprep.subr.bf16.mxu0 0
        %2116 = vmatpush1.bf16.msra.mxu0 0
        %2117 = vmatprep.subr.bf16.mxu0 0
        %2118 = vmatpush1.bf16.msra.mxu0 0
        %2119 = vmatprep.subr.bf16.mxu0 0
        %2120 = vmatpush1.bf16.msra.mxu0 0
        %2121 = vmatprep.subr.bf16.mxu0 0
        %2122 = vmatpush1.bf16.msra.mxu0 0
        %2123 = vmatprep.subr.bf16.mxu0 0
        %2124 = vmatpush1.bf16.msra.mxu0 0
        %2125 = vmatprep.mubr.bf16.mxu0 0
        %2126 = vmatmul.mubr.bf16.gmra.mrb[0].mxu0 %v1571
        %v2127 = vpop.f32.mrb[0].mxu0
        %v2128 = vadd.f32 0.0, %v2127
        %v2129 = vpop.f32.mrb[0].mxu0
        %v2130 = vadd.f32 0.0, %v2129
        %v2131 = vpop.f32.mrb[0].mxu0
        %v2132 = vadd.f32 0.0, %v2131
        %v2133 = vpop.f32.mrb[0].mxu0
        %v2134 = vadd.f32 0.0, %v2133
        %2135 = vmatprep.mubr.bf16.mxu0 0
        %2136 = vmatmul.mubr.bf16.gmra.mrb[0].mxu0 %v1572
        %v2137 = vpop.f32.mrb[0].mxu0
        %v2138 = vadd.f32 0.0, %v2137
        %v2139 = vpop.f32.mrb[0].mxu0
        %v2140 = vadd.f32 0.0, %v2139
        %v2141 = vpop.f32.mrb[0].mxu0
        %v2142 = vadd.f32 0.0, %v2141
        %v2143 = vpop.f32.mrb[0].mxu0
        %v2144 = vadd.f32 0.0, %v2143
        %2145 = vmatprep.mubr.bf16.mxu0 0
        %2146 = vmatmul.mubr.bf16.gmra.mrb[0].mxu0 %v1573
        %v2147 = vpop.f32.mrb[0].mxu0
        %v2148 = vadd.f32 0.0, %v2147
        %v2149 = vpop.f32.mrb[0].mxu0
        %v2150 = vadd.f32 0.0, %v2149
        %v2151 = vpop.f32.mrb[0].mxu0
        %v2152 = vadd.f32 0.0, %v2151
        %v2153 = vpop.f32.mrb[0].mxu0
        %v2154 = vadd.f32 0.0, %v2153
        %2155 = vmatprep.mubr.bf16.mxu0 0
        %2156 = vmatmul.mubr.bf16.gmra.mrb[0].mxu0 %v1574
        %v2157 = vpop.f32.mrb[0].mxu0
        %v2158 = vadd.f32 0.0, %v2157
        %v2159 = vpop.f32.mrb[0].mxu0
        %v2160 = vadd.f32 0.0, %v2159
        %v2161 = vpop.f32.mrb[0].mxu0
        %v2162 = vadd.f32 0.0, %v2161
        %v2163 = vpop.f32.mrb[0].mxu0
        %v2164 = vadd.f32 0.0, %v2163
        %2165 = vmatprep.mubr.bf16.mxu0 0
        %2166 = vmatmul.mubr.bf16.gmra.mrb[0].mxu0 %v1575
        %v2167 = vpop.f32.mrb[0].mxu0
        %v2168 = vadd.f32 0.0, %v2167
        %v2169 = vpop.f32.mrb[0].mxu0
        %v2170 = vadd.f32 0.0, %v2169
        %v2171 = vpop.f32.mrb[0].mxu0
        %v2172 = vadd.f32 0.0, %v2171
        %v2173 = vpop.f32.mrb[0].mxu0
        %v2174 = vadd.f32 0.0, %v2173
        %2175 = vmatprep.mubr.bf16.mxu0 0
        %2176 = vmatmul.mubr.bf16.gmra.mrb[0].mxu0 %v1576
        %v2177 = vpop.f32.mrb[0].mxu0
        %v2178 = vadd.f32 0.0, %v2177
        %v2179 = vpop.f32.mrb[0].mxu0
        %v2180 = vadd.f32 0.0, %v2179
        %v2181 = vpop.f32.mrb[0].mxu0
        %v2182 = vadd.f32 0.0, %v2181
        %v2183 = vpop.f32.mrb[0].mxu0
        %v2184 = vadd.f32 0.0, %v2183
        %2185 = vmatprep.mubr.bf16.mxu0 0
        %2186 = vmatmul.mubr.bf16.gmra.mrb[0].mxu0 %v1577
        %v2187 = vpop.f32.mrb[0].mxu0
        %v2188 = vadd.f32 0.0, %v2187
        %v2189 = vpop.f32.mrb[0].mxu0
        %v2190 = vadd.f32 0.0, %v2189
        %v2191 = vpop.f32.mrb[0].mxu0
        %v2192 = vadd.f32 0.0, %v2191
        %v2193 = vpop.f32.mrb[0].mxu0
        %v2194 = vadd.f32 0.0, %v2193
        %2195 = vmatprep.mubr.bf16.mxu0 0
        %2196 = vmatmul.mubr.bf16.gmra.mrb[0].mxu0 %v1578
        %v2197 = vpop.f32.mrb[0].mxu0
        %v2198 = vadd.f32 0.0, %v2197
        %v2199 = vpop.f32.mrb[0].mxu0
        %v2200 = vadd.f32 0.0, %v2199
        %v2201 = vpop.f32.mrb[0].mxu0
        %v2202 = vadd.f32 0.0, %v2201
        %v2203 = vpop.f32.mrb[0].mxu0
        %v2204 = vadd.f32 0.0, %v2203
        %2205 = vdwg.mxu0
        %v2206 = vadd.f32 %v1919, %v2128
        %v2207 = vadd.f32 %v1921, %v2130
        %v2208 = vadd.f32 %v1923, %v2132
        %v2209 = vadd.f32 %v1925, %v2134
        %v2210 = vadd.f32 %v1929, %v2138
        %v2211 = vadd.f32 %v1931, %v2140
        %v2212 = vadd.f32 %v1933, %v2142
        %v2213 = vadd.f32 %v1935, %v2144
        %v2214 = vadd.f32 %v1939, %v2148
        %v2215 = vadd.f32 %v1941, %v2150
        %v2216 = vadd.f32 %v1943, %v2152
        %v2217 = vadd.f32 %v1945, %v2154
        %v2218 = vadd.f32 %v1949, %v2158
        %v2219 = vadd.f32 %v1951, %v2160
        %v2220 = vadd.f32 %v1953, %v2162
        %v2221 = vadd.f32 %v1955, %v2164
        %v2222 = vadd.f32 %v1959, %v2168
        %v2223 = vadd.f32 %v1961, %v2170
        %v2224 = vadd.f32 %v1963, %v2172
        %v2225 = vadd.f32 %v1965, %v2174
        %v2226 = vadd.f32 %v1969, %v2178
        %v2227 = vadd.f32 %v1971, %v2180
        %v2228 = vadd.f32 %v1973, %v2182
        %v2229 = vadd.f32 %v1975, %v2184
        %v2230 = vadd.f32 %v1979, %v2188
        %v2231 = vadd.f32 %v1981, %v2190
        %v2232 = vadd.f32 %v1983, %v2192
        %v2233 = vadd.f32 %v1985, %v2194
        %v2234 = vadd.f32 %v1989, %v2198
        %v2235 = vadd.f32 %v1991, %v2200
        %v2236 = vadd.f32 %v1993, %v2202
        %v2237 = vadd.f32 %v1995, %v2204
        %v2238 = vld [vmem:[%s8] sm:$0x3]
        %v2240 = vlaneseq
        %v2241 = vshrl.u32 %v2240, 7
        %v2242 = vsub.s32 0, %v2241
        %v2243 = vrot.slane %v2238, %v2242
        %v2244 = vlaneseq
        %v2245 = vshrl.u32 %v2244, 7
        %v2246 = vsub.s32 1, %v2245
        %v2247 = vrot.slane %v2238, %v2246
        %v2250 = vadd.f32 %v2206, %v2243
        %v2251 = vadd.f32 %v2207, %v2247
        %v2252 = vadd.f32 %v2208, %v2243
        %v2253 = vadd.f32 %v2209, %v2247
        %v2254 = vadd.f32 %v2210, %v2243
        %v2255 = vadd.f32 %v2211, %v2247
        %v2256 = vadd.f32 %v2212, %v2243
        %v2257 = vadd.f32 %v2213, %v2247
        %v2258 = vadd.f32 %v2214, %v2243
        %v2259 = vadd.f32 %v2215, %v2247
        %v2260 = vadd.f32 %v2216, %v2243
        %v2261 = vadd.f32 %v2217, %v2247
        %v2262 = vadd.f32 %v2218, %v2243
        %v2263 = vadd.f32 %v2219, %v2247
        %v2264 = vadd.f32 %v2220, %v2243
        %v2265 = vadd.f32 %v2221, %v2247
        %v2266 = vadd.f32 %v2222, %v2243
        %v2267 = vadd.f32 %v2223, %v2247
        %v2268 = vadd.f32 %v2224, %v2243
        %v2269 = vadd.f32 %v2225, %v2247
        %v2270 = vadd.f32 %v2226, %v2243
        %v2271 = vadd.f32 %v2227, %v2247
        %v2272 = vadd.f32 %v2228, %v2243
        %v2273 = vadd.f32 %v2229, %v2247
        %v2274 = vadd.f32 %v2230, %v2243
        %v2275 = vadd.f32 %v2231, %v2247
        %v2276 = vadd.f32 %v2232, %v2243
        %v2277 = vadd.f32 %v2233, %v2247
        %v2278 = vadd.f32 %v2234, %v2243
        %v2279 = vadd.f32 %v2235, %v2247
        %v2280 = vadd.f32 %v2236, %v2243
        %v2281 = vadd.f32 %v2237, %v2247
        %v2282 = vadd.f32 %v2250, %v2252
        %v2283 = vrot.slane %v2282, 4
        %v2284 = vadd.f32 %v2282, %v2283
        %v2285 = vrot.slane %v2284, 2
        %v2286 = vadd.f32 %v2284, %v2285
        %v2287 = vrot.slane %v2286, 1
        %v2288 = vadd.f32 %v2286, %v2287
        %v2289 = vadd.f32 %v2251, %v2253
        %v2290 = vrot.slane %v2289, 4
        %v2291 = vadd.f32 %v2289, %v2290
        %v2292 = vrot.slane %v2291, 2
        %v2293 = vadd.f32 %v2291, %v2292
        %v2294 = vrot.slane %v2293, 1
        %v2295 = vadd.f32 %v2293, %v2294
        %v2296 = vadd.f32 %v2254, %v2256
        %v2297 = vrot.slane %v2296, 4
        %v2298 = vadd.f32 %v2296, %v2297
        %v2299 = vrot.slane %v2298, 2
        %v2300 = vadd.f32 %v2298, %v2299
        %v2301 = vrot.slane %v2300, 1
        %v2302 = vadd.f32 %v2300, %v2301
        %v2303 = vadd.f32 %v2255, %v2257
        %v2304 = vrot.slane %v2303, 4
        %v2305 = vadd.f32 %v2303, %v2304
        %v2306 = vrot.slane %v2305, 2
        %v2307 = vadd.f32 %v2305, %v2306
        %v2308 = vrot.slane %v2307, 1
        %v2309 = vadd.f32 %v2307, %v2308
        %v2310 = vadd.f32 %v2258, %v2260
        %v2311 = vrot.slane %v2310, 4
        %v2312 = vadd.f32 %v2310, %v2311
        %v2313 = vrot.slane %v2312, 2
        %v2314 = vadd.f32 %v2312, %v2313
        %v2315 = vrot.slane %v2314, 1
        %v2316 = vadd.f32 %v2314, %v2315
        %v2317 = vadd.f32 %v2259, %v2261
        %v2318 = vrot.slane %v2317, 4
        %v2319 = vadd.f32 %v2317, %v2318
        %v2320 = vrot.slane %v2319, 2
        %v2321 = vadd.f32 %v2319, %v2320
        %v2322 = vrot.slane %v2321, 1
        %v2323 = vadd.f32 %v2321, %v2322
        %v2324 = vadd.f32 %v2262, %v2264
        %v2325 = vrot.slane %v2324, 4
        %v2326 = vadd.f32 %v2324, %v2325
        %v2327 = vrot.slane %v2326, 2
        %v2328 = vadd.f32 %v2326, %v2327
        %v2329 = vrot.slane %v2328, 1
        %v2330 = vadd.f32 %v2328, %v2329
        %v2331 = vadd.f32 %v2263, %v2265
        %v2332 = vrot.slane %v2331, 4
        %v2333 = vadd.f32 %v2331, %v2332
        %v2334 = vrot.slane %v2333, 2
        %v2335 = vadd.f32 %v2333, %v2334
        %v2336 = vrot.slane %v2335, 1
        %v2337 = vadd.f32 %v2335, %v2336
        %v2338 = vadd.f32 %v2266, %v2268
        %v2339 = vrot.slane %v2338, 4
        %v2340 = vadd.f32 %v2338, %v2339
        %v2341 = vrot.slane %v2340, 2
        %v2342 = vadd.f32 %v2340, %v2341
        %v2343 = vrot.slane %v2342, 1
        %v2344 = vadd.f32 %v2342, %v2343
        %v2345 = vadd.f32 %v2267, %v2269
        %v2346 = vrot.slane %v2345, 4
        %v2347 = vadd.f32 %v2345, %v2346
        %v2348 = vrot.slane %v2347, 2
        %v2349 = vadd.f32 %v2347, %v2348
        %v2350 = vrot.slane %v2349, 1
        %v2351 = vadd.f32 %v2349, %v2350
        %v2352 = vadd.f32 %v2270, %v2272
        %v2353 = vrot.slane %v2352, 4
        %v2354 = vadd.f32 %v2352, %v2353
        %v2355 = vrot.slane %v2354, 2
        %v2356 = vadd.f32 %v2354, %v2355
        %v2357 = vrot.slane %v2356, 1
        %v2358 = vadd.f32 %v2356, %v2357
        %v2359 = vadd.f32 %v2271, %v2273
        %v2360 = vrot.slane %v2359, 4
        %v2361 = vadd.f32 %v2359, %v2360
        %v2362 = vrot.slane %v2361, 2
        %v2363 = vadd.f32 %v2361, %v2362
        %v2364 = vrot.slane %v2363, 1
        %v2365 = vadd.f32 %v2363, %v2364
        %v2366 = vadd.f32 %v2274, %v2276
        %v2367 = vrot.slane %v2366, 4
        %v2368 = vadd.f32 %v2366, %v2367
        %v2369 = vrot.slane %v2368, 2
        %v2370 = vadd.f32 %v2368, %v2369
        %v2371 = vrot.slane %v2370, 1
        %v2372 = vadd.f32 %v2370, %v2371
        %v2373 = vadd.f32 %v2275, %v2277
        %v2374 = vrot.slane %v2373, 4
        %v2375 = vadd.f32 %v2373, %v2374
        %v2376 = vrot.slane %v2375, 2
        %v2377 = vadd.f32 %v2375, %v2376
        %v2378 = vrot.slane %v2377, 1
        %v2379 = vadd.f32 %v2377, %v2378
        %v2380 = vadd.f32 %v2278, %v2280
        %v2381 = vrot.slane %v2380, 4
        %v2382 = vadd.f32 %v2380, %v2381
        %v2383 = vrot.slane %v2382, 2
        %v2384 = vadd.f32 %v2382, %v2383
        %v2385 = vrot.slane %v2384, 1
        %v2386 = vadd.f32 %v2384, %v2385
        %v2387 = vadd.f32 %v2279, %v2281
        %v2388 = vrot.slane %v2387, 4
        %v2389 = vadd.f32 %v2387, %v2388
        %v2390 = vrot.slane %v2389, 2
        %v2391 = vadd.f32 %v2389, %v2390
        %v2392 = vrot.slane %v2391, 1
        %v2393 = vadd.f32 %v2391, %v2392
        %v2394 = vld [vmem:[%s11] sm:$0xff]
        %v2395 = vld [vmem:[%s11 + $0x8] sm:$0xff]
        %v2396 = vld [vmem:[%s11 + $0x10] sm:$0xff]
        %v2397 = vld [vmem:[%s11 + $0x18] sm:$0xff]
        %v2398 = vld [vmem:[%s11 + $0x20] sm:$0xff]
        %v2399 = vld [vmem:[%s11 + $0x28] sm:$0xff]
        %v2400 = vld [vmem:[%s11 + $0x30] sm:$0xff]
        %v2401 = vld [vmem:[%s11 + $0x38] sm:$0xff]
        %v2402 = vld [vmem:[%s11 + $0x40] sm:$0xff]
        %v2403 = vld [vmem:[%s11 + $0x48] sm:$0xff]
        %v2404 = vld [vmem:[%s11 + $0x50] sm:$0xff]
        %v2405 = vld [vmem:[%s11 + $0x58] sm:$0xff]
        %v2406 = vld [vmem:[%s11 + $0x60] sm:$0xff]
        %v2407 = vld [vmem:[%s11 + $0x68] sm:$0xff]
        %v2408 = vld [vmem:[%s11 + $0x70] sm:$0xff]
        %v2409 = vld [vmem:[%s11 + $0x78] sm:$0xff]
        %v2410 = vld [vmem:[%s11 + $0x80] sm:$0xff]
        %v2411 = vld [vmem:[%s11 + $0x88] sm:$0xff]
        %v2412 = vld [vmem:[%s11 + $0x90] sm:$0xff]
        %v2413 = vld [vmem:[%s11 + $0x98] sm:$0xff]
        %v2414 = vld [vmem:[%s11 + $0xa0] sm:$0xff]
        %v2415 = vld [vmem:[%s11 + $0xa8] sm:$0xff]
        %v2416 = vld [vmem:[%s11 + $0xb0] sm:$0xff]
        %v2417 = vld [vmem:[%s11 + $0xb8] sm:$0xff]
        %v2418 = vld [vmem:[%s11 + $0xc0] sm:$0xff]
        %v2419 = vld [vmem:[%s11 + $0xc8] sm:$0xff]
        %v2420 = vld [vmem:[%s11 + $0xd0] sm:$0xff]
        %v2421 = vld [vmem:[%s11 + $0xd8] sm:$0xff]
        %v2422 = vld [vmem:[%s11 + $0xe0] sm:$0xff]
        %v2423 = vld [vmem:[%s11 + $0xe8] sm:$0xff]
        %v2424 = vld [vmem:[%s11 + $0xf0] sm:$0xff]
        %v2425 = vld [vmem:[%s11 + $0xf8] sm:$0xff]
        %v2442 = vsel %vm694, %v2302, %v2288
        %v2443 = vsel %vm696, %v2316, %v2442
        %v2444 = vsel %vm698, %v2330, %v2443
        %v2445 = vsel %vm700, %v2344, %v2444
        %v2446 = vsel %vm702, %v2358, %v2445
        %v2447 = vsel %vm704, %v2372, %v2446
        %v2448 = vsel %vm706, %v2386, %v2447
        %v2449 = vsel %vm694, %v2309, %v2295
        %v2450 = vsel %vm696, %v2323, %v2449
        %v2451 = vsel %vm698, %v2337, %v2450
        %v2452 = vsel %vm700, %v2351, %v2451
        %v2453 = vsel %vm702, %v2365, %v2452
        %v2454 = vsel %vm704, %v2379, %v2453
        %v2455 = vsel %vm706, %v2393, %v2454
        %2458 = vmatprep.subr.mxu0 0.0
        %2459 = vmatpush1.msra.mxu0 %v2394
        %2460 = vmatprep.subr.mxu0 0.0
        %2461 = vmatpush1.msra.mxu0 %v2395
        %2462 = vmatprep.subr.mxu0 0.0
        %2463 = vmatpush1.msra.mxu0 %v2396
        %2464 = vmatprep.subr.mxu0 0.0
        %2465 = vmatpush1.msra.mxu0 %v2397
        %2466 = vmatprep.subr.mxu0 0.0
        %2467 = vmatpush1.msra.mxu0 %v2398
        %2468 = vmatprep.subr.mxu0 0.0
        %2469 = vmatpush1.msra.mxu0 %v2399
        %2470 = vmatprep.subr.mxu0 0.0
        %2471 = vmatpush1.msra.mxu0 %v2400
        %2472 = vmatprep.subr.mxu0 0.0
        %2473 = vmatpush1.msra.mxu0 %v2401
        %2474 = vmatprep.subr.mxu0 0.0
        %2475 = vmatpush1.msra.mxu0 %v2402
        %2476 = vmatprep.subr.mxu0 0.0
        %2477 = vmatpush1.msra.mxu0 %v2403
        %2478 = vmatprep.subr.mxu0 0.0
        %2479 = vmatpush1.msra.mxu0 %v2404
        %2480 = vmatprep.subr.mxu0 0.0
        %2481 = vmatpush1.msra.mxu0 %v2405
        %2482 = vmatprep.subr.mxu0 0.0
        %2483 = vmatpush1.msra.mxu0 %v2406
        %2484 = vmatprep.subr.mxu0 0.0
        %2485 = vmatpush1.msra.mxu0 %v2407
        %2486 = vmatprep.subr.mxu0 0.0
        %2487 = vmatpush1.msra.mxu0 %v2408
        %2488 = vmatprep.subr.mxu0 0.0
        %2489 = vmatpush1.msra.mxu0 %v2409
        %2490 = vmatprep.subr.mxu0 0.0
        %2491 = vmatpush1.msra.mxu0 %v2410
        %2492 = vmatprep.subr.mxu0 0.0
        %2493 = vmatpush1.msra.mxu0 %v2411
        %2494 = vmatprep.subr.mxu0 0.0
        %2495 = vmatpush1.msra.mxu0 %v2412
        %2496 = vmatprep.subr.mxu0 0.0
        %2497 = vmatpush1.msra.mxu0 %v2413
        %2498 = vmatprep.subr.mxu0 0.0
        %2499 = vmatpush1.msra.mxu0 %v2414
        %2500 = vmatprep.subr.mxu0 0.0
        %2501 = vmatpush1.msra.mxu0 %v2415
        %2502 = vmatprep.subr.mxu0 0.0
        %2503 = vmatpush1.msra.mxu0 %v2416
        %2504 = vmatprep.subr.mxu0 0.0
        %2505 = vmatpush1.msra.mxu0 %v2417
        %2506 = vmatprep.subr.mxu0 0.0
        %2507 = vmatpush1.msra.mxu0 %v2418
        %2508 = vmatprep.subr.mxu0 0.0
        %2509 = vmatpush1.msra.mxu0 %v2419
        %2510 = vmatprep.subr.mxu0 0.0
        %2511 = vmatpush1.msra.mxu0 %v2420
        %2512 = vmatprep.subr.mxu0 0.0
        %2513 = vmatpush1.msra.mxu0 %v2421
        %2514 = vmatprep.subr.mxu0 0.0
        %2515 = vmatpush1.msra.mxu0 %v2422
        %2516 = vmatprep.subr.mxu0 0.0
        %2517 = vmatpush1.msra.mxu0 %v2423
        %2518 = vmatprep.subr.mxu0 0.0
        %2519 = vmatpush1.msra.mxu0 %v2424
        %2520 = vmatprep.subr.mxu0 0.0
        %2521 = vmatpush1.msra.mxu0 %v2425
        %2522 = vmatprep.mubr.f32.mxu0 %v2455
        %2523 = vmatmul.mubr.f32.gmra.mrb[0].mxu0 %v2448
        %v2524 = vpop.f32.mrb[0].mxu0
        %v2525 = vadd.f32 0.0, %v2524
        %v2526 = vpop.f32.mrb[0].mxu0
        %2527 = vdwg.mxu0
        %v2528 = vld [vmem:[%s12] sm:$0xff]
        %v2530 = vcombine.high %v2528, %v2528
        %v2532 = vsel %vm780, %v2525, 0
        %v2534 = vsel %vm784, %v2528, 0
        %v2536 = vsel %vm784, %v2530, 0
        %2538 = vmatprep.subr.mxu0 %v2536
        %2539 = vmatpush1.msra.mxu0 %v2534
        %2540 = vmatprep.subr.mxu0 0.0
        %2541 = vmatpush1.msra.mxu0 0.0
        %2542 = vmatprep.subr.mxu0 0.0
        %2543 = vmatpush1.msra.mxu0 0.0
        %2544 = vmatprep.subr.mxu0 0.0
        %2545 = vmatpush1.msra.mxu0 0.0
        %2546 = vmatprep.subr.mxu0 0.0
        %2547 = vmatpush1.msra.mxu0 0.0
        %2548 = vmatprep.subr.mxu0 0.0
        %2549 = vmatpush1.msra.mxu0 0.0
        %2550 = vmatprep.subr.mxu0 0.0
        %2551 = vmatpush1.msra.mxu0 0.0
        %2552 = vmatprep.subr.mxu0 0.0
        %2553 = vmatpush1.msra.mxu0 0.0
        %2554 = vmatprep.subr.mxu0 0.0
        %2555 = vmatpush1.msra.mxu0 0.0
        %2556 = vmatprep.subr.mxu0 0.0
        %2557 = vmatpush1.msra.mxu0 0.0
        %2558 = vmatprep.subr.mxu0 0.0
        %2559 = vmatpush1.msra.mxu0 0.0
        %2560 = vmatprep.subr.mxu0 0.0
        %2561 = vmatpush1.msra.mxu0 0.0
        %2562 = vmatprep.subr.mxu0 0.0
        %2563 = vmatpush1.msra.mxu0 0.0
        %2564 = vmatprep.subr.mxu0 0.0
        %2565 = vmatpush1.msra.mxu0 0.0
        %2566 = vmatprep.subr.mxu0 0.0
        %2567 = vmatpush1.msra.mxu0 0.0
        %2568 = vmatprep.subr.mxu0 0.0
        %2569 = vmatpush1.msra.mxu0 0.0
        %2570 = vmatprep.subr.mxu0 0.0
        %2571 = vmatpush1.msra.mxu0 0.0
        %2572 = vmatprep.subr.mxu0 0.0
        %2573 = vmatpush1.msra.mxu0 0.0
        %2574 = vmatprep.subr.mxu0 0.0
        %2575 = vmatpush1.msra.mxu0 0.0
        %2576 = vmatprep.subr.mxu0 0.0
        %2577 = vmatpush1.msra.mxu0 0.0
        %2578 = vmatprep.subr.mxu0 0.0
        %2579 = vmatpush1.msra.mxu0 0.0
        %2580 = vmatprep.subr.mxu0 0.0
        %2581 = vmatpush1.msra.mxu0 0.0
        %2582 = vmatprep.subr.mxu0 0.0
        %2583 = vmatpush1.msra.mxu0 0.0
        %2584 = vmatprep.subr.mxu0 0.0
        %2585 = vmatpush1.msra.mxu0 0.0
        %2586 = vmatprep.subr.mxu0 0.0
        %2587 = vmatpush1.msra.mxu0 0.0
        %2588 = vmatprep.subr.mxu0 0.0
        %2589 = vmatpush1.msra.mxu0 0.0
        %2590 = vmatprep.subr.mxu0 0.0
        %2591 = vmatpush1.msra.mxu0 0.0
        %2592 = vmatprep.subr.mxu0 0.0
        %2593 = vmatpush1.msra.mxu0 0.0
        %2594 = vmatprep.subr.mxu0 0.0
        %2595 = vmatpush1.msra.mxu0 0.0
        %2596 = vmatprep.subr.mxu0 0.0
        %2597 = vmatpush1.msra.mxu0 0.0
        %2598 = vmatprep.subr.mxu0 0.0
        %2599 = vmatpush1.msra.mxu0 0.0
        %2600 = vmatprep.subr.mxu0 0.0
        %2601 = vmatpush1.msra.mxu0 0.0
        %2602 = vmatprep.mubr.f32.mxu0 0.0
        %2603 = vmatmul.mubr.f32.gmra.mrb[0].mxu0 %v2532
        %v2604 = vpop.f32.mrb[0].mxu0
        %v2605 = vadd.f32 0.0, %v2604
        %v2606 = vpop.f32.mrb[0].mxu0
        %v2607 = vadd.f32 0.0, %v2606
        %2608 = vdwg.mxu0
        %v2611 = vcombine.low %v2605, %v2607
        %v2612 = vcombine.high %v2605, %v2607
        %v2614 = vunpack.c.l.s4 1966171168
        %v2615 = vunpack.c.0.s8 %v2614
        %v2616 = vlaneseq
        %v2617 = vshrl.u32 %v2616, 7
        %v2618 = vsub.s32 %v2615, %v2617
        %v2619 = vrot.slane %v2611, %v2618
        %v2621 = vunpack.c.l.s4 1966171168
        %v2622 = vunpack.c.0.s8 %v2621
        %v2623 = vlaneseq
        %v2624 = vshrl.u32 %v2623, 7
        %v2625 = vsub.s32 %v2622, %v2624
        %v2626 = vrot.slane %v2612, %v2625
        %v2627 = vcombine.high %v2619, %v2619
        %v2628 = vcombine.high %v2626, %v2626
        %v2630 = vunpack.c.l.s4 1966171168
        %v2631 = vunpack.c.0.s8 %v2630
        %v2632 = vlaneseq
        %v2633 = vshrl.u32 %v2632, 7
        %v2634 = vsub.s32 %v2631, %v2633
        %v2635 = vrot.slane %v2619, %v2634
        %v2637 = vunpack.c.l.s4 1966171168
        %v2638 = vunpack.c.0.s8 %v2637
        %v2639 = vlaneseq
        %v2640 = vshrl.u32 %v2639, 7
        %v2641 = vsub.s32 %v2638, %v2640
        %v2642 = vrot.slane %v2626, %v2641
        %v2644 = vunpack.c.l.s4 1966171168
        %v2645 = vunpack.c.0.s8 %v2644
        %v2646 = vlaneseq
        %v2647 = vshrl.u32 %v2646, 7
        %v2648 = vsub.s32 %v2645, %v2647
        %v2649 = vrot.slane %v2627, %v2648
        %v2651 = vunpack.c.l.s4 1966171168
        %v2652 = vunpack.c.0.s8 %v2651
        %v2653 = vlaneseq
        %v2654 = vshrl.u32 %v2653, 7
        %v2655 = vsub.s32 %v2652, %v2654
        %v2656 = vrot.slane %v2628, %v2655
        %v2657 = vcombine.high %v2635, %v2635
        %v2658 = vcombine.high %v2642, %v2642
        %v2659 = vcombine.high %v2649, %v2649
        %v2660 = vcombine.high %v2656, %v2656
        %v2661 = vlaneseq
        %v2662 = vshrl.u32 %v2661, 7
        %v2663 = vsub.s32 0, %v2662
        %v2664 = vrot.slane %v2635, %v2663
        %v2665 = vlaneseq
        %v2666 = vshrl.u32 %v2665, 7
        %v2667 = vsub.s32 1, %v2666
        %v2668 = vrot.slane %v2635, %v2667
        %v2669 = vlaneseq
        %v2670 = vshrl.u32 %v2669, 7
        %v2671 = vsub.s32 0, %v2670
        %v2672 = vrot.slane %v2649, %v2671
        %v2673 = vlaneseq
        %v2674 = vshrl.u32 %v2673, 7
        %v2675 = vsub.s32 1, %v2674
        %v2676 = vrot.slane %v2649, %v2675
        %v2677 = vlaneseq
        %v2678 = vshrl.u32 %v2677, 7
        %v2679 = vsub.s32 0, %v2678
        %v2680 = vrot.slane %v2657, %v2679
        %v2681 = vlaneseq
        %v2682 = vshrl.u32 %v2681, 7
        %v2683 = vsub.s32 1, %v2682
        %v2684 = vrot.slane %v2657, %v2683
        %v2685 = vlaneseq
        %v2686 = vshrl.u32 %v2685, 7
        %v2687 = vsub.s32 0, %v2686
        %v2688 = vrot.slane %v2659, %v2687
        %v2689 = vlaneseq
        %v2690 = vshrl.u32 %v2689, 7
        %v2691 = vsub.s32 1, %v2690
        %v2692 = vrot.slane %v2659, %v2691
        %v2693 = vlaneseq
        %v2694 = vshrl.u32 %v2693, 7
        %v2695 = vsub.s32 0, %v2694
        %v2696 = vrot.slane %v2642, %v2695
        %v2697 = vlaneseq
        %v2698 = vshrl.u32 %v2697, 7
        %v2699 = vsub.s32 1, %v2698
        %v2700 = vrot.slane %v2642, %v2699
        %v2701 = vlaneseq
        %v2702 = vshrl.u32 %v2701, 7
        %v2703 = vsub.s32 0, %v2702
        %v2704 = vrot.slane %v2656, %v2703
        %v2705 = vlaneseq
        %v2706 = vshrl.u32 %v2705, 7
        %v2707 = vsub.s32 1, %v2706
        %v2708 = vrot.slane %v2656, %v2707
        %v2709 = vlaneseq
        %v2710 = vshrl.u32 %v2709, 7
        %v2711 = vsub.s32 0, %v2710
        %v2712 = vrot.slane %v2658, %v2711
        %v2713 = vlaneseq
        %v2714 = vshrl.u32 %v2713, 7
        %v2715 = vsub.s32 1, %v2714
        %v2716 = vrot.slane %v2658, %v2715
        %v2717 = vlaneseq
        %v2718 = vshrl.u32 %v2717, 7
        %v2719 = vsub.s32 0, %v2718
        %v2720 = vrot.slane %v2660, %v2719
        %v2721 = vlaneseq
        %v2722 = vshrl.u32 %v2721, 7
        %v2723 = vsub.s32 1, %v2722
        %v2724 = vrot.slane %v2660, %v2723
        %v2741 = vsub.f32 %v2250, %v2664
        %v2742 = vsub.f32 %v2251, %v2668
        %v2743 = vsub.f32 %v2252, %v2664
        %v2744 = vsub.f32 %v2253, %v2668
        %v2745 = vsub.f32 %v2254, %v2672
        %v2746 = vsub.f32 %v2255, %v2676
        %v2747 = vsub.f32 %v2256, %v2672
        %v2748 = vsub.f32 %v2257, %v2676
        %v2749 = vsub.f32 %v2258, %v2680
        %v2750 = vsub.f32 %v2259, %v2684
        %v2751 = vsub.f32 %v2260, %v2680
        %v2752 = vsub.f32 %v2261, %v2684
        %v2753 = vsub.f32 %v2262, %v2688
        %v2754 = vsub.f32 %v2263, %v2692
        %v2755 = vsub.f32 %v2264, %v2688
        %v2756 = vsub.f32 %v2265, %v2692
        %v2757 = vsub.f32 %v2266, %v2696
        %v2758 = vsub.f32 %v2267, %v2700
        %v2759 = vsub.f32 %v2268, %v2696
        %v2760 = vsub.f32 %v2269, %v2700
        %v2761 = vsub.f32 %v2270, %v2704
        %v2762 = vsub.f32 %v2271, %v2708
        %v2763 = vsub.f32 %v2272, %v2704
        %v2764 = vsub.f32 %v2273, %v2708
        %v2765 = vsub.f32 %v2274, %v2712
        %v2766 = vsub.f32 %v2275, %v2716
        %v2767 = vsub.f32 %v2276, %v2712
        %v2768 = vsub.f32 %v2277, %v2716
        %v2769 = vsub.f32 %v2278, %v2720
        %v2770 = vsub.f32 %v2279, %v2724
        %v2771 = vsub.f32 %v2280, %v2720
        %v2772 = vsub.f32 %v2281, %v2724
        %v2773 = vmul.f32 %v2741, %v2741
        %v2774 = vmul.f32 %v2742, %v2742
        %v2775 = vmul.f32 %v2743, %v2743
        %v2776 = vmul.f32 %v2744, %v2744
        %v2777 = vmul.f32 %v2745, %v2745
        %v2778 = vmul.f32 %v2746, %v2746
        %v2779 = vmul.f32 %v2747, %v2747
        %v2780 = vmul.f32 %v2748, %v2748
        %v2781 = vmul.f32 %v2749, %v2749
        %v2782 = vmul.f32 %v2750, %v2750
        %v2783 = vmul.f32 %v2751, %v2751
        %v2784 = vmul.f32 %v2752, %v2752
        %v2785 = vmul.f32 %v2753, %v2753
        %v2786 = vmul.f32 %v2754, %v2754
        %v2787 = vmul.f32 %v2755, %v2755
        %v2788 = vmul.f32 %v2756, %v2756
        %v2789 = vmul.f32 %v2757, %v2757
        %v2790 = vmul.f32 %v2758, %v2758
        %v2791 = vmul.f32 %v2759, %v2759
        %v2792 = vmul.f32 %v2760, %v2760
        %v2793 = vmul.f32 %v2761, %v2761
        %v2794 = vmul.f32 %v2762, %v2762
        %v2795 = vmul.f32 %v2763, %v2763
        %v2796 = vmul.f32 %v2764, %v2764
        %v2797 = vmul.f32 %v2765, %v2765
        %v2798 = vmul.f32 %v2766, %v2766
        %v2799 = vmul.f32 %v2767, %v2767
        %v2800 = vmul.f32 %v2768, %v2768
        %v2801 = vmul.f32 %v2769, %v2769
        %v2802 = vmul.f32 %v2770, %v2770
        %v2803 = vmul.f32 %v2771, %v2771
        %v2804 = vmul.f32 %v2772, %v2772
        %v2805 = vadd.f32 %v2773, %v2775
        %v2806 = vrot.slane %v2805, 4
        %v2807 = vadd.f32 %v2805, %v2806
        %v2808 = vrot.slane %v2807, 2
        %v2809 = vadd.f32 %v2807, %v2808
        %v2810 = vrot.slane %v2809, 1
        %v2811 = vadd.f32 %v2809, %v2810
        %v2812 = vadd.f32 %v2774, %v2776
        %v2813 = vrot.slane %v2812, 4
        %v2814 = vadd.f32 %v2812, %v2813
        %v2815 = vrot.slane %v2814, 2
        %v2816 = vadd.f32 %v2814, %v2815
        %v2817 = vrot.slane %v2816, 1
        %v2818 = vadd.f32 %v2816, %v2817
        %v2819 = vadd.f32 %v2777, %v2779
        %v2820 = vrot.slane %v2819, 4
        %v2821 = vadd.f32 %v2819, %v2820
        %v2822 = vrot.slane %v2821, 2
        %v2823 = vadd.f32 %v2821, %v2822
        %v2824 = vrot.slane %v2823, 1
        %v2825 = vadd.f32 %v2823, %v2824
        %v2826 = vadd.f32 %v2778, %v2780
        %v2827 = vrot.slane %v2826, 4
        %v2828 = vadd.f32 %v2826, %v2827
        %v2829 = vrot.slane %v2828, 2
        %v2830 = vadd.f32 %v2828, %v2829
        %v2831 = vrot.slane %v2830, 1
        %v2832 = vadd.f32 %v2830, %v2831
        %v2833 = vadd.f32 %v2781, %v2783
        %v2834 = vrot.slane %v2833, 4
        %v2835 = vadd.f32 %v2833, %v2834
        %v2836 = vrot.slane %v2835, 2
        %v2837 = vadd.f32 %v2835, %v2836
        %v2838 = vrot.slane %v2837, 1
        %v2839 = vadd.f32 %v2837, %v2838
        %v2840 = vadd.f32 %v2782, %v2784
        %v2841 = vrot.slane %v2840, 4
        %v2842 = vadd.f32 %v2840, %v2841
        %v2843 = vrot.slane %v2842, 2
        %v2844 = vadd.f32 %v2842, %v2843
        %v2845 = vrot.slane %v2844, 1
        %v2846 = vadd.f32 %v2844, %v2845
        %v2847 = vadd.f32 %v2785, %v2787
        %v2848 = vrot.slane %v2847, 4
        %v2849 = vadd.f32 %v2847, %v2848
        %v2850 = vrot.slane %v2849, 2
        %v2851 = vadd.f32 %v2849, %v2850
        %v2852 = vrot.slane %v2851, 1
        %v2853 = vadd.f32 %v2851, %v2852
        %v2854 = vadd.f32 %v2786, %v2788
        %v2855 = vrot.slane %v2854, 4
        %v2856 = vadd.f32 %v2854, %v2855
        %v2857 = vrot.slane %v2856, 2
        %v2858 = vadd.f32 %v2856, %v2857
        %v2859 = vrot.slane %v2858, 1
        %v2860 = vadd.f32 %v2858, %v2859
        %v2861 = vadd.f32 %v2789, %v2791
        %v2862 = vrot.slane %v2861, 4
        %v2863 = vadd.f32 %v2861, %v2862
        %v2864 = vrot.slane %v2863, 2
        %v2865 = vadd.f32 %v2863, %v2864
        %v2866 = vrot.slane %v2865, 1
        %v2867 = vadd.f32 %v2865, %v2866
        %v2868 = vadd.f32 %v2790, %v2792
        %v2869 = vrot.slane %v2868, 4
        %v2870 = vadd.f32 %v2868, %v2869
        %v2871 = vrot.slane %v2870, 2
        %v2872 = vadd.f32 %v2870, %v2871
        %v2873 = vrot.slane %v2872, 1
        %v2874 = vadd.f32 %v2872, %v2873
        %v2875 = vadd.f32 %v2793, %v2795
        %v2876 = vrot.slane %v2875, 4
        %v2877 = vadd.f32 %v2875, %v2876
        %v2878 = vrot.slane %v2877, 2
        %v2879 = vadd.f32 %v2877, %v2878
        %v2880 = vrot.slane %v2879, 1
        %v2881 = vadd.f32 %v2879, %v2880
        %v2882 = vadd.f32 %v2794, %v2796
        %v2883 = vrot.slane %v2882, 4
        %v2884 = vadd.f32 %v2882, %v2883
        %v2885 = vrot.slane %v2884, 2
        %v2886 = vadd.f32 %v2884, %v2885
        %v2887 = vrot.slane %v2886, 1
        %v2888 = vadd.f32 %v2886, %v2887
        %v2889 = vadd.f32 %v2797, %v2799
        %v2890 = vrot.slane %v2889, 4
        %v2891 = vadd.f32 %v2889, %v2890
        %v2892 = vrot.slane %v2891, 2
        %v2893 = vadd.f32 %v2891, %v2892
        %v2894 = vrot.slane %v2893, 1
        %v2895 = vadd.f32 %v2893, %v2894
        %v2896 = vadd.f32 %v2798, %v2800
        %v2897 = vrot.slane %v2896, 4
        %v2898 = vadd.f32 %v2896, %v2897
        %v2899 = vrot.slane %v2898, 2
        %v2900 = vadd.f32 %v2898, %v2899
        %v2901 = vrot.slane %v2900, 1
        %v2902 = vadd.f32 %v2900, %v2901
        %v2903 = vadd.f32 %v2801, %v2803
        %v2904 = vrot.slane %v2903, 4
        %v2905 = vadd.f32 %v2903, %v2904
        %v2906 = vrot.slane %v2905, 2
        %v2907 = vadd.f32 %v2905, %v2906
        %v2908 = vrot.slane %v2907, 1
        %v2909 = vadd.f32 %v2907, %v2908
        %v2910 = vadd.f32 %v2802, %v2804
        %v2911 = vrot.slane %v2910, 4
        %v2912 = vadd.f32 %v2910, %v2911
        %v2913 = vrot.slane %v2912, 2
        %v2914 = vadd.f32 %v2912, %v2913
        %v2915 = vrot.slane %v2914, 1
        %v2916 = vadd.f32 %v2914, %v2915
        %v2933 = vsel %vm694, %v2825, %v2811
        %v2934 = vsel %vm696, %v2839, %v2933
        %v2935 = vsel %vm698, %v2853, %v2934
        %v2936 = vsel %vm700, %v2867, %v2935
        %v2937 = vsel %vm702, %v2881, %v2936
        %v2938 = vsel %vm704, %v2895, %v2937
        %v2939 = vsel %vm706, %v2909, %v2938
        %v2940 = vsel %vm694, %v2832, %v2818
        %v2941 = vsel %vm696, %v2846, %v2940
        %v2942 = vsel %vm698, %v2860, %v2941
        %v2943 = vsel %vm700, %v2874, %v2942
        %v2944 = vsel %vm702, %v2888, %v2943
        %v2945 = vsel %vm704, %v2902, %v2944
        %v2946 = vsel %vm706, %v2916, %v2945
        %2949 = vmatprep.subr.mxu0 0.0
        %2950 = vmatpush1.msra.mxu0 %v2394
        %2951 = vmatprep.subr.mxu0 0.0
        %2952 = vmatpush1.msra.mxu0 %v2395
        %2953 = vmatprep.subr.mxu0 0.0
        %2954 = vmatpush1.msra.mxu0 %v2396
        %2955 = vmatprep.subr.mxu0 0.0
        %2956 = vmatpush1.msra.mxu0 %v2397
        %2957 = vmatprep.subr.mxu0 0.0
        %2958 = vmatpush1.msra.mxu0 %v2398
        %2959 = vmatprep.subr.mxu0 0.0
        %2960 = vmatpush1.msra.mxu0 %v2399
        %2961 = vmatprep.subr.mxu0 0.0
        %2962 = vmatpush1.msra.mxu0 %v2400
        %2963 = vmatprep.subr.mxu0 0.0
        %2964 = vmatpush1.msra.mxu0 %v2401
        %2965 = vmatprep.subr.mxu0 0.0
        %2966 = vmatpush1.msra.mxu0 %v2402
        %2967 = vmatprep.subr.mxu0 0.0
        %2968 = vmatpush1.msra.mxu0 %v2403
        %2969 = vmatprep.subr.mxu0 0.0
        %2970 = vmatpush1.msra.mxu0 %v2404
        %2971 = vmatprep.subr.mxu0 0.0
        %2972 = vmatpush1.msra.mxu0 %v2405
        %2973 = vmatprep.subr.mxu0 0.0
        %2974 = vmatpush1.msra.mxu0 %v2406
        %2975 = vmatprep.subr.mxu0 0.0
        %2976 = vmatpush1.msra.mxu0 %v2407
        %2977 = vmatprep.subr.mxu0 0.0
        %2978 = vmatpush1.msra.mxu0 %v2408
        %2979 = vmatprep.subr.mxu0 0.0
        %2980 = vmatpush1.msra.mxu0 %v2409
        %2981 = vmatprep.subr.mxu0 0.0
        %2982 = vmatpush1.msra.mxu0 %v2410
        %2983 = vmatprep.subr.mxu0 0.0
        %2984 = vmatpush1.msra.mxu0 %v2411
        %2985 = vmatprep.subr.mxu0 0.0
        %2986 = vmatpush1.msra.mxu0 %v2412
        %2987 = vmatprep.subr.mxu0 0.0
        %2988 = vmatpush1.msra.mxu0 %v2413
        %2989 = vmatprep.subr.mxu0 0.0
        %2990 = vmatpush1.msra.mxu0 %v2414
        %2991 = vmatprep.subr.mxu0 0.0
        %2992 = vmatpush1.msra.mxu0 %v2415
        %2993 = vmatprep.subr.mxu0 0.0
        %2994 = vmatpush1.msra.mxu0 %v2416
        %2995 = vmatprep.subr.mxu0 0.0
        %2996 = vmatpush1.msra.mxu0 %v2417
        %2997 = vmatprep.subr.mxu0 0.0
        %2998 = vmatpush1.msra.mxu0 %v2418
        %2999 = vmatprep.subr.mxu0 0.0
        %3000 = vmatpush1.msra.mxu0 %v2419
        %3001 = vmatprep.subr.mxu0 0.0
        %3002 = vmatpush1.msra.mxu0 %v2420
        %3003 = vmatprep.subr.mxu0 0.0
        %3004 = vmatpush1.msra.mxu0 %v2421
        %3005 = vmatprep.subr.mxu0 0.0
        %3006 = vmatpush1.msra.mxu0 %v2422
        %3007 = vmatprep.subr.mxu0 0.0
        %3008 = vmatpush1.msra.mxu0 %v2423
        %3009 = vmatprep.subr.mxu0 0.0
        %3010 = vmatpush1.msra.mxu0 %v2424
        %3011 = vmatprep.subr.mxu0 0.0
        %3012 = vmatpush1.msra.mxu0 %v2425
        %3013 = vmatprep.mubr.f32.mxu0 %v2946
        %3014 = vmatmul.mubr.f32.gmra.mrb[0].mxu0 %v2939
        %v3015 = vpop.f32.mrb[0].mxu0
        %v3016 = vadd.f32 0.0, %v3015
        %v3017 = vpop.f32.mrb[0].mxu0
        %3018 = vdwg.mxu0
        %v3020 = vsel %vm780, %v3016, 0
        %3022 = vmatprep.subr.mxu0 %v2536
        %3023 = vmatpush1.msra.mxu0 %v2534
        %3024 = vmatprep.subr.mxu0 0.0
        %3025 = vmatpush1.msra.mxu0 0.0
        %3026 = vmatprep.subr.mxu0 0.0
        %3027 = vmatpush1.msra.mxu0 0.0
        %3028 = vmatprep.subr.mxu0 0.0
        %3029 = vmatpush1.msra.mxu0 0.0
        %3030 = vmatprep.subr.mxu0 0.0
        %3031 = vmatpush1.msra.mxu0 0.0
        %3032 = vmatprep.subr.mxu0 0.0
        %3033 = vmatpush1.msra.mxu0 0.0
        %3034 = vmatprep.subr.mxu0 0.0
        %3035 = vmatpush1.msra.mxu0 0.0
        %3036 = vmatprep.subr.mxu0 0.0
        %3037 = vmatpush1.msra.mxu0 0.0
        %3038 = vmatprep.subr.mxu0 0.0
        %3039 = vmatpush1.msra.mxu0 0.0
        %3040 = vmatprep.subr.mxu0 0.0
        %3041 = vmatpush1.msra.mxu0 0.0
        %3042 = vmatprep.subr.mxu0 0.0
        %3043 = vmatpush1.msra.mxu0 0.0
        %3044 = vmatprep.subr.mxu0 0.0
        %3045 = vmatpush1.msra.mxu0 0.0
        %3046 = vmatprep.subr.mxu0 0.0
        %3047 = vmatpush1.msra.mxu0 0.0
        %3048 = vmatprep.subr.mxu0 0.0
        %3049 = vmatpush1.msra.mxu0 0.0
        %3050 = vmatprep.subr.mxu0 0.0
        %3051 = vmatpush1.msra.mxu0 0.0
        %3052 = vmatprep.subr.mxu0 0.0
        %3053 = vmatpush1.msra.mxu0 0.0
        %3054 = vmatprep.subr.mxu0 0.0
        %3055 = vmatpush1.msra.mxu0 0.0
        %3056 = vmatprep.subr.mxu0 0.0
        %3057 = vmatpush1.msra.mxu0 0.0
        %3058 = vmatprep.subr.mxu0 0.0
        %3059 = vmatpush1.msra.mxu0 0.0
        %3060 = vmatprep.subr.mxu0 0.0
        %3061 = vmatpush1.msra.mxu0 0.0
        %3062 = vmatprep.subr.mxu0 0.0
        %3063 = vmatpush1.msra.mxu0 0.0
        %3064 = vmatprep.subr.mxu0 0.0
        %3065 = vmatpush1.msra.mxu0 0.0
        %3066 = vmatprep.subr.mxu0 0.0
        %3067 = vmatpush1.msra.mxu0 0.0
        %3068 = vmatprep.subr.mxu0 0.0
        %3069 = vmatpush1.msra.mxu0 0.0
        %3070 = vmatprep.subr.mxu0 0.0
        %3071 = vmatpush1.msra.mxu0 0.0
        %3072 = vmatprep.subr.mxu0 0.0
        %3073 = vmatpush1.msra.mxu0 0.0
        %3074 = vmatprep.subr.mxu0 0.0
        %3075 = vmatpush1.msra.mxu0 0.0
        %3076 = vmatprep.subr.mxu0 0.0
        %3077 = vmatpush1.msra.mxu0 0.0
        %3078 = vmatprep.subr.mxu0 0.0
        %3079 = vmatpush1.msra.mxu0 0.0
        %3080 = vmatprep.subr.mxu0 0.0
        %3081 = vmatpush1.msra.mxu0 0.0
        %3082 = vmatprep.subr.mxu0 0.0
        %3083 = vmatpush1.msra.mxu0 0.0
        %3084 = vmatprep.subr.mxu0 0.0
        %3085 = vmatpush1.msra.mxu0 0.0
        %3086 = vmatprep.mubr.f32.mxu0 0.0
        %3087 = vmatmul.mubr.f32.gmra.mrb[0].mxu0 %v3020
        %v3088 = vpop.f32.mrb[0].mxu0
        %v3089 = vadd.f32 1e-06, %v3088
        %v3090 = vpop.f32.mrb[0].mxu0
        %v3091 = vadd.f32 1e-06, %v3090
        %3092 = vdwg.mxu0
        %v3093 = vrsqrt.pop %v3089
        %v3094 = vrsqrt.pop %v3091
        %v3095 = vld [vmem:[%s9] sm:$0x3]
        %v3097 = vlaneseq
        %v3098 = vshrl.u32 %v3097, 7
        %v3099 = vsub.s32 0, %v3098
        %v3100 = vrot.slane %v3095, %v3099
        %v3101 = vlaneseq
        %v3102 = vshrl.u32 %v3101, 7
        %v3103 = vsub.s32 1, %v3102
        %v3104 = vrot.slane %v3095, %v3103
        %v3107 = vmul.f32 %v3093, %v3100
        %v3108 = vmul.f32 %v3094, %v3104
        %v3111 = vcombine.low %v3107, %v3108
        %v3112 = vcombine.high %v3107, %v3108
        %v3114 = vunpack.c.l.s4 1966171168
        %v3115 = vunpack.c.0.s8 %v3114
        %v3116 = vlaneseq
        %v3117 = vshrl.u32 %v3116, 7
        %v3118 = vsub.s32 %v3115, %v3117
        %v3119 = vrot.slane %v3111, %v3118
        %v3121 = vunpack.c.l.s4 1966171168
        %v3122 = vunpack.c.0.s8 %v3121
        %v3123 = vlaneseq
        %v3124 = vshrl.u32 %v3123, 7
        %v3125 = vsub.s32 %v3122, %v3124
        %v3126 = vrot.slane %v3112, %v3125
        %v3127 = vcombine.high %v3119, %v3119
        %v3128 = vcombine.high %v3126, %v3126
        %v3130 = vunpack.c.l.s4 1966171168
        %v3131 = vunpack.c.0.s8 %v3130
        %v3132 = vlaneseq
        %v3133 = vshrl.u32 %v3132, 7
        %v3134 = vsub.s32 %v3131, %v3133
        %v3135 = vrot.slane %v3119, %v3134
        %v3137 = vunpack.c.l.s4 1966171168
        %v3138 = vunpack.c.0.s8 %v3137
        %v3139 = vlaneseq
        %v3140 = vshrl.u32 %v3139, 7
        %v3141 = vsub.s32 %v3138, %v3140
        %v3142 = vrot.slane %v3126, %v3141
        %v3144 = vunpack.c.l.s4 1966171168
        %v3145 = vunpack.c.0.s8 %v3144
        %v3146 = vlaneseq
        %v3147 = vshrl.u32 %v3146, 7
        %v3148 = vsub.s32 %v3145, %v3147
        %v3149 = vrot.slane %v3127, %v3148
        %v3151 = vunpack.c.l.s4 1966171168
        %v3152 = vunpack.c.0.s8 %v3151
        %v3153 = vlaneseq
        %v3154 = vshrl.u32 %v3153, 7
        %v3155 = vsub.s32 %v3152, %v3154
        %v3156 = vrot.slane %v3128, %v3155
        %v3157 = vcombine.high %v3135, %v3135
        %v3158 = vcombine.high %v3142, %v3142
        %v3159 = vcombine.high %v3149, %v3149
        %v3160 = vcombine.high %v3156, %v3156
        %v3161 = vlaneseq
        %v3162 = vshrl.u32 %v3161, 7
        %v3163 = vsub.s32 0, %v3162
        %v3164 = vrot.slane %v3135, %v3163
        %v3165 = vlaneseq
        %v3166 = vshrl.u32 %v3165, 7
        %v3167 = vsub.s32 1, %v3166
        %v3168 = vrot.slane %v3135, %v3167
        %v3169 = vlaneseq
        %v3170 = vshrl.u32 %v3169, 7
        %v3171 = vsub.s32 0, %v3170
        %v3172 = vrot.slane %v3149, %v3171
        %v3173 = vlaneseq
        %v3174 = vshrl.u32 %v3173, 7
        %v3175 = vsub.s32 1, %v3174
        %v3176 = vrot.slane %v3149, %v3175
        %v3177 = vlaneseq
        %v3178 = vshrl.u32 %v3177, 7
        %v3179 = vsub.s32 0, %v3178
        %v3180 = vrot.slane %v3157, %v3179
        %v3181 = vlaneseq
        %v3182 = vshrl.u32 %v3181, 7
        %v3183 = vsub.s32 1, %v3182
        %v3184 = vrot.slane %v3157, %v3183
        %v3185 = vlaneseq
        %v3186 = vshrl.u32 %v3185, 7
        %v3187 = vsub.s32 0, %v3186
        %v3188 = vrot.slane %v3159, %v3187
        %v3189 = vlaneseq
        %v3190 = vshrl.u32 %v3189, 7
        %v3191 = vsub.s32 1, %v3190
        %v3192 = vrot.slane %v3159, %v3191
        %v3193 = vlaneseq
        %v3194 = vshrl.u32 %v3193, 7
        %v3195 = vsub.s32 0, %v3194
        %v3196 = vrot.slane %v3142, %v3195
        %v3197 = vlaneseq
        %v3198 = vshrl.u32 %v3197, 7
        %v3199 = vsub.s32 1, %v3198
        %v3200 = vrot.slane %v3142, %v3199
        %v3201 = vlaneseq
        %v3202 = vshrl.u32 %v3201, 7
        %v3203 = vsub.s32 0, %v3202
        %v3204 = vrot.slane %v3156, %v3203
        %v3205 = vlaneseq
        %v3206 = vshrl.u32 %v3205, 7
        %v3207 = vsub.s32 1, %v3206
        %v3208 = vrot.slane %v3156, %v3207
        %v3209 = vlaneseq
        %v3210 = vshrl.u32 %v3209, 7
        %v3211 = vsub.s32 0, %v3210
        %v3212 = vrot.slane %v3158, %v3211
        %v3213 = vlaneseq
        %v3214 = vshrl.u32 %v3213, 7
        %v3215 = vsub.s32 1, %v3214
        %v3216 = vrot.slane %v3158, %v3215
        %v3217 = vlaneseq
        %v3218 = vshrl.u32 %v3217, 7
        %v3219 = vsub.s32 0, %v3218
        %v3220 = vrot.slane %v3160, %v3219
        %v3221 = vlaneseq
        %v3222 = vshrl.u32 %v3221, 7
        %v3223 = vsub.s32 1, %v3222
        %v3224 = vrot.slane %v3160, %v3223
        %v3241 = vmul.f32 %v2741, %v3164
        %v3242 = vmul.f32 %v2742, %v3168
        %v3243 = vmul.f32 %v2743, %v3164
        %v3244 = vmul.f32 %v2744, %v3168
        %v3245 = vmul.f32 %v2745, %v3172
        %v3246 = vmul.f32 %v2746, %v3176
        %v3247 = vmul.f32 %v2747, %v3172
        %v3248 = vmul.f32 %v2748, %v3176
        %v3249 = vmul.f32 %v2749, %v3180
        %v3250 = vmul.f32 %v2750, %v3184
        %v3251 = vmul.f32 %v2751, %v3180
        %v3252 = vmul.f32 %v2752, %v3184
        %v3253 = vmul.f32 %v2753, %v3188
        %v3254 = vmul.f32 %v2754, %v3192
        %v3255 = vmul.f32 %v2755, %v3188
        %v3256 = vmul.f32 %v2756, %v3192
        %v3257 = vmul.f32 %v2757, %v3196
        %v3258 = vmul.f32 %v2758, %v3200
        %v3259 = vmul.f32 %v2759, %v3196
        %v3260 = vmul.f32 %v2760, %v3200
        %v3261 = vmul.f32 %v2761, %v3204
        %v3262 = vmul.f32 %v2762, %v3208
        %v3263 = vmul.f32 %v2763, %v3204
        %v3264 = vmul.f32 %v2764, %v3208
        %v3265 = vmul.f32 %v2765, %v3212
        %v3266 = vmul.f32 %v2766, %v3216
        %v3267 = vmul.f32 %v2767, %v3212
        %v3268 = vmul.f32 %v2768, %v3216
        %v3269 = vmul.f32 %v2769, %v3220
        %v3270 = vmul.f32 %v2770, %v3224
        %v3271 = vmul.f32 %v2771, %v3220
        %v3272 = vmul.f32 %v2772, %v3224
        %v3273 = vld [vmem:[%s10] sm:$0x3]
        %v3275 = vlaneseq
        %v3276 = vshrl.u32 %v3275, 7
        %v3277 = vsub.s32 0, %v3276
        %v3278 = vrot.slane %v3273, %v3277
        %v3279 = vlaneseq
        %v3280 = vshrl.u32 %v3279, 7
        %v3281 = vsub.s32 1, %v3280
        %v3282 = vrot.slane %v3273, %v3281
        %v3285 = vadd.f32 %v3241, %v3278
        %v3286 = vadd.f32 %v3242, %v3282
        %v3287 = vadd.f32 %v3243, %v3278
        %v3288 = vadd.f32 %v3244, %v3282
        %v3289 = vadd.f32 %v3245, %v3278
        %v3290 = vadd.f32 %v3246, %v3282
        %v3291 = vadd.f32 %v3247, %v3278
        %v3292 = vadd.f32 %v3248, %v3282
        %v3293 = vadd.f32 %v3249, %v3278
        %v3294 = vadd.f32 %v3250, %v3282
        %v3295 = vadd.f32 %v3251, %v3278
        %v3296 = vadd.f32 %v3252, %v3282
        %v3297 = vadd.f32 %v3253, %v3278
        %v3298 = vadd.f32 %v3254, %v3282
        %v3299 = vadd.f32 %v3255, %v3278
        %v3300 = vadd.f32 %v3256, %v3282
        %v3301 = vadd.f32 %v3257, %v3278
        %v3302 = vadd.f32 %v3258, %v3282
        %v3303 = vadd.f32 %v3259, %v3278
        %v3304 = vadd.f32 %v3260, %v3282
        %v3305 = vadd.f32 %v3261, %v3278
        %v3306 = vadd.f32 %v3262, %v3282
        %v3307 = vadd.f32 %v3263, %v3278
        %v3308 = vadd.f32 %v3264, %v3282
        %v3309 = vadd.f32 %v3265, %v3278
        %v3310 = vadd.f32 %v3266, %v3282
        %v3311 = vadd.f32 %v3267, %v3278
        %v3312 = vadd.f32 %v3268, %v3282
        %v3313 = vadd.f32 %v3269, %v3278
        %v3314 = vadd.f32 %v3270, %v3282
        %v3315 = vadd.f32 %v3271, %v3278
        %v3316 = vadd.f32 %v3272, %v3282
        %v3317 = vxor.u32 %v3285, 2147483648
        %v3318 = vxor.u32 %v3286, 2147483648
        %v3319 = vxor.u32 %v3287, 2147483648
        %v3320 = vxor.u32 %v3288, 2147483648
        %v3321 = vxor.u32 %v3289, 2147483648
        %v3322 = vxor.u32 %v3290, 2147483648
        %v3323 = vxor.u32 %v3291, 2147483648
        %v3324 = vxor.u32 %v3292, 2147483648
        %v3325 = vxor.u32 %v3293, 2147483648
        %v3326 = vxor.u32 %v3294, 2147483648
        %v3327 = vxor.u32 %v3295, 2147483648
        %v3328 = vxor.u32 %v3296, 2147483648
        %v3329 = vxor.u32 %v3297, 2147483648
        %v3330 = vxor.u32 %v3298, 2147483648
        %v3331 = vxor.u32 %v3299, 2147483648
        %v3332 = vxor.u32 %v3300, 2147483648
        %v3333 = vxor.u32 %v3301, 2147483648
        %v3334 = vxor.u32 %v3302, 2147483648
        %v3335 = vxor.u32 %v3303, 2147483648
        %v3336 = vxor.u32 %v3304, 2147483648
        %v3337 = vxor.u32 %v3305, 2147483648
        %v3338 = vxor.u32 %v3306, 2147483648
        %v3339 = vxor.u32 %v3307, 2147483648
        %v3340 = vxor.u32 %v3308, 2147483648
        %v3341 = vxor.u32 %v3309, 2147483648
        %v3342 = vxor.u32 %v3310, 2147483648
        %v3343 = vxor.u32 %v3311, 2147483648
        %v3344 = vxor.u32 %v3312, 2147483648
        %v3345 = vxor.u32 %v3313, 2147483648
        %v3346 = vxor.u32 %v3314, 2147483648
        %v3347 = vxor.u32 %v3315, 2147483648
        %v3348 = vxor.u32 %v3316, 2147483648
        %v3349 = vmul.f32 %v3317, 1.442695
        %v3350 = vpow.pop %v3349
        %v3351 = vmul.f32 %v3318, 1.442695
        %v3352 = vpow.pop %v3351
        %v3353 = vmul.f32 %v3319, 1.442695
        %v3354 = vpow.pop %v3353
        %v3355 = vmul.f32 %v3320, 1.442695
        %v3356 = vpow.pop %v3355
        %v3357 = vmul.f32 %v3321, 1.442695
        %v3358 = vpow.pop %v3357
        %v3359 = vmul.f32 %v3322, 1.442695
        %v3360 = vpow.pop %v3359
        %v3361 = vmul.f32 %v3323, 1.442695
        %v3362 = vpow.pop %v3361
        %v3363 = vmul.f32 %v3324, 1.442695
        %v3364 = vpow.pop %v3363
        %v3365 = vmul.f32 %v3325, 1.442695
        %v3366 = vpow.pop %v3365
        %v3367 = vmul.f32 %v3326, 1.442695
        %v3368 = vpow.pop %v3367
        %v3369 = vmul.f32 %v3327, 1.442695
        %v3370 = vpow.pop %v3369
        %v3371 = vmul.f32 %v3328, 1.442695
        %v3372 = vpow.pop %v3371
        %v3373 = vmul.f32 %v3329, 1.442695
        %v3374 = vpow.pop %v3373
        %v3375 = vmul.f32 %v3330, 1.442695
        %v3376 = vpow.pop %v3375
        %v3377 = vmul.f32 %v3331, 1.442695
        %v3378 = vpow.pop %v3377
        %v3379 = vmul.f32 %v3332, 1.442695
        %v3380 = vpow.pop %v3379
        %v3381 = vmul.f32 %v3333, 1.442695
        %v3382 = vpow.pop %v3381
        %v3383 = vmul.f32 %v3334, 1.442695
        %v3384 = vpow.pop %v3383
        %v3385 = vmul.f32 %v3335, 1.442695
        %v3386 = vpow.pop %v3385
        %v3387 = vmul.f32 %v3336, 1.442695
        %v3388 = vpow.pop %v3387
        %v3389 = vmul.f32 %v3337, 1.442695
        %v3390 = vpow.pop %v3389
        %v3391 = vmul.f32 %v3338, 1.442695
        %v3392 = vpow.pop %v3391
        %v3393 = vmul.f32 %v3339, 1.442695
        %v3394 = vpow.pop %v3393
        %v3395 = vmul.f32 %v3340, 1.442695
        %v3396 = vpow.pop %v3395
        %v3397 = vmul.f32 %v3341, 1.442695
        %v3398 = vpow.pop %v3397
        %v3399 = vmul.f32 %v3342, 1.442695
        %v3400 = vpow.pop %v3399
        %v3401 = vmul.f32 %v3343, 1.442695
        %v3402 = vpow.pop %v3401
        %v3403 = vmul.f32 %v3344, 1.442695
        %v3404 = vpow.pop %v3403
        %v3405 = vmul.f32 %v3345, 1.442695
        %v3406 = vpow.pop %v3405
        %v3407 = vmul.f32 %v3346, 1.442695
        %v3408 = vpow.pop %v3407
        %v3409 = vmul.f32 %v3347, 1.442695
        %v3410 = vpow.pop %v3409
        %v3411 = vmul.f32 %v3348, 1.442695
        %v3412 = vpow.pop %v3411
        %v3413 = vadd.f32 %v3350, 1.0
        %v3414 = vadd.f32 %v3352, 1.0
        %v3415 = vadd.f32 %v3354, 1.0
        %v3416 = vadd.f32 %v3356, 1.0
        %v3417 = vadd.f32 %v3358, 1.0
        %v3418 = vadd.f32 %v3360, 1.0
        %v3419 = vadd.f32 %v3362, 1.0
        %v3420 = vadd.f32 %v3364, 1.0
        %v3421 = vadd.f32 %v3366, 1.0
        %v3422 = vadd.f32 %v3368, 1.0
        %v3423 = vadd.f32 %v3370, 1.0
        %v3424 = vadd.f32 %v3372, 1.0
        %v3425 = vadd.f32 %v3374, 1.0
        %v3426 = vadd.f32 %v3376, 1.0
        %v3427 = vadd.f32 %v3378, 1.0
        %v3428 = vadd.f32 %v3380, 1.0
        %v3429 = vadd.f32 %v3382, 1.0
        %v3430 = vadd.f32 %v3384, 1.0
        %v3431 = vadd.f32 %v3386, 1.0
        %v3432 = vadd.f32 %v3388, 1.0
        %v3433 = vadd.f32 %v3390, 1.0
        %v3434 = vadd.f32 %v3392, 1.0
        %v3435 = vadd.f32 %v3394, 1.0
        %v3436 = vadd.f32 %v3396, 1.0
        %v3437 = vadd.f32 %v3398, 1.0
        %v3438 = vadd.f32 %v3400, 1.0
        %v3439 = vadd.f32 %v3402, 1.0
        %v3440 = vadd.f32 %v3404, 1.0
        %v3441 = vadd.f32 %v3406, 1.0
        %v3442 = vadd.f32 %v3408, 1.0
        %v3443 = vadd.f32 %v3410, 1.0
        %v3444 = vadd.f32 %v3412, 1.0
        %v3445 = vrcp.pop %v3413
        %v3446 = vmul.f32 1.0, %v3445
        %v3447 = vrcp.pop %v3414
        %v3448 = vmul.f32 1.0, %v3447
        %v3449 = vrcp.pop %v3415
        %v3450 = vmul.f32 1.0, %v3449
        %v3451 = vrcp.pop %v3416
        %v3452 = vmul.f32 1.0, %v3451
        %v3453 = vrcp.pop %v3417
        %v3454 = vmul.f32 1.0, %v3453
        %v3455 = vrcp.pop %v3418
        %v3456 = vmul.f32 1.0, %v3455
        %v3457 = vrcp.pop %v3419
        %v3458 = vmul.f32 1.0, %v3457
        %v3459 = vrcp.pop %v3420
        %v3460 = vmul.f32 1.0, %v3459
        %v3461 = vrcp.pop %v3421
        %v3462 = vmul.f32 1.0, %v3461
        %v3463 = vrcp.pop %v3422
        %v3464 = vmul.f32 1.0, %v3463
        %v3465 = vrcp.pop %v3423
        %v3466 = vmul.f32 1.0, %v3465
        %v3467 = vrcp.pop %v3424
        %v3468 = vmul.f32 1.0, %v3467
        %v3469 = vrcp.pop %v3425
        %v3470 = vmul.f32 1.0, %v3469
        %v3471 = vrcp.pop %v3426
        %v3472 = vmul.f32 1.0, %v3471
        %v3473 = vrcp.pop %v3427
        %v3474 = vmul.f32 1.0, %v3473
        %v3475 = vrcp.pop %v3428
        %v3476 = vmul.f32 1.0, %v3475
        %v3477 = vrcp.pop %v3429
        %v3478 = vmul.f32 1.0, %v3477
        %v3479 = vrcp.pop %v3430
        %v3480 = vmul.f32 1.0, %v3479
        %v3481 = vrcp.pop %v3431
        %v3482 = vmul.f32 1.0, %v3481
        %v3483 = vrcp.pop %v3432
        %v3484 = vmul.f32 1.0, %v3483
        %v3485 = vrcp.pop %v3433
        %v3486 = vmul.f32 1.0, %v3485
        %v3487 = vrcp.pop %v3434
        %v3488 = vmul.f32 1.0, %v3487
        %v3489 = vrcp.pop %v3435
        %v3490 = vmul.f32 1.0, %v3489
        %v3491 = vrcp.pop %v3436
        %v3492 = vmul.f32 1.0, %v3491
        %v3493 = vrcp.pop %v3437
        %v3494 = vmul.f32 1.0, %v3493
        %v3495 = vrcp.pop %v3438
        %v3496 = vmul.f32 1.0, %v3495
        %v3497 = vrcp.pop %v3439
        %v3498 = vmul.f32 1.0, %v3497
        %v3499 = vrcp.pop %v3440
        %v3500 = vmul.f32 1.0, %v3499
        %v3501 = vrcp.pop %v3441
        %v3502 = vmul.f32 1.0, %v3501
        %v3503 = vrcp.pop %v3442
        %v3504 = vmul.f32 1.0, %v3503
        %v3505 = vrcp.pop %v3443
        %v3506 = vmul.f32 1.0, %v3505
        %v3507 = vrcp.pop %v3444
        %v3508 = vmul.f32 1.0, %v3507
        %v3509 = vmul.f32 %v3285, %v3446
        %v3510 = vmul.f32 %v3286, %v3448
        %v3511 = vmul.f32 %v3287, %v3450
        %v3512 = vmul.f32 %v3288, %v3452
        %v3513 = vmul.f32 %v3289, %v3454
        %v3514 = vmul.f32 %v3290, %v3456
        %v3515 = vmul.f32 %v3291, %v3458
        %v3516 = vmul.f32 %v3292, %v3460
        %v3517 = vmul.f32 %v3293, %v3462
        %v3518 = vmul.f32 %v3294, %v3464
        %v3519 = vmul.f32 %v3295, %v3466
        %v3520 = vmul.f32 %v3296, %v3468
        %v3521 = vmul.f32 %v3297, %v3470
        %v3522 = vmul.f32 %v3298, %v3472
        %v3523 = vmul.f32 %v3299, %v3474
        %v3524 = vmul.f32 %v3300, %v3476
        %v3525 = vmul.f32 %v3301, %v3478
        %v3526 = vmul.f32 %v3302, %v3480
        %v3527 = vmul.f32 %v3303, %v3482
        %v3528 = vmul.f32 %v3304, %v3484
        %v3529 = vmul.f32 %v3305, %v3486
        %v3530 = vmul.f32 %v3306, %v3488
        %v3531 = vmul.f32 %v3307, %v3490
        %v3532 = vmul.f32 %v3308, %v3492
        %v3533 = vmul.f32 %v3309, %v3494
        %v3534 = vmul.f32 %v3310, %v3496
        %v3535 = vmul.f32 %v3311, %v3498
        %v3536 = vmul.f32 %v3312, %v3500
        %v3537 = vmul.f32 %v3313, %v3502
        %v3538 = vmul.f32 %v3314, %v3504
        %v3539 = vmul.f32 %v3315, %v3506
        %v3540 = vmul.f32 %v3316, %v3508
        %v3541 = vpack.c.bf16 %v3511, %v3509
        %v3542 = vpack.c.bf16 %v3512, %v3510
        %v3543 = vpack.c.bf16 %v3515, %v3513
        %v3544 = vpack.c.bf16 %v3516, %v3514
        %v3545 = vpack.c.bf16 %v3519, %v3517
        %v3546 = vpack.c.bf16 %v3520, %v3518
        %v3547 = vpack.c.bf16 %v3523, %v3521
        %v3548 = vpack.c.bf16 %v3524, %v3522
        %v3549 = vpack.c.bf16 %v3527, %v3525
        %v3550 = vpack.c.bf16 %v3528, %v3526
        %v3551 = vpack.c.bf16 %v3531, %v3529
        %v3552 = vpack.c.bf16 %v3532, %v3530
        %v3553 = vpack.c.bf16 %v3535, %v3533
        %v3554 = vpack.c.bf16 %v3536, %v3534
        %v3555 = vpack.c.bf16 %v3539, %v3537
        %v3556 = vpack.c.bf16 %v3540, %v3538
        %v3557 = vld [vmem:[#allocation8] sm:$0xff]
        %v3558 = vld [vmem:[#allocation8 + $0x8] sm:$0xff]
        %v3559 = vld [vmem:[#allocation8 + $0x10] sm:$0xff]
        %v3560 = vld [vmem:[#allocation8 + $0x18] sm:$0xff]
        %v3561 = vld [vmem:[#allocation8 + $0x20] sm:$0xff]
        %v3562 = vld [vmem:[#allocation8 + $0x28] sm:$0xff]
        %v3563 = vld [vmem:[#allocation8 + $0x30] sm:$0xff]
        %v3564 = vld [vmem:[#allocation8 + $0x38] sm:$0xff]
        %v3565 = vld [vmem:[#allocation8 + $0x40] sm:$0xff]
        %v3566 = vld [vmem:[#allocation8 + $0x48] sm:$0xff]
        %v3567 = vld [vmem:[#allocation8 + $0x50] sm:$0xff]
        %v3568 = vld [vmem:[#allocation8 + $0x58] sm:$0xff]
        %v3569 = vld [vmem:[#allocation8 + $0x60] sm:$0xff]
        %v3570 = vld [vmem:[#allocation8 + $0x68] sm:$0xff]
        %v3571 = vld [vmem:[#allocation8 + $0x70] sm:$0xff]
        %v3572 = vld [vmem:[#allocation8 + $0x78] sm:$0xff]
        %v3573 = vld [vmem:[#allocation8 + $0x80] sm:$0xff]
        %v3574 = vld [vmem:[#allocation8 + $0x88] sm:$0xff]
        %v3575 = vld [vmem:[#allocation8 + $0x90] sm:$0xff]
        %v3576 = vld [vmem:[#allocation8 + $0x98] sm:$0xff]
        %v3577 = vld [vmem:[#allocation8 + $0xa0] sm:$0xff]
        %v3578 = vld [vmem:[#allocation8 + $0xa8] sm:$0xff]
        %v3579 = vld [vmem:[#allocation8 + $0xb0] sm:$0xff]
        %v3580 = vld [vmem:[#allocation8 + $0xb8] sm:$0xff]
        %v3581 = vld [vmem:[#allocation8 + $0xc0] sm:$0xff]
        %v3582 = vld [vmem:[#allocation8 + $0xc8] sm:$0xff]
        %v3583 = vld [vmem:[#allocation8 + $0xd0] sm:$0xff]
        %v3584 = vld [vmem:[#allocation8 + $0xd8] sm:$0xff]
        %v3585 = vld [vmem:[#allocation8 + $0xe0] sm:$0xff]
        %v3586 = vld [vmem:[#allocation8 + $0xe8] sm:$0xff]
        %v3587 = vld [vmem:[#allocation8 + $0xf0] sm:$0xff]
        %v3588 = vld [vmem:[#allocation8 + $0xf8] sm:$0xff]
        %v3589 = vpack.c.bf16 %v599, %v598
        %v3590 = vpack.c.bf16 %v601, %v600
        %v3591 = vpack.c.bf16 %v603, %v602
        %v3592 = vpack.c.bf16 %v605, %v604
        %v3593 = vpack.c.bf16 %v607, %v606
        %v3594 = vpack.c.bf16 %v609, %v608
        %v3595 = vpack.c.bf16 %v611, %v610
        %v3596 = vpack.c.bf16 %v613, %v612
        %v3597 = vld [vmem:[#allocation10] sm:$0xff]
        %v3598 = vld [vmem:[#allocation10 + $0x8] sm:$0xff]
        %v3599 = vld [vmem:[#allocation10 + $0x10] sm:$0xff]
        %v3600 = vld [vmem:[#allocation10 + $0x18] sm:$0xff]
        %v3601 = vld [vmem:[#allocation10 + $0x20] sm:$0xff]
        %v3602 = vld [vmem:[#allocation10 + $0x28] sm:$0xff]
        %v3603 = vld [vmem:[#allocation10 + $0x30] sm:$0xff]
        %v3604 = vld [vmem:[#allocation10 + $0x38] sm:$0xff]
        %v3605 = vld [vmem:[#allocation10 + $0x40] sm:$0xff]
        %v3606 = vld [vmem:[#allocation10 + $0x48] sm:$0xff]
        %v3607 = vld [vmem:[#allocation10 + $0x50] sm:$0xff]
        %v3608 = vld [vmem:[#allocation10 + $0x58] sm:$0xff]
        %v3609 = vld [vmem:[#allocation10 + $0x60] sm:$0xff]
        %v3610 = vld [vmem:[#allocation10 + $0x68] sm:$0xff]
        %v3611 = vld [vmem:[#allocation10 + $0x70] sm:$0xff]
        %v3612 = vld [vmem:[#allocation10 + $0x78] sm:$0xff]
        %v3629 = vunpack.c.l.b16 %v3597
        %v3630 = vunpack.c.h.b16 %v3597
        %v3631 = vunpack.c.l.b16 %v3598
        %v3632 = vunpack.c.h.b16 %v3598
        %v3633 = vunpack.c.l.b16 %v3599
        %v3634 = vunpack.c.h.b16 %v3599
        %v3635 = vunpack.c.l.b16 %v3600
        %v3636 = vunpack.c.h.b16 %v3600
        %v3637 = vunpack.c.l.b16 %v3601
        %v3638 = vunpack.c.h.b16 %v3601
        %v3639 = vunpack.c.l.b16 %v3602
        %v3640 = vunpack.c.h.b16 %v3602
        %v3641 = vunpack.c.l.b16 %v3603
        %v3642 = vunpack.c.h.b16 %v3603
        %v3643 = vunpack.c.l.b16 %v3604
        %v3644 = vunpack.c.h.b16 %v3604
        %v3645 = vunpack.c.l.b16 %v3605
        %v3646 = vunpack.c.h.b16 %v3605
        %v3647 = vunpack.c.l.b16 %v3606
        %v3648 = vunpack.c.h.b16 %v3606
        %v3649 = vunpack.c.l.b16 %v3607
        %v3650 = vunpack.c.h.b16 %v3607
        %v3651 = vunpack.c.l.b16 %v3608
        %v3652 = vunpack.c.h.b16 %v3608
        %v3653 = vunpack.c.l.b16 %v3609
        %v3654 = vunpack.c.h.b16 %v3609
        %v3655 = vunpack.c.l.b16 %v3610
        %v3656 = vunpack.c.h.b16 %v3610
        %v3657 = vunpack.c.l.b16 %v3611
        %v3658 = vunpack.c.h.b16 %v3611
        %v3659 = vunpack.c.l.b16 %v3612
        %v3660 = vunpack.c.h.b16 %v3612
        %v3661 = vpack.c.b16 %v3631, %v3629
        %v3662 = vpack.c.b16 %v3632, %v3630
        %v3663 = vpack.c.b16 %v3635, %v3633
        %v3664 = vpack.c.b16 %v3636, %v3634
        %v3665 = vpack.c.b16 %v3639, %v3637
        %v3666 = vpack.c.b16 %v3640, %v3638
        %v3667 = vpack.c.b16 %v3643, %v3641
        %v3668 = vpack.c.b16 %v3644, %v3642
        %v3669 = vpack.c.b16 %v3647, %v3645
        %v3670 = vpack.c.b16 %v3648, %v3646
        %v3671 = vpack.c.b16 %v3651, %v3649
        %v3672 = vpack.c.b16 %v3652, %v3650
        %v3673 = vpack.c.b16 %v3655, %v3653
        %v3674 = vpack.c.b16 %v3656, %v3654
        %v3675 = vpack.c.b16 %v3659, %v3657
        %v3676 = vpack.c.b16 %v3660, %v3658
        %3693 = vmatprep.subr.bf16.mxu0 %v3662
        %3694 = vmatpush1.bf16.msra.mxu0 %v3661
        %3695 = vmatprep.subr.bf16.mxu0 %v3664
        %3696 = vmatpush1.bf16.msra.mxu0 %v3663
        %3697 = vmatprep.subr.bf16.mxu0 %v3666
        %3698 = vmatpush1.bf16.msra.mxu0 %v3665
        %3699 = vmatprep.subr.bf16.mxu0 %v3668
        %3700 = vmatpush1.bf16.msra.mxu0 %v3667
        %3701 = vmatprep.subr.bf16.mxu0 %v3670
        %3702 = vmatpush1.bf16.msra.mxu0 %v3669
        %3703 = vmatprep.subr.bf16.mxu0 %v3672
        %3704 = vmatpush1.bf16.msra.mxu0 %v3671
        %3705 = vmatprep.subr.bf16.mxu0 %v3674
        %3706 = vmatpush1.bf16.msra.mxu0 %v3673
        %3707 = vmatprep.subr.bf16.mxu0 %v3676
        %3708 = vmatpush1.bf16.msra.mxu0 %v3675
        %3709 = vmatprep.subr.bf16.mxu0 0
        %3710 = vmatpush1.bf16.msra.mxu0 0
        %3711 = vmatprep.subr.bf16.mxu0 0
        %3712 = vmatpush1.bf16.msra.mxu0 0
        %3713 = vmatprep.subr.bf16.mxu0 0
        %3714 = vmatpush1.bf16.msra.mxu0 0
        %3715 = vmatprep.subr.bf16.mxu0 0
        %3716 = vmatpush1.bf16.msra.mxu0 0
        %3717 = vmatprep.subr.bf16.mxu0 0
        %3718 = vmatpush1.bf16.msra.mxu0 0
        %3719 = vmatprep.subr.bf16.mxu0 0
        %3720 = vmatpush1.bf16.msra.mxu0 0
        %3721 = vmatprep.subr.bf16.mxu0 0
        %3722 = vmatpush1.bf16.msra.mxu0 0
        %3723 = vmatprep.subr.bf16.mxu0 0
        %3724 = vmatpush1.bf16.msra.mxu0 0
        %3725 = vmatprep.mubr.bf16.mxu0 0
        %3726 = vmatmul.mubr.bf16.gmra.mrb[0].mxu0 %v3589
        %v3727 = vpop.f32.mrb[0].mxu0
        %v3728 = vadd.f32 0.0, %v3727
        %v3729 = vpop.f32.mrb[0].mxu0
        %v3730 = vadd.f32 0.0, %v3729
        %v3731 = vpop.f32.mrb[0].mxu0
        %v3732 = vadd.f32 0.0, %v3731
        %v3733 = vpop.f32.mrb[0].mxu0
        %v3734 = vadd.f32 0.0, %v3733
        %3735 = vmatprep.mubr.bf16.mxu0 0
        %3736 = vmatmul.mubr.bf16.gmra.mrb[0].mxu0 %v3590
        %v3737 = vpop.f32.mrb[0].mxu0
        %v3738 = vadd.f32 0.0, %v3737
        %v3739 = vpop.f32.mrb[0].mxu0
        %v3740 = vadd.f32 0.0, %v3739
        %v3741 = vpop.f32.mrb[0].mxu0
        %v3742 = vadd.f32 0.0, %v3741
        %v3743 = vpop.f32.mrb[0].mxu0
        %v3744 = vadd.f32 0.0, %v3743
        %3745 = vmatprep.mubr.bf16.mxu0 0
        %3746 = vmatmul.mubr.bf16.gmra.mrb[0].mxu0 %v3591
        %v3747 = vpop.f32.mrb[0].mxu0
        %v3748 = vadd.f32 0.0, %v3747
        %v3749 = vpop.f32.mrb[0].mxu0
        %v3750 = vadd.f32 0.0, %v3749
        %v3751 = vpop.f32.mrb[0].mxu0
        %v3752 = vadd.f32 0.0, %v3751
        %v3753 = vpop.f32.mrb[0].mxu0
        %v3754 = vadd.f32 0.0, %v3753
        %3755 = vmatprep.mubr.bf16.mxu0 0
        %3756 = vmatmul.mubr.bf16.gmra.mrb[0].mxu0 %v3592
        %v3757 = vpop.f32.mrb[0].mxu0
        %v3758 = vadd.f32 0.0, %v3757
        %v3759 = vpop.f32.mrb[0].mxu0
        %v3760 = vadd.f32 0.0, %v3759
        %v3761 = vpop.f32.mrb[0].mxu0
        %v3762 = vadd.f32 0.0, %v3761
        %v3763 = vpop.f32.mrb[0].mxu0
        %v3764 = vadd.f32 0.0, %v3763
        %3765 = vmatprep.mubr.bf16.mxu0 0
        %3766 = vmatmul.mubr.bf16.gmra.mrb[0].mxu0 %v3593
        %v3767 = vpop.f32.mrb[0].mxu0
        %v3768 = vadd.f32 0.0, %v3767
        %v3769 = vpop.f32.mrb[0].mxu0
        %v3770 = vadd.f32 0.0, %v3769
        %v3771 = vpop.f32.mrb[0].mxu0
        %v3772 = vadd.f32 0.0, %v3771
        %v3773 = vpop.f32.mrb[0].mxu0
        %v3774 = vadd.f32 0.0, %v3773
        %3775 = vmatprep.mubr.bf16.mxu0 0
        %3776 = vmatmul.mubr.bf16.gmra.mrb[0].mxu0 %v3594
        %v3777 = vpop.f32.mrb[0].mxu0
        %v3778 = vadd.f32 0.0, %v3777
        %v3779 = vpop.f32.mrb[0].mxu0
        %v3780 = vadd.f32 0.0, %v3779
        %v3781 = vpop.f32.mrb[0].mxu0
        %v3782 = vadd.f32 0.0, %v3781
        %v3783 = vpop.f32.mrb[0].mxu0
        %v3784 = vadd.f32 0.0, %v3783
        %3785 = vmatprep.mubr.bf16.mxu0 0
        %3786 = vmatmul.mubr.bf16.gmra.mrb[0].mxu0 %v3595
        %v3787 = vpop.f32.mrb[0].mxu0
        %v3788 = vadd.f32 0.0, %v3787
        %v3789 = vpop.f32.mrb[0].mxu0
        %v3790 = vadd.f32 0.0, %v3789
        %v3791 = vpop.f32.mrb[0].mxu0
        %v3792 = vadd.f32 0.0, %v3791
        %v3793 = vpop.f32.mrb[0].mxu0
        %v3794 = vadd.f32 0.0, %v3793
        %3795 = vmatprep.mubr.bf16.mxu0 0
        %3796 = vmatmul.mubr.bf16.gmra.mrb[0].mxu0 %v3596
        %v3797 = vpop.f32.mrb[0].mxu0
        %v3798 = vadd.f32 0.0, %v3797
        %v3799 = vpop.f32.mrb[0].mxu0
        %v3800 = vadd.f32 0.0, %v3799
        %v3801 = vpop.f32.mrb[0].mxu0
        %v3802 = vadd.f32 0.0, %v3801
        %v3803 = vpop.f32.mrb[0].mxu0
        %v3804 = vadd.f32 0.0, %v3803
        %3805 = vdwg.mxu0
        %v3838 = vunpack.c.l.b16 %v3557
        %v3839 = vunpack.c.h.b16 %v3557
        %v3840 = vunpack.c.l.b16 %v3558
        %v3841 = vunpack.c.h.b16 %v3558
        %v3842 = vunpack.c.l.b16 %v3559
        %v3843 = vunpack.c.h.b16 %v3559
        %v3844 = vunpack.c.l.b16 %v3560
        %v3845 = vunpack.c.h.b16 %v3560
        %v3846 = vunpack.c.l.b16 %v3561
        %v3847 = vunpack.c.h.b16 %v3561
        %v3848 = vunpack.c.l.b16 %v3562
        %v3849 = vunpack.c.h.b16 %v3562
        %v3850 = vunpack.c.l.b16 %v3563
        %v3851 = vunpack.c.h.b16 %v3563
        %v3852 = vunpack.c.l.b16 %v3564
        %v3853 = vunpack.c.h.b16 %v3564
        %v3854 = vunpack.c.l.b16 %v3565
        %v3855 = vunpack.c.h.b16 %v3565
        %v3856 = vunpack.c.l.b16 %v3566
        %v3857 = vunpack.c.h.b16 %v3566
        %v3858 = vunpack.c.l.b16 %v3567
        %v3859 = vunpack.c.h.b16 %v3567
        %v3860 = vunpack.c.l.b16 %v3568
        %v3861 = vunpack.c.h.b16 %v3568
        %v3862 = vunpack.c.l.b16 %v3569
        %v3863 = vunpack.c.h.b16 %v3569
        %v3864 = vunpack.c.l.b16 %v3570
        %v3865 = vunpack.c.h.b16 %v3570
        %v3866 = vunpack.c.l.b16 %v3571
        %v3867 = vunpack.c.h.b16 %v3571
        %v3868 = vunpack.c.l.b16 %v3572
        %v3869 = vunpack.c.h.b16 %v3572
        %v3870 = vunpack.c.l.b16 %v3573
        %v3871 = vunpack.c.h.b16 %v3573
        %v3872 = vunpack.c.l.b16 %v3574
        %v3873 = vunpack.c.h.b16 %v3574
        %v3874 = vunpack.c.l.b16 %v3575
        %v3875 = vunpack.c.h.b16 %v3575
        %v3876 = vunpack.c.l.b16 %v3576
        %v3877 = vunpack.c.h.b16 %v3576
        %v3878 = vunpack.c.l.b16 %v3577
        %v3879 = vunpack.c.h.b16 %v3577
        %v3880 = vunpack.c.l.b16 %v3578
        %v3881 = vunpack.c.h.b16 %v3578
        %v3882 = vunpack.c.l.b16 %v3579
        %v3883 = vunpack.c.h.b16 %v3579
        %v3884 = vunpack.c.l.b16 %v3580
        %v3885 = vunpack.c.h.b16 %v3580
        %v3886 = vunpack.c.l.b16 %v3581
        %v3887 = vunpack.c.h.b16 %v3581
        %v3888 = vunpack.c.l.b16 %v3582
        %v3889 = vunpack.c.h.b16 %v3582
        %v3890 = vunpack.c.l.b16 %v3583
        %v3891 = vunpack.c.h.b16 %v3583
        %v3892 = vunpack.c.l.b16 %v3584
        %v3893 = vunpack.c.h.b16 %v3584
        %v3894 = vunpack.c.l.b16 %v3585
        %v3895 = vunpack.c.h.b16 %v3585
        %v3896 = vunpack.c.l.b16 %v3586
        %v3897 = vunpack.c.h.b16 %v3586
        %v3898 = vunpack.c.l.b16 %v3587
        %v3899 = vunpack.c.h.b16 %v3587
        %v3900 = vunpack.c.l.b16 %v3588
        %v3901 = vunpack.c.h.b16 %v3588
        %v3902 = vpack.c.b16 %v3840, %v3838
        %v3903 = vpack.c.b16 %v3841, %v3839
        %v3904 = vpack.c.b16 %v3844, %v3842
        %v3905 = vpack.c.b16 %v3845, %v3843
        %v3906 = vpack.c.b16 %v3848, %v3846
        %v3907 = vpack.c.b16 %v3849, %v3847
        %v3908 = vpack.c.b16 %v3852, %v3850
        %v3909 = vpack.c.b16 %v3853, %v3851
        %v3910 = vpack.c.b16 %v3856, %v3854
        %v3911 = vpack.c.b16 %v3857, %v3855
        %v3912 = vpack.c.b16 %v3860, %v3858
        %v3913 = vpack.c.b16 %v3861, %v3859
        %v3914 = vpack.c.b16 %v3864, %v3862
        %v3915 = vpack.c.b16 %v3865, %v3863
        %v3916 = vpack.c.b16 %v3868, %v3866
        %v3917 = vpack.c.b16 %v3869, %v3867
        %v3918 = vpack.c.b16 %v3872, %v3870
        %v3919 = vpack.c.b16 %v3873, %v3871
        %v3920 = vpack.c.b16 %v3876, %v3874
        %v3921 = vpack.c.b16 %v3877, %v3875
        %v3922 = vpack.c.b16 %v3880, %v3878
        %v3923 = vpack.c.b16 %v3881, %v3879
        %v3924 = vpack.c.b16 %v3884, %v3882
        %v3925 = vpack.c.b16 %v3885, %v3883
        %v3926 = vpack.c.b16 %v3888, %v3886
        %v3927 = vpack.c.b16 %v3889, %v3887
        %v3928 = vpack.c.b16 %v3892, %v3890
        %v3929 = vpack.c.b16 %v3893, %v3891
        %v3930 = vpack.c.b16 %v3896, %v3894
        %v3931 = vpack.c.b16 %v3897, %v3895
        %v3932 = vpack.c.b16 %v3900, %v3898
        %v3933 = vpack.c.b16 %v3901, %v3899
        %3966 = vmatprep.subr.bf16.mxu0 %v3903
        %3967 = vmatpush1.bf16.msra.mxu0 %v3902
        %3968 = vmatprep.subr.bf16.mxu0 %v3905
        %3969 = vmatpush1.bf16.msra.mxu0 %v3904
        %3970 = vmatprep.subr.bf16.mxu0 %v3907
        %3971 = vmatpush1.bf16.msra.mxu0 %v3906
        %3972 = vmatprep.subr.bf16.mxu0 %v3909
        %3973 = vmatpush1.bf16.msra.mxu0 %v3908
        %3974 = vmatprep.subr.bf16.mxu0 %v3911
        %3975 = vmatpush1.bf16.msra.mxu0 %v3910
        %3976 = vmatprep.subr.bf16.mxu0 %v3913
        %3977 = vmatpush1.bf16.msra.mxu0 %v3912
        %3978 = vmatprep.subr.bf16.mxu0 %v3915
        %3979 = vmatpush1.bf16.msra.mxu0 %v3914
        %3980 = vmatprep.subr.bf16.mxu0 %v3917
        %3981 = vmatpush1.bf16.msra.mxu0 %v3916
        %3982 = vmatprep.subr.bf16.mxu0 %v3919
        %3983 = vmatpush1.bf16.msra.mxu0 %v3918
        %3984 = vmatprep.subr.bf16.mxu0 %v3921
        %3985 = vmatpush1.bf16.msra.mxu0 %v3920
        %3986 = vmatprep.subr.bf16.mxu0 %v3923
        %3987 = vmatpush1.bf16.msra.mxu0 %v3922
        %3988 = vmatprep.subr.bf16.mxu0 %v3925
        %3989 = vmatpush1.bf16.msra.mxu0 %v3924
        %3990 = vmatprep.subr.bf16.mxu0 %v3927
        %3991 = vmatpush1.bf16.msra.mxu0 %v3926
        %3992 = vmatprep.subr.bf16.mxu0 %v3929
        %3993 = vmatpush1.bf16.msra.mxu0 %v3928
        %3994 = vmatprep.subr.bf16.mxu0 %v3931
        %3995 = vmatpush1.bf16.msra.mxu0 %v3930
        %3996 = vmatprep.subr.bf16.mxu0 %v3933
        %3997 = vmatpush1.bf16.msra.mxu0 %v3932
        %3998 = vmatprep.mubr.bf16.mxu0 %v3542
        %3999 = vmatmul.mubr.bf16.gmra.mrb[0].mxu0 %v3541
        %v4000 = vpop.f32.mrb[0].mxu0
        %v4001 = vadd.f32 %v3728, %v4000
        %v4002 = vpop.f32.mrb[0].mxu0
        %v4003 = vadd.f32 %v3730, %v4002
        %v4004 = vpop.f32.mrb[0].mxu0
        %v4005 = vadd.f32 %v3732, %v4004
        %v4006 = vpop.f32.mrb[0].mxu0
        %v4007 = vadd.f32 %v3734, %v4006
        %4008 = vmatprep.mubr.bf16.mxu0 %v3544
        %4009 = vmatmul.mubr.bf16.gmra.mrb[0].mxu0 %v3543
        %v4010 = vpop.f32.mrb[0].mxu0
        %v4011 = vadd.f32 %v3738, %v4010
        %v4012 = vpop.f32.mrb[0].mxu0
        %v4013 = vadd.f32 %v3740, %v4012
        %v4014 = vpop.f32.mrb[0].mxu0
        %v4015 = vadd.f32 %v3742, %v4014
        %v4016 = vpop.f32.mrb[0].mxu0
        %v4017 = vadd.f32 %v3744, %v4016
        %4018 = vmatprep.mubr.bf16.mxu0 %v3546
        %4019 = vmatmul.mubr.bf16.gmra.mrb[0].mxu0 %v3545
        %v4020 = vpop.f32.mrb[0].mxu0
        %v4021 = vadd.f32 %v3748, %v4020
        %v4022 = vpop.f32.mrb[0].mxu0
        %v4023 = vadd.f32 %v3750, %v4022
        %v4024 = vpop.f32.mrb[0].mxu0
        %v4025 = vadd.f32 %v3752, %v4024
        %v4026 = vpop.f32.mrb[0].mxu0
        %v4027 = vadd.f32 %v3754, %v4026
        %4028 = vmatprep.mubr.bf16.mxu0 %v3548
        %4029 = vmatmul.mubr.bf16.gmra.mrb[0].mxu0 %v3547
        %v4030 = vpop.f32.mrb[0].mxu0
        %v4031 = vadd.f32 %v3758, %v4030
        %v4032 = vpop.f32.mrb[0].mxu0
        %v4033 = vadd.f32 %v3760, %v4032
        %v4034 = vpop.f32.mrb[0].mxu0
        %v4035 = vadd.f32 %v3762, %v4034
        %v4036 = vpop.f32.mrb[0].mxu0
        %v4037 = vadd.f32 %v3764, %v4036
        %4038 = vmatprep.mubr.bf16.mxu0 %v3550
        %4039 = vmatmul.mubr.bf16.gmra.mrb[0].mxu0 %v3549
        %v4040 = vpop.f32.mrb[0].mxu0
        %v4041 = vadd.f32 %v3768, %v4040
        %v4042 = vpop.f32.mrb[0].mxu0
        %v4043 = vadd.f32 %v3770, %v4042
        %v4044 = vpop.f32.mrb[0].mxu0
        %v4045 = vadd.f32 %v3772, %v4044
        %v4046 = vpop.f32.mrb[0].mxu0
        %v4047 = vadd.f32 %v3774, %v4046
        %4048 = vmatprep.mubr.bf16.mxu0 %v3552
        %4049 = vmatmul.mubr.bf16.gmra.mrb[0].mxu0 %v3551
        %v4050 = vpop.f32.mrb[0].mxu0
        %v4051 = vadd.f32 %v3778, %v4050
        %v4052 = vpop.f32.mrb[0].mxu0
        %v4053 = vadd.f32 %v3780, %v4052
        %v4054 = vpop.f32.mrb[0].mxu0
        %v4055 = vadd.f32 %v3782, %v4054
        %v4056 = vpop.f32.mrb[0].mxu0
        %v4057 = vadd.f32 %v3784, %v4056
        %4058 = vmatprep.mubr.bf16.mxu0 %v3554
        %4059 = vmatmul.mubr.bf16.gmra.mrb[0].mxu0 %v3553
        %v4060 = vpop.f32.mrb[0].mxu0
        %v4061 = vadd.f32 %v3788, %v4060
        %v4062 = vpop.f32.mrb[0].mxu0
        %v4063 = vadd.f32 %v3790, %v4062
        %v4064 = vpop.f32.mrb[0].mxu0
        %v4065 = vadd.f32 %v3792, %v4064
        %v4066 = vpop.f32.mrb[0].mxu0
        %v4067 = vadd.f32 %v3794, %v4066
        %4068 = vmatprep.mubr.bf16.mxu0 %v3556
        %4069 = vmatmul.mubr.bf16.gmra.mrb[0].mxu0 %v3555
        %v4070 = vpop.f32.mrb[0].mxu0
        %v4071 = vadd.f32 %v3798, %v4070
        %v4072 = vpop.f32.mrb[0].mxu0
        %v4073 = vadd.f32 %v3800, %v4072
        %v4074 = vpop.f32.mrb[0].mxu0
        %v4075 = vadd.f32 %v3802, %v4074
        %v4076 = vpop.f32.mrb[0].mxu0
        %v4077 = vadd.f32 %v3804, %v4076
        %4078 = vdwg.mxu0
        %v4079 = vld [vmem:[%s15] sm:$0x3]
        %v4081 = vlaneseq
        %v4082 = vshrl.u32 %v4081, 7
        %v4083 = vsub.s32 0, %v4082
        %v4084 = vrot.slane %v4079, %v4083
        %v4085 = vlaneseq
        %v4086 = vshrl.u32 %v4085, 7
        %v4087 = vsub.s32 1, %v4086
        %v4088 = vrot.slane %v4079, %v4087
        %v4091 = vadd.f32 %v4001, %v4084
        %v4092 = vadd.f32 %v4003, %v4088
        %v4093 = vadd.f32 %v4005, %v4084
        %v4094 = vadd.f32 %v4007, %v4088
        %v4095 = vadd.f32 %v4011, %v4084
        %v4096 = vadd.f32 %v4013, %v4088
        %v4097 = vadd.f32 %v4015, %v4084
        %v4098 = vadd.f32 %v4017, %v4088
        %v4099 = vadd.f32 %v4021, %v4084
        %v4100 = vadd.f32 %v4023, %v4088
        %v4101 = vadd.f32 %v4025, %v4084
        %v4102 = vadd.f32 %v4027, %v4088
        %v4103 = vadd.f32 %v4031, %v4084
        %v4104 = vadd.f32 %v4033, %v4088
        %v4105 = vadd.f32 %v4035, %v4084
        %v4106 = vadd.f32 %v4037, %v4088
        %v4107 = vadd.f32 %v4041, %v4084
        %v4108 = vadd.f32 %v4043, %v4088
        %v4109 = vadd.f32 %v4045, %v4084
        %v4110 = vadd.f32 %v4047, %v4088
        %v4111 = vadd.f32 %v4051, %v4084
        %v4112 = vadd.f32 %v4053, %v4088
        %v4113 = vadd.f32 %v4055, %v4084
        %v4114 = vadd.f32 %v4057, %v4088
        %v4115 = vadd.f32 %v4061, %v4084
        %v4116 = vadd.f32 %v4063, %v4088
        %v4117 = vadd.f32 %v4065, %v4084
        %v4118 = vadd.f32 %v4067, %v4088
        %v4119 = vadd.f32 %v4071, %v4084
        %v4120 = vadd.f32 %v4073, %v4088
        %v4121 = vadd.f32 %v4075, %v4084
        %v4122 = vadd.f32 %v4077, %v4088
        %4123 = vst [vmem:[%s588] sm:$0xff] %v4091
        %4124 = vst [vmem:[%s588 + $0x8] sm:$0xff] %v4092
        %4125 = vst [vmem:[%s588 + $0x10] sm:$0xff] %v4093
        %4126 = vst [vmem:[%s588 + $0x18] sm:$0xff] %v4094
        %4127 = vst [vmem:[%s588 + $0x20] sm:$0xff] %v4095
        %4128 = vst [vmem:[%s588 + $0x28] sm:$0xff] %v4096
        %4129 = vst [vmem:[%s588 + $0x30] sm:$0xff] %v4097
        %4130 = vst [vmem:[%s588 + $0x38] sm:$0xff] %v4098
        %4131 = vst [vmem:[%s588 + $0x40] sm:$0xff] %v4099
        %4132 = vst [vmem:[%s588 + $0x48] sm:$0xff] %v4100
        %4133 = vst [vmem:[%s588 + $0x50] sm:$0xff] %v4101
        %4134 = vst [vmem:[%s588 + $0x58] sm:$0xff] %v4102
        %4135 = vst [vmem:[%s588 + $0x60] sm:$0xff] %v4103
        %4136 = vst [vmem:[%s588 + $0x68] sm:$0xff] %v4104
        %4137 = vst [vmem:[%s588 + $0x70] sm:$0xff] %v4105
        %4138 = vst [vmem:[%s588 + $0x78] sm:$0xff] %v4106
        %4139 = vst [vmem:[%s588 + $0x80] sm:$0xff] %v4107
        %4140 = vst [vmem:[%s588 + $0x88] sm:$0xff] %v4108
        %4141 = vst [vmem:[%s588 + $0x90] sm:$0xff] %v4109
        %4142 = vst [vmem:[%s588 + $0x98] sm:$0xff] %v4110
        %4143 = vst [vmem:[%s588 + $0xa0] sm:$0xff] %v4111
        %4144 = vst [vmem:[%s588 + $0xa8] sm:$0xff] %v4112
        %4145 = vst [vmem:[%s588 + $0xb0] sm:$0xff] %v4113
        %4146 = vst [vmem:[%s588 + $0xb8] sm:$0xff] %v4114
        %4147 = vst [vmem:[%s588 + $0xc0] sm:$0xff] %v4115
        %4148 = vst [vmem:[%s588 + $0xc8] sm:$0xff] %v4116
        %4149 = vst [vmem:[%s588 + $0xd0] sm:$0xff] %v4117
        %4150 = vst [vmem:[%s588 + $0xd8] sm:$0xff] %v4118
        %4151 = vst [vmem:[%s588 + $0xe0] sm:$0xff] %v4119
        %4152 = vst [vmem:[%s588 + $0xe8] sm:$0xff] %v4120
        %4153 = vst [vmem:[%s588 + $0xf0] sm:$0xff] %v4121
        %4154 = vst [vmem:[%s588 + $0xf8] sm:$0xff] %v4122
        %s4155 = sand.u32 %s382, 1
        %s4156 = scalar_lea.sflag [#allocation4], %s4155
        %s4157 = sand.u32 %s382, 1
        %s4158 = smul.addr %s4157, 256
        %s4159 = scalar_lea.vmem [#allocation11], %s4158
        // Predicated region
        $region105: #{tpu_custom_call.1} parent=83 // pred_check
          %p4160 = pneg %p392
        $region106: #{tpu_custom_call.1} parent=83 // pred_check_branch
          %4162 = sbr.rel (%p4160) target = $region108
        $region107: #{tpu_custom_call.1} parent=83 // pred_region
          %s4163 = smul.u32 8, %s33
          %s4165 = ssub.s32 4096, 4096
          %4166 = vsyncadd %s4156, %s4165
          %s4167 = smul.addr %s4163, 4
          %s4168 = smul.addr %s4167, 128
          %s4169 = scalar_lea.hbm %s16, %s4168
          %s4170 = sshll.u32 %s4159, 4
          %s4171 = int_to_ptr.vmem [resolvable:$true] %s4170
          %4176 = dma.vmem_to_hbm [thread:$0]  %s4171, 4096, %s4169, %s4156, 256, 256, 16
        $region108: #{tpu_custom_call.1} parent=83 // pred_fallthru
          _
      $region84: #{tpu_custom_call.1} parent=5 // pred_fallthru
        _
      %p4177 = scmp.le.s32.totalorder 2, %s28
      // Predicated region
      $region109: #{tpu_custom_call.1} parent=5 // pred_check
        %p4178 = pneg %p4177
      $region110: #{tpu_custom_call.1} parent=5 // pred_check_branch
        %4180 = sbr.rel (%p4178) target = $region112
      $region111: #{tpu_custom_call.1} parent=5 // pred_region
        %s4181 = ssub.s32 %s28, 2
        // Predicated region
        $region113: #{tpu_custom_call.1} parent=111 // pred_check
          %p4182 = pneg %p398
        $region114: #{tpu_custom_call.1} parent=111 // pred_check_branch
          %4184 = sbr.rel (%p4182) target = $region116
        $region115: #{tpu_custom_call.1} parent=111 // pred_region
          %s4185 = sand.u32 %s383, 1
          %s4186 = scalar_lea.sflag [#allocation4], %s4185
          %s4187 = sand.u32 %s383, 1
          %s4188 = smul.addr %s4187, 256
          %s4189 = scalar_lea.vmem [#allocation11], %s4188
          %4190 = dma.done %s4186, 4096
        $region116: #{tpu_custom_call.1} parent=111 // pred_fallthru
          _
      $region112: #{tpu_custom_call.1} parent=5 // pred_fallthru
        _
    $region6: #{tpu_custom_call.1} parent=1 // loop_footer
      %s32 = sadd.s32 1, %s28
    $region7: #{tpu_custom_call.1} parent=1 // loop_footer_branch
      %27 = sbr.rel target = $region3
    $region8: #{tpu_custom_call.1} parent=1 // loop_exit
      _
    %4191 = vsyncpa [#allocation3], 1
    %s4192 = scalar_lea.sflag [#allocation3], 1
    %4193 = vsyncpa %s4192, 1
    %4194 = vsyncpa [#allocation6], 1
    %4195 = vsyncpa [#allocation9], 1
    %4196 = vsyncpa [#allocation4], 1
    %s4197 = scalar_lea.sflag [#allocation4], 1
    %4198 = vsyncpa %s4197, 1

</llo_original>
